<compile_context>
chip_gen: v6e
topology: v6e:2x2x1
jax: 0.10.0
libtpu: 0.0.40
codegen_flags: <defaults>
</compile_context>

<pallas_src>
import jax
import jax.numpy as jnp
import numpy as np
from jax import lax
from jax.experimental import pallas as pl
from jax.experimental.pallas import tpu as pltpu


def _round_up(x, m):
    return ((x + m - 1) // m) * m


# ---------------------------------------------------------------------------
# Pallas kernels
# ---------------------------------------------------------------------------
def _gemm_bias_prelu_kernel(x_ref, w_ref, b_ref, a_ref, o_ref):
    # x: (TM, K), w: (K, Nc), b: (1, Nc) in VMEM; a: (1,) PReLU slope in SMEM.
    y = jnp.dot(x_ref[...], w_ref[...], preferred_element_type=jnp.float32)
    y = y + b_ref[...]
    a = a_ref[0]
    o_ref[...] = jnp.where(y > 0, y, y * a)


def gemm_bias_prelu(x, w, b, a, *, tm=512):
    """(x @ w + b) then PReLU, tiled over rows of x (grid parallel over M)."""
    M, K = x.shape
    _, Nc = w.shape
    tm = min(tm, _round_up(M, 8))
    Mp = _round_up(M, tm)
    if Mp != M:                       # explicit pad -> every block is full & aligned
        x = jnp.pad(x, ((0, Mp - M), (0, 0)))
    out = pl.pallas_call(
        _gemm_bias_prelu_kernel,
        out_shape=jax.ShapeDtypeStruct((Mp, Nc), jnp.float32),
        grid=(Mp // tm,),
        in_specs=[
            pl.BlockSpec((tm, K), lambda i: (i, 0)),
            pl.BlockSpec((K, Nc), lambda i: (0, 0)),
            pl.BlockSpec((1, Nc), lambda i: (0, 0)),
            pl.BlockSpec(memory_space=pltpu.MemorySpace.SMEM),
        ],
        out_specs=pl.BlockSpec((tm, Nc), lambda i: (i, 0)),
        compiler_params=pltpu.CompilerParams(dimension_semantics=("parallel",)),
    )(x, w, b.reshape(1, Nc), a)
    return out[:M] if Mp != M else out


def _maxpool_kernel(w_ref, o_ref):
    # w: (9, TM, C) -> o: (TM, C); single block load, max-reduce over leading axis.
    v = w_ref[...]
    r = v[0]
    for j in range(1, v.shape[0]):
        r = jnp.maximum(r, v[j])
    o_ref[...] = r


def maxpool_reduce(windows, *, tm=1024):
    kk, M, C = windows.shape
    tm = min(tm, _round_up(M, 8))
    Mp = _round_up(M, tm)
    if Mp != M:
        windows = jnp.pad(windows, ((0, 0), (0, Mp - M), (0, 0)))
    out = pl.pallas_call(
        _maxpool_kernel,
        out_shape=jax.ShapeDtypeStruct((Mp, C), jnp.float32),
        grid=(Mp // tm,),
        in_specs=[pl.BlockSpec((kk, tm, C), lambda i: (0, i, 0))],
        out_specs=pl.BlockSpec((tm, C), lambda i: (i, 0)),
        compiler_params=pltpu.CompilerParams(dimension_semantics=("parallel",)),
    )(windows)
    return out[:M] if Mp != M else out


def _head_kernel(x_ref, w3_ref, b3_ref, a3_ref, w4_ref, b4_ref, a4_ref,
                 w5_ref, b5_ref, o_ref):
    # Fused conv3 (as a dense (576,256) matmul) + PReLU3 + fc4 + PReLU4 + fc5.
    h = jnp.dot(x_ref[...], w3_ref[...], preferred_element_type=jnp.float32)
    h = h + b3_ref[...]
    h = jnp.where(h > 0, h, h * a3_ref[0])
    h = jnp.dot(h, w4_ref[...], preferred_element_type=jnp.float32) + b4_ref[...]
    h = jnp.where(h > 0, h, h * a4_ref[0])
    o_ref[...] = jnp.dot(h, w5_ref[...], preferred_element_type=jnp.float32) + b5_ref[...]


def head_forward(feat, kp, *, tm=256):
    M, K = feat.shape
    Nc = kp['w5'].shape[1]
    tm = min(tm, _round_up(M, 8))
    Mp = _round_up(M, tm)
    if Mp != M:
        feat = jnp.pad(feat, ((0, Mp - M), (0, 0)))
    full2d = lambda i: (0, 0)
    smem = pl.BlockSpec(memory_space=pltpu.MemorySpace.SMEM)
    out = pl.pallas_call(
        _head_kernel,
        out_shape=jax.ShapeDtypeStruct((Mp, Nc), jnp.float32),
        grid=(Mp // tm,),
        in_specs=[
            pl.BlockSpec((tm, K), lambda i: (i, 0)),
            pl.BlockSpec(kp['w3f'].shape, full2d),
            pl.BlockSpec((1, kp['b3f'].shape[0]), full2d),
            smem,
            pl.BlockSpec(kp['w4'].shape, full2d),
            pl.BlockSpec((1, kp['b4'].shape[0]), full2d),
            smem,
            pl.BlockSpec(kp['w5'].shape, full2d),
            pl.BlockSpec((1, Nc), full2d),
        ],
        out_specs=pl.BlockSpec((tm, Nc), lambda i: (i, 0)),
        compiler_params=pltpu.CompilerParams(dimension_semantics=("parallel",)),
    )(feat, kp['w3f'], kp['b3f'].reshape(1, -1), kp['a3'],
      kp['w4'], kp['b4'].reshape(1, -1), kp['a4'],
      kp['w5'], kp['b5'].reshape(1, -1))
    return out[:M] if Mp != M else out


# ---------------------------------------------------------------------------
# Plain-JAX glue (pure indexing / reshape)
# ---------------------------------------------------------------------------
def _im2col(x, k):
    # x: (N, H, W, C) -> (N*Ho*Wo, k*k*C); column order (dy, dx, c), c fastest.
    N, H, W, C = x.shape
    Ho, Wo = H - k + 1, W - k + 1
    cols = jnp.concatenate(
        [x[:, dy:dy + Ho, dx:dx + Wo, :] for dy in range(k) for dx in range(k)],
        axis=-1)                                       # (N, Ho, Wo, k*k*C)
    return cols.reshape(N * Ho * Wo, k * k * C), (N, Ho, Wo)


def _pool_windows(x, k=3, s=2):
    # x: (N, H, W, C) -> (k*k, N*Ho*Wo, C)   floor mode == MaxPool2d(3, 2) default.
    N, H, W, C = x.shape
    Ho, Wo = (H - k) // s + 1, (W - k) // s + 1
    wins = jnp.stack(
        [x[:, dy:dy + s * (Ho - 1) + 1:s, dx:dx + s * (Wo - 1) + 1:s, :]
         for dy in range(k) for dx in range(k)],
        axis=0)                                        # (k*k, N, Ho, Wo, C)
    return wins.reshape(k * k, N * Ho * Wo, C), (N, Ho, Wo)


# ---------------------------------------------------------------------------
# RNet forward
# ---------------------------------------------------------------------------
@jax.jit
def rnet_forward(x_nchw, kp):
    # NCHW -> NHWC, pad input channels 3 -> 8 (padded channels have zero weights).
    x = jnp.transpose(x_nchw, (0, 2, 3, 1)).astype(jnp.float32)
    x = jnp.pad(x, ((0, 0), (0, 0), (0, 0), (0, 8 - x.shape[-1])))

    # conv1 (k3) + PReLU1
    cols, (N, H, W) = _im2col(x, 3)                       # (N*484, 72)
    y = gemm_bias_prelu(cols, kp['w1'], kp['b1'], kp['a1']).reshape(N, H, W, -1)
    # pool1 (3, 2)
    wins, (N, H, W) = _pool_windows(y)
    y = maxpool_reduce(wins).reshape(N, H, W, -1)         # (N, 10, 10, 32)
    # conv2 (k3) + PReLU2
    cols, (N, H, W) = _im2col(y, 3)                       # (N*64, 288)
    y = gemm_bias_prelu(cols, kp['w2'], kp['b2'], kp['a2']).reshape(N, H, W, -1)
    # pool2 (3, 2)
    wins, (N, H, W) = _pool_windows(y)
    y = maxpool_reduce(wins).reshape(N, H, W, -1)         # (N, 3, 3, 64)

    # conv3 + PReLU3 + flatten + fc4 + PReLU4 + fc5 fused into one kernel.
    feat = y.reshape(N, -1)                               # (N, 576), NHWC order
    return head_forward(feat, kp)                         # (N, 15)


# ---------------------------------------------------------------------------
# Parameters (synthetic, deterministic; shapes from RNet.__init__)
# ---------------------------------------------------------------------------
def init_params(key):
    """Logical (unpadded) RNet params; conv weights in HWIO, fc in (in, out)."""
    ks = jax.random.split(key, 10)

    def w(k, shape, fan_in):
        return jax.random.normal(k, shape, jnp.float32) / np.sqrt(np.float32(fan_in))

    p = {}
    p['w1'] = w(ks[0], (3, 3, 3, 28), 27)
    p['b1'] = jax.random.normal(ks[1], (28,), jnp.float32) * 0.1
    p['w2'] = w(ks[2], (3, 3, 28, 48), 252)
    p['b2'] = jax.random.normal(ks[3], (48,), jnp.float32) * 0.1
    p['w3'] = w(ks[4], (2, 2, 48, 64), 192)
    p['b3'] = jax.random.normal(ks[5], (64,), jnp.float32) * 0.1
    # fc4 rows laid out in NHWC flatten order (h, w, c); porting a real PyTorch
    # checkpoint (NCHW flatten) would just permute these rows once at load time.
    p['w4'] = w(ks[6], (64 * 2 * 2, 128), 256)
    p['b4'] = jax.random.normal(ks[7], (128,), jnp.float32) * 0.1
    p['w5'] = w(ks[8], (128, 15), 128)
    p['b5'] = jax.random.normal(ks[9], (15,), jnp.float32) * 0.1
    for i in range(1, 5):
        p[f'a{i}'] = jnp.full((1,), 0.25, jnp.float32)    # nn.PReLU() default init
    return p


def prepare_params(p):
    """One-time host-side prep: channel/K zero-padding + conv3/flatten folding."""
    kp = {}
    # conv1: Cin 3->8, Cout 28->32, flatten HWIO -> (72, 32)
    w1 = np.zeros((3, 3, 8, 32), np.float32)
    w1[:, :, :3, :28] = np.asarray(p['w1'])
    kp['w1'] = jnp.asarray(w1.reshape(72, 32))
    b1 = np.zeros((32,), np.float32)
    b1[:28] = np.asarray(p['b1'])
    kp['b1'] = jnp.asarray(b1)
    # conv2: Cin 28->32, Cout 48->64, flatten -> (288, 64)
    w2 = np.zeros((3, 3, 32, 64), np.float32)
    w2[:, :, :28, :48] = np.asarray(p['w2'])
    kp['w2'] = jnp.asarray(w2.reshape(288, 64))
    b2 = np.zeros((64,), np.float32)
    b2[:48] = np.asarray(p['b2'])
    kp['b2'] = jnp.asarray(b2)
    # conv3 (2x2 VALID over a 3x3x64 map) folded with the NHWC flatten into a single
    # dense (3*3*64, 2*2*64) matrix, so conv3+flatten+fc4+fc5 become one kernel.
    w3 = np.zeros((2, 2, 64, 64), np.float32)
    w3[:, :, :48, :] = np.asarray(p['w3'])
    w3f = np.zeros((3 * 3 * 64, 2 * 2 * 64), np.float32)
    for ho in range(2):
        for wo in range(2):
            for dy in range(2):
                for dx in range(2):
                    hi, wi = ho + dy, wo + dx
                    r0 = (hi * 3 + wi) * 64
                    c0 = (ho * 2 + wo) * 64
                    w3f[r0:r0 + 64, c0:c0 + 64] = w3[dy, dx]
    kp['w3f'] = jnp.asarray(w3f)
    kp['b3f'] = jnp.asarray(np.tile(np.asarray(p['b3']), 4))
    kp['w4'] = p['w4']
    kp['b4'] = p['b4']
    kp['w5'] = p['w5']
    kp['b5'] = p['b5']
    for i in range(1, 5):
        kp[f'a{i}'] = p[f'a{i}']
    return kp


# ---------------------------------------------------------------------------
# Pure-JAX reference (correctness sanity check)
# ---------------------------------------------------------------------------
def rnet_reference(x_nchw, p):
    x = jnp.transpose(x_nchw, (0, 2, 3, 1)).astype(jnp.float32)

    def conv(x, w, b):
        y = lax.conv_general_dilated(x, w, (1, 1), 'VALID',
                                     dimension_numbers=('NHWC', 'HWIO', 'NHWC'))
        return y + b

    def prelu(x, a):
        return jnp.where(x > 0, x, x * a[0])

    def pool(x):
        return lax.reduce_window(x, -jnp.inf, lax.max,
                                 (1, 3, 3, 1), (1, 2, 2, 1), 'VALID')

    x = pool(prelu(conv(x, p['w1'], p['b1']), p['a1']))
    x = pool(prelu(conv(x, p['w2'], p['b2']), p['a2']))
    x = prelu(conv(x, p['w3'], p['b3']), p['a3'])
    x = x.reshape(x.shape[0], -1)        # NHWC flatten; w4 rows are in this order
    x = prelu(x @ p['w4'] + p['b4'], p['a4'])
    return x @ p['w5'] + p['b5']


if __name__ == "__main__":
    key = jax.random.PRNGKey(0)
    kx, kparam = jax.random.split(key)
    x = jax.random.normal(kx, (2, 3, 24, 24), jnp.float32)   # PyTorch NCHW input
    p = init_params(kparam)
    kp = prepare_params(p)

    out = rnet_forward(x, kp)
    out = jax.block_until_ready(out)
    assert out.shape == (2, 15)

    ref = rnet_reference(x, p)
    np.testing.assert_allclose(np.asarray(out), np.asarray(ref),
                               rtol=2e-4, atol=2e-4)
    print("KERNEL_OK")
</pallas_src>

<mosaic_0001>
module attributes {stable_mosaic.version = 11 : i64} {
  func.func @_gemm_bias_prelu_kernel(%arg0: i32, %arg1: memref<512x72xf32, #tpu.memory_space<vmem>>, %arg2: memref<72x32xf32, #tpu.memory_space<vmem>>, %arg3: memref<1x32xf32, #tpu.memory_space<vmem>>, %arg4: memref<1xf32, #tpu.memory_space<smem>>, %arg5: memref<512x32xf32, #tpu.memory_space<vmem>>) attributes {dimension_semantics = [#tpu.dimension_semantics<parallel>], iteration_bounds = array<i64: 2>, scalar_prefetch = 0 : i64, scratch_operands = 0 : i64, tpu.core_type = #tpu.core_type<tc>, window_params = [{transform_indices = @transform_0, window_bounds = array<i64: 512, 72>}, {pipeline_mode = #tpu.pipeline_mode<synchronous>, transform_indices = @transform_1, window_bounds = array<i64: 72, 32>}, {pipeline_mode = #tpu.pipeline_mode<synchronous>, transform_indices = @transform_2, window_bounds = array<i64: 1, 32>}, {transform_indices = @transform_3, window_bounds = array<i64: 1>}, {transform_indices = @transform_4, window_bounds = array<i64: 512, 32>}]} {
    %c0 = arith.constant 0 : index
    %c0_0 = arith.constant 0 : index
    %0 = vector.load %arg1[%c0, %c0_0] : memref<512x72xf32, #tpu.memory_space<vmem>>, vector<512x72xf32>
    %c0_1 = arith.constant 0 : index
    %c0_2 = arith.constant 0 : index
    %1 = vector.load %arg2[%c0_1, %c0_2] : memref<72x32xf32, #tpu.memory_space<vmem>>, vector<72x32xf32>
    %cst = arith.constant dense<0.000000e+00> : vector<512x32xf32>
    %2 = tpu.matmul %0, %1, %cst {dimension_numbers = #tpu.dot_dimension_numbers<[1], [0], [0], [1], [0, 0, 1, 1], [], []>} : vector<512x72xf32>, vector<72x32xf32>, vector<512x32xf32> -> vector<512x32xf32>
    %c0_3 = arith.constant 0 : index
    %c0_4 = arith.constant 0 : index
    %3 = vector.load %arg3[%c0_3, %c0_4] : memref<1x32xf32, #tpu.memory_space<vmem>>, vector<1x32xf32>
    %4 = vector.broadcast %3 : vector<1x32xf32> to vector<512x32xf32>
    %5 = arith.addf %2, %4 : vector<512x32xf32>
    %c0_5 = arith.constant 0 : index
    %6 = memref.load %arg4[%c0_5] : memref<1xf32, #tpu.memory_space<smem>>
    %cst_6 = arith.constant 0.000000e+00 : f32
    %7 = vector.broadcast %cst_6 : f32 to vector<512x32xf32>
    %8 = arith.cmpf ogt, %5, %7 : vector<512x32xf32>
    %9 = vector.broadcast %6 : f32 to vector<512x32xf32>
    %10 = arith.mulf %5, %9 : vector<512x32xf32>
    %11 = arith.select %8, %5, %10 : vector<512x32xi1>, vector<512x32xf32>
    %c0_7 = arith.constant 0 : index
    %c0_8 = arith.constant 0 : index
    %12 = vector.load %arg5[%c0_7, %c0_8] : memref<512x32xf32, #tpu.memory_space<vmem>>, vector<512x32xf32>
    tpu.vector_store %arg5[%c0_7, %c0_8], %11 {strides = array<i32>} : memref<512x32xf32, #tpu.memory_space<vmem>>, vector<512x32xf32>,
    return
  }
  func.func @transform_0(%arg0: i32) -> (i32, i32) {
    %c0_i32 = arith.constant 0 : i32
    %c0_i32_0 = arith.constant 0 : i32
    return %arg0, %c0_i32 : i32, i32
  }
  func.func @transform_1(%arg0: i32) -> (i32, i32) {
    %c0_i32 = arith.constant 0 : i32
    %c0_i32_0 = arith.constant 0 : i32
    %c0_i32_1 = arith.constant 0 : i32
    return %c0_i32, %c0_i32_0 : i32, i32
  }
  func.func @transform_2(%arg0: i32) -> (i32, i32) {
    %c0_i32 = arith.constant 0 : i32
    %c0_i32_0 = arith.constant 0 : i32
    %c0_i32_1 = arith.constant 0 : i32
    return %c0_i32, %c0_i32_0 : i32, i32
  }
  func.func @transform_3(%arg0: i32) -> i32 {
    %c0_i32 = arith.constant 0 : i32
    %c0_i32_0 = arith.constant 0 : i32
    return %c0_i32 : i32
  }
  func.func @transform_4(%arg0: i32) -> (i32, i32) {
    %c0_i32 = arith.constant 0 : i32
    %c0_i32_0 = arith.constant 0 : i32
    return %arg0, %c0_i32 : i32, i32
  }
}

module attributes {stable_mosaic.version = 11 : i64} {
  func.func @_maxpool_kernel(%arg0: i32, %arg1: memref<9x200x32xf32, #tpu.memory_space<vmem>>, %arg2: memref<200x32xf32, #tpu.memory_space<vmem>>) attributes {dimension_semantics = [#tpu.dimension_semantics<parallel>], iteration_bounds = array<i64: 1>, scalar_prefetch = 0 : i64, scratch_operands = 0 : i64, tpu.core_type = #tpu.core_type<tc>, window_params = [{transform_indices = @transform_0, window_bounds = array<i64: 9, 200, 32>}, {transform_indices = @transform_1, window_bounds = array<i64: 200, 32>}]} {
    %c0 = arith.constant 0 : index
    %c0_0 = arith.constant 0 : index
    %c0_1 = arith.constant 0 : index
    %0 = vector.load %arg1[%c0, %c0_0, %c0_1] : memref<9x200x32xf32, #tpu.memory_space<vmem>>, vector<9x200x32xf32>
    %1 = vector.extract_strided_slice %0 {offsets = [0, 0, 0], sizes = [1, 200, 32], strides = [1, 1, 1]} : vector<9x200x32xf32> to vector<1x200x32xf32>
    %2 = vector.shape_cast %1 : vector<1x200x32xf32> to vector<200x32xf32>
    %3 = vector.extract_strided_slice %0 {offsets = [1, 0, 0], sizes = [1, 200, 32], strides = [1, 1, 1]} : vector<9x200x32xf32> to vector<1x200x32xf32>
    %4 = vector.shape_cast %3 : vector<1x200x32xf32> to vector<200x32xf32>
    %5 = arith.maximumf %2, %4 : vector<200x32xf32>
    %6 = vector.extract_strided_slice %0 {offsets = [2, 0, 0], sizes = [1, 200, 32], strides = [1, 1, 1]} : vector<9x200x32xf32> to vector<1x200x32xf32>
    %7 = vector.shape_cast %6 : vector<1x200x32xf32> to vector<200x32xf32>
    %8 = arith.maximumf %5, %7 : vector<200x32xf32>
    %9 = vector.extract_strided_slice %0 {offsets = [3, 0, 0], sizes = [1, 200, 32], strides = [1, 1, 1]} : vector<9x200x32xf32> to vector<1x200x32xf32>
    %10 = vector.shape_cast %9 : vector<1x200x32xf32> to vector<200x32xf32>
    %11 = arith.maximumf %8, %10 : vector<200x32xf32>
    %12 = vector.extract_strided_slice %0 {offsets = [4, 0, 0], sizes = [1, 200, 32], strides = [1, 1, 1]} : vector<9x200x32xf32> to vector<1x200x32xf32>
    %13 = vector.shape_cast %12 : vector<1x200x32xf32> to vector<200x32xf32>
    %14 = arith.maximumf %11, %13 : vector<200x32xf32>
    %15 = vector.extract_strided_slice %0 {offsets = [5, 0, 0], sizes = [1, 200, 32], strides = [1, 1, 1]} : vector<9x200x32xf32> to vector<1x200x32xf32>
    %16 = vector.shape_cast %15 : vector<1x200x32xf32> to vector<200x32xf32>
    %17 = arith.maximumf %14, %16 : vector<200x32xf32>
    %18 = vector.extract_strided_slice %0 {offsets = [6, 0, 0], sizes = [1, 200, 32], strides = [1, 1, 1]} : vector<9x200x32xf32> to vector<1x200x32xf32>
    %19 = vector.shape_cast %18 : vector<1x200x32xf32> to vector<200x32xf32>
    %20 = arith.maximumf %17, %19 : vector<200x32xf32>
    %21 = vector.extract_strided_slice %0 {offsets = [7, 0, 0], sizes = [1, 200, 32], strides = [1, 1, 1]} : vector<9x200x32xf32> to vector<1x200x32xf32>
    %22 = vector.shape_cast %21 : vector<1x200x32xf32> to vector<200x32xf32>
    %23 = arith.maximumf %20, %22 : vector<200x32xf32>
    %24 = vector.extract_strided_slice %0 {offsets = [8, 0, 0], sizes = [1, 200, 32], strides = [1, 1, 1]} : vector<9x200x32xf32> to vector<1x200x32xf32>
    %25 = vector.shape_cast %24 : vector<1x200x32xf32> to vector<200x32xf32>
    %26 = arith.maximumf %23, %25 : vector<200x32xf32>
    %c0_2 = arith.constant 0 : index
    %c0_3 = arith.constant 0 : index
    %27 = vector.load %arg2[%c0_2, %c0_3] : memref<200x32xf32, #tpu.memory_space<vmem>>, vector<200x32xf32>
    tpu.vector_store %arg2[%c0_2, %c0_3], %26 {strides = array<i32>} : memref<200x32xf32, #tpu.memory_space<vmem>>, vector<200x32xf32>,
    return
  }
  func.func @transform_0(%arg0: i32) -> (i32, i32, i32) {
    %c0_i32 = arith.constant 0 : i32
    %c0_i32_0 = arith.constant 0 : i32
    %c0_i32_1 = arith.constant 0 : i32
    return %c0_i32, %arg0, %c0_i32_0 : i32, i32, i32
  }
  func.func @transform_1(%arg0: i32) -> (i32, i32) {
    %c0_i32 = arith.constant 0 : i32
    %c0_i32_0 = arith.constant 0 : i32
    return %arg0, %c0_i32 : i32, i32
  }
}

module attributes {stable_mosaic.version = 11 : i64} {
  func.func @_gemm_bias_prelu_kernel(%arg0: i32, %arg1: memref<128x288xf32, #tpu.memory_space<vmem>>, %arg2: memref<288x64xf32, #tpu.memory_space<vmem>>, %arg3: memref<1x64xf32, #tpu.memory_space<vmem>>, %arg4: memref<1xf32, #tpu.memory_space<smem>>, %arg5: memref<128x64xf32, #tpu.memory_space<vmem>>) attributes {dimension_semantics = [#tpu.dimension_semantics<parallel>], iteration_bounds = array<i64: 1>, scalar_prefetch = 0 : i64, scratch_operands = 0 : i64, tpu.core_type = #tpu.core_type<tc>, window_params = [{transform_indices = @transform_0, window_bounds = array<i64: 128, 288>}, {pipeline_mode = #tpu.pipeline_mode<synchronous>, transform_indices = @transform_1, window_bounds = array<i64: 288, 64>}, {pipeline_mode = #tpu.pipeline_mode<synchronous>, transform_indices = @transform_2, window_bounds = array<i64: 1, 64>}, {transform_indices = @transform_3, window_bounds = array<i64: 1>}, {transform_indices = @transform_4, window_bounds = array<i64: 128, 64>}]} {
    %c0 = arith.constant 0 : index
    %c0_0 = arith.constant 0 : index
    %0 = vector.load %arg1[%c0, %c0_0] : memref<128x288xf32, #tpu.memory_space<vmem>>, vector<128x288xf32>
    %c0_1 = arith.constant 0 : index
    %c0_2 = arith.constant 0 : index
    %1 = vector.load %arg2[%c0_1, %c0_2] : memref<288x64xf32, #tpu.memory_space<vmem>>, vector<288x64xf32>
    %cst = arith.constant dense<0.000000e+00> : vector<128x64xf32>
    %2 = tpu.matmul %0, %1, %cst {dimension_numbers = #tpu.dot_dimension_numbers<[1], [0], [0], [1], [0, 0, 1, 1], [], []>} : vector<128x288xf32>, vector<288x64xf32>, vector<128x64xf32> -> vector<128x64xf32>
    %c0_3 = arith.constant 0 : index
    %c0_4 = arith.constant 0 : index
    %3 = vector.load %arg3[%c0_3, %c0_4] : memref<1x64xf32, #tpu.memory_space<vmem>>, vector<1x64xf32>
    %4 = vector.broadcast %3 : vector<1x64xf32> to vector<128x64xf32>
    %5 = arith.addf %2, %4 : vector<128x64xf32>
    %c0_5 = arith.constant 0 : index
    %6 = memref.load %arg4[%c0_5] : memref<1xf32, #tpu.memory_space<smem>>
    %cst_6 = arith.constant 0.000000e+00 : f32
    %7 = vector.broadcast %cst_6 : f32 to vector<128x64xf32>
    %8 = arith.cmpf ogt, %5, %7 : vector<128x64xf32>
    %9 = vector.broadcast %6 : f32 to vector<128x64xf32>
    %10 = arith.mulf %5, %9 : vector<128x64xf32>
    %11 = arith.select %8, %5, %10 : vector<128x64xi1>, vector<128x64xf32>
    %c0_7 = arith.constant 0 : index
    %c0_8 = arith.constant 0 : index
    %12 = vector.load %arg5[%c0_7, %c0_8] : memref<128x64xf32, #tpu.memory_space<vmem>>, vector<128x64xf32>
    tpu.vector_store %arg5[%c0_7, %c0_8], %11 {strides = array<i32>} : memref<128x64xf32, #tpu.memory_space<vmem>>, vector<128x64xf32>,
    return
  }
  func.func @transform_0(%arg0: i32) -> (i32, i32) {
    %c0_i32 = arith.constant 0 : i32
    %c0_i32_0 = arith.constant 0 : i32
    return %arg0, %c0_i32 : i32, i32
  }
  func.func @transform_1(%arg0: i32) -> (i32, i32) {
    %c0_i32 = arith.constant 0 : i32
    %c0_i32_0 = arith.constant 0 : i32
    %c0_i32_1 = arith.constant 0 : i32
    return %c0_i32, %c0_i32_0 : i32, i32
  }
  func.func @transform_2(%arg0: i32) -> (i32, i32) {
    %c0_i32 = arith.constant 0 : i32
    %c0_i32_0 = arith.constant 0 : i32
    %c0_i32_1 = arith.constant 0 : i32
    return %c0_i32, %c0_i32_0 : i32, i32
  }
  func.func @transform_3(%arg0: i32) -> i32 {
    %c0_i32 = arith.constant 0 : i32
    %c0_i32_0 = arith.constant 0 : i32
    return %c0_i32 : i32
  }
  func.func @transform_4(%arg0: i32) -> (i32, i32) {
    %c0_i32 = arith.constant 0 : i32
    %c0_i32_0 = arith.constant 0 : i32
    return %arg0, %c0_i32 : i32, i32
  }
}

module attributes {stable_mosaic.version = 11 : i64} {
  func.func @_maxpool_kernel(%arg0: i32, %arg1: memref<9x24x64xf32, #tpu.memory_space<vmem>>, %arg2: memref<24x64xf32, #tpu.memory_space<vmem>>) attributes {dimension_semantics = [#tpu.dimension_semantics<parallel>], iteration_bounds = array<i64: 1>, scalar_prefetch = 0 : i64, scratch_operands = 0 : i64, tpu.core_type = #tpu.core_type<tc>, window_params = [{transform_indices = @transform_0, window_bounds = array<i64: 9, 24, 64>}, {transform_indices = @transform_1, window_bounds = array<i64: 24, 64>}]} {
    %c0 = arith.constant 0 : index
    %c0_0 = arith.constant 0 : index
    %c0_1 = arith.constant 0 : index
    %0 = vector.load %arg1[%c0, %c0_0, %c0_1] : memref<9x24x64xf32, #tpu.memory_space<vmem>>, vector<9x24x64xf32>
    %1 = vector.extract_strided_slice %0 {offsets = [0, 0, 0], sizes = [1, 24, 64], strides = [1, 1, 1]} : vector<9x24x64xf32> to vector<1x24x64xf32>
    %2 = vector.shape_cast %1 : vector<1x24x64xf32> to vector<24x64xf32>
    %3 = vector.extract_strided_slice %0 {offsets = [1, 0, 0], sizes = [1, 24, 64], strides = [1, 1, 1]} : vector<9x24x64xf32> to vector<1x24x64xf32>
    %4 = vector.shape_cast %3 : vector<1x24x64xf32> to vector<24x64xf32>
    %5 = arith.maximumf %2, %4 : vector<24x64xf32>
    %6 = vector.extract_strided_slice %0 {offsets = [2, 0, 0], sizes = [1, 24, 64], strides = [1, 1, 1]} : vector<9x24x64xf32> to vector<1x24x64xf32>
    %7 = vector.shape_cast %6 : vector<1x24x64xf32> to vector<24x64xf32>
    %8 = arith.maximumf %5, %7 : vector<24x64xf32>
    %9 = vector.extract_strided_slice %0 {offsets = [3, 0, 0], sizes = [1, 24, 64], strides = [1, 1, 1]} : vector<9x24x64xf32> to vector<1x24x64xf32>
    %10 = vector.shape_cast %9 : vector<1x24x64xf32> to vector<24x64xf32>
    %11 = arith.maximumf %8, %10 : vector<24x64xf32>
    %12 = vector.extract_strided_slice %0 {offsets = [4, 0, 0], sizes = [1, 24, 64], strides = [1, 1, 1]} : vector<9x24x64xf32> to vector<1x24x64xf32>
    %13 = vector.shape_cast %12 : vector<1x24x64xf32> to vector<24x64xf32>
    %14 = arith.maximumf %11, %13 : vector<24x64xf32>
    %15 = vector.extract_strided_slice %0 {offsets = [5, 0, 0], sizes = [1, 24, 64], strides = [1, 1, 1]} : vector<9x24x64xf32> to vector<1x24x64xf32>
    %16 = vector.shape_cast %15 : vector<1x24x64xf32> to vector<24x64xf32>
    %17 = arith.maximumf %14, %16 : vector<24x64xf32>
    %18 = vector.extract_strided_slice %0 {offsets = [6, 0, 0], sizes = [1, 24, 64], strides = [1, 1, 1]} : vector<9x24x64xf32> to vector<1x24x64xf32>
    %19 = vector.shape_cast %18 : vector<1x24x64xf32> to vector<24x64xf32>
    %20 = arith.maximumf %17, %19 : vector<24x64xf32>
    %21 = vector.extract_strided_slice %0 {offsets = [7, 0, 0], sizes = [1, 24, 64], strides = [1, 1, 1]} : vector<9x24x64xf32> to vector<1x24x64xf32>
    %22 = vector.shape_cast %21 : vector<1x24x64xf32> to vector<24x64xf32>
    %23 = arith.maximumf %20, %22 : vector<24x64xf32>
    %24 = vector.extract_strided_slice %0 {offsets = [8, 0, 0], sizes = [1, 24, 64], strides = [1, 1, 1]} : vector<9x24x64xf32> to vector<1x24x64xf32>
    %25 = vector.shape_cast %24 : vector<1x24x64xf32> to vector<24x64xf32>
    %26 = arith.maximumf %23, %25 : vector<24x64xf32>
    %c0_2 = arith.constant 0 : index
    %c0_3 = arith.constant 0 : index
    %27 = vector.load %arg2[%c0_2, %c0_3] : memref<24x64xf32, #tpu.memory_space<vmem>>, vector<24x64xf32>
    tpu.vector_store %arg2[%c0_2, %c0_3], %26 {strides = array<i32>} : memref<24x64xf32, #tpu.memory_space<vmem>>, vector<24x64xf32>,
    return
  }
  func.func @transform_0(%arg0: i32) -> (i32, i32, i32) {
    %c0_i32 = arith.constant 0 : i32
    %c0_i32_0 = arith.constant 0 : i32
    %c0_i32_1 = arith.constant 0 : i32
    return %c0_i32, %arg0, %c0_i32_0 : i32, i32, i32
  }
  func.func @transform_1(%arg0: i32) -> (i32, i32) {
    %c0_i32 = arith.constant 0 : i32
    %c0_i32_0 = arith.constant 0 : i32
    return %arg0, %c0_i32 : i32, i32
  }
}

module attributes {stable_mosaic.version = 11 : i64} {
  func.func @_head_kernel(%arg0: i32, %arg1: memref<8x576xf32, #tpu.memory_space<vmem>>, %arg2: memref<576x256xf32, #tpu.memory_space<vmem>>, %arg3: memref<1x256xf32, #tpu.memory_space<vmem>>, %arg4: memref<1xf32, #tpu.memory_space<smem>>, %arg5: memref<256x128xf32, #tpu.memory_space<vmem>>, %arg6: memref<1x128xf32, #tpu.memory_space<vmem>>, %arg7: memref<1xf32, #tpu.memory_space<smem>>, %arg8: memref<128x15xf32, #tpu.memory_space<vmem>>, %arg9: memref<1x15xf32, #tpu.memory_space<vmem>>, %arg10: memref<8x15xf32, #tpu.memory_space<vmem>>) attributes {dimension_semantics = [#tpu.dimension_semantics<parallel>], iteration_bounds = array<i64: 1>, scalar_prefetch = 0 : i64, scratch_operands = 0 : i64, tpu.core_type = #tpu.core_type<tc>, window_params = [{transform_indices = @transform_0, window_bounds = array<i64: 8, 576>}, {pipeline_mode = #tpu.pipeline_mode<synchronous>, transform_indices = @transform_1, window_bounds = array<i64: 576, 256>}, {pipeline_mode = #tpu.pipeline_mode<synchronous>, transform_indices = @transform_2, window_bounds = array<i64: 1, 256>}, {transform_indices = @transform_3, window_bounds = array<i64: 1>}, {pipeline_mode = #tpu.pipeline_mode<synchronous>, transform_indices = @transform_4, window_bounds = array<i64: 256, 128>}, {pipeline_mode = #tpu.pipeline_mode<synchronous>, transform_indices = @transform_5, window_bounds = array<i64: 1, 128>}, {transform_indices = @transform_6, window_bounds = array<i64: 1>}, {pipeline_mode = #tpu.pipeline_mode<synchronous>, transform_indices = @transform_7, window_bounds = array<i64: 128, 15>}, {pipeline_mode = #tpu.pipeline_mode<synchronous>, transform_indices = @transform_8, window_bounds = array<i64: 1, 15>}, {transform_indices = @transform_9, window_bounds = array<i64: 8, 15>}]} {
    %c0 = arith.constant 0 : index
    %c0_0 = arith.constant 0 : index
    %0 = vector.load %arg1[%c0, %c0_0] : memref<8x576xf32, #tpu.memory_space<vmem>>, vector<8x576xf32>
    %c0_1 = arith.constant 0 : index
    %c0_2 = arith.constant 0 : index
    %1 = vector.load %arg2[%c0_1, %c0_2] : memref<576x256xf32, #tpu.memory_space<vmem>>, vector<576x256xf32>
    %cst = arith.constant dense<0.000000e+00> : vector<8x256xf32>
    %2 = tpu.matmul %0, %1, %cst {dimension_numbers = #tpu.dot_dimension_numbers<[1], [0], [0], [1], [0, 0, 1, 1], [], []>} : vector<8x576xf32>, vector<576x256xf32>, vector<8x256xf32> -> vector<8x256xf32>
    %c0_3 = arith.constant 0 : index
    %c0_4 = arith.constant 0 : index
    %3 = vector.load %arg3[%c0_3, %c0_4] : memref<1x256xf32, #tpu.memory_space<vmem>>, vector<1x256xf32>
    %4 = vector.broadcast %3 : vector<1x256xf32> to vector<8x256xf32>
    %5 = arith.addf %2, %4 : vector<8x256xf32>
    %cst_5 = arith.constant 0.000000e+00 : f32
    %6 = vector.broadcast %cst_5 : f32 to vector<8x256xf32>
    %7 = arith.cmpf ogt, %5, %6 : vector<8x256xf32>
    %c0_6 = arith.constant 0 : index
    %8 = memref.load %arg4[%c0_6] : memref<1xf32, #tpu.memory_space<smem>>
    %9 = vector.broadcast %8 : f32 to vector<8x256xf32>
    %10 = arith.mulf %5, %9 : vector<8x256xf32>
    %11 = arith.select %7, %5, %10 : vector<8x256xi1>, vector<8x256xf32>
    %c0_7 = arith.constant 0 : index
    %c0_8 = arith.constant 0 : index
    %12 = vector.load %arg5[%c0_7, %c0_8] : memref<256x128xf32, #tpu.memory_space<vmem>>, vector<256x128xf32>
    %cst_9 = arith.constant dense<0.000000e+00> : vector<8x128xf32>
    %13 = tpu.matmul %11, %12, %cst_9 {dimension_numbers = #tpu.dot_dimension_numbers<[1], [0], [0], [1], [0, 0, 1, 1], [], []>} : vector<8x256xf32>, vector<256x128xf32>, vector<8x128xf32> -> vector<8x128xf32>
    %c0_10 = arith.constant 0 : index
    %c0_11 = arith.constant 0 : index
    %14 = vector.load %arg6[%c0_10, %c0_11] : memref<1x128xf32, #tpu.memory_space<vmem>>, vector<1x128xf32>
    %15 = vector.broadcast %14 : vector<1x128xf32> to vector<8x128xf32>
    %16 = arith.addf %13, %15 : vector<8x128xf32>
    %cst_12 = arith.constant 0.000000e+00 : f32
    %17 = vector.broadcast %cst_12 : f32 to vector<8x128xf32>
    %18 = arith.cmpf ogt, %16, %17 : vector<8x128xf32>
    %c0_13 = arith.constant 0 : index
    %19 = memref.load %arg7[%c0_13] : memref<1xf32, #tpu.memory_space<smem>>
    %20 = vector.broadcast %19 : f32 to vector<8x128xf32>
    %21 = arith.mulf %16, %20 : vector<8x128xf32>
    %22 = arith.select %18, %16, %21 : vector<8x128xi1>, vector<8x128xf32>
    %c0_14 = arith.constant 0 : index
    %c0_15 = arith.constant 0 : index
    %23 = vector.load %arg8[%c0_14, %c0_15] : memref<128x15xf32, #tpu.memory_space<vmem>>, vector<128x15xf32>
    %cst_16 = arith.constant dense<0.000000e+00> : vector<8x15xf32>
    %24 = tpu.matmul %22, %23, %cst_16 {dimension_numbers = #tpu.dot_dimension_numbers<[1], [0], [0], [1], [0, 0, 1, 1], [], []>} : vector<8x128xf32>, vector<128x15xf32>, vector<8x15xf32> -> vector<8x15xf32>
    %c0_17 = arith.constant 0 : index
    %c0_18 = arith.constant 0 : index
    %25 = vector.load %arg9[%c0_17, %c0_18] : memref<1x15xf32, #tpu.memory_space<vmem>>, vector<1x15xf32>
    %26 = vector.broadcast %25 : vector<1x15xf32> to vector<8x15xf32>
    %27 = arith.addf %24, %26 : vector<8x15xf32>
    %c0_19 = arith.constant 0 : index
    %c0_20 = arith.constant 0 : index
    %28 = vector.load %arg10[%c0_19, %c0_20] : memref<8x15xf32, #tpu.memory_space<vmem>>, vector<8x15xf32>
    tpu.vector_store %arg10[%c0_19, %c0_20], %27 {strides = array<i32>} : memref<8x15xf32, #tpu.memory_space<vmem>>, vector<8x15xf32>,
    return
  }
  func.func @transform_0(%arg0: i32) -> (i32, i32) {
    %c0_i32 = arith.constant 0 : i32
    %c0_i32_0 = arith.constant 0 : i32
    return %arg0, %c0_i32 : i32, i32
  }
  func.func @transform_1(%arg0: i32) -> (i32, i32) {
    %c0_i32 = arith.constant 0 : i32
    %c0_i32_0 = arith.constant 0 : i32
    %c0_i32_1 = arith.constant 0 : i32
    return %c0_i32, %c0_i32_0 : i32, i32
  }
  func.func @transform_2(%arg0: i32) -> (i32, i32) {
    %c0_i32 = arith.constant 0 : i32
    %c0_i32_0 = arith.constant 0 : i32
    %c0_i32_1 = arith.constant 0 : i32
    return %c0_i32, %c0_i32_0 : i32, i32
  }
  func.func @transform_3(%arg0: i32) -> i32 {
    %c0_i32 = arith.constant 0 : i32
    %c0_i32_0 = arith.constant 0 : i32
    return %c0_i32 : i32
  }
  func.func @transform_4(%arg0: i32) -> (i32, i32) {
    %c0_i32 = arith.constant 0 : i32
    %c0_i32_0 = arith.constant 0 : i32
    %c0_i32_1 = arith.constant 0 : i32
    return %c0_i32, %c0_i32_0 : i32, i32
  }
  func.func @transform_5(%arg0: i32) -> (i32, i32) {
    %c0_i32 = arith.constant 0 : i32
    %c0_i32_0 = arith.constant 0 : i32
    %c0_i32_1 = arith.constant 0 : i32
    return %c0_i32, %c0_i32_0 : i32, i32
  }
  func.func @transform_6(%arg0: i32) -> i32 {
    %c0_i32 = arith.constant 0 : i32
    %c0_i32_0 = arith.constant 0 : i32
    return %c0_i32 : i32
  }
  func.func @transform_7(%arg0: i32) -> (i32, i32) {
    %c0_i32 = arith.constant 0 : i32
    %c0_i32_0 = arith.constant 0 : i32
    %c0_i32_1 = arith.constant 0 : i32
    return %c0_i32, %c0_i32_0 : i32, i32
  }
  func.func @transform_8(%arg0: i32) -> (i32, i32) {
    %c0_i32 = arith.constant 0 : i32
    %c0_i32_0 = arith.constant 0 : i32
    %c0_i32_1 = arith.constant 0 : i32
    return %c0_i32, %c0_i32_0 : i32, i32
  }
  func.func @transform_9(%arg0: i32) -> (i32, i32) {
    %c0_i32 = arith.constant 0 : i32
    %c0_i32_0 = arith.constant 0 : i32
    return %arg0, %c0_i32 : i32, i32
  }
}

</mosaic_0001>

<llo_original>
// kernel: rnet_forward.5
$region0: #{rnet_forward.5}
  #allocation0 [shape = 'u32[]', space=smem, size = 0x4, offset = 0x4, fixed_abs, tag = 'smem constant byte address 0x4 - core index']
  #allocation1 [shape = 'u32[144,128]{1,0:T(1,128)}', space=vmem, size = 0x12000, scoped, tag = 'internal scratch']
  #allocation2 [shape = 'f32[1]{0:T(128)S(6)}', space=smem, size = 0x200, scoped, tag = 'scoped memory for rnet_forward.5']
  %s0 = inlined_call_operand.vmem [shape: f32[1024,72], index: 0, kind: input, shape index: {}]
  %s1 = inlined_call_operand.vmem [shape: f32[72,32], index: 1, kind: input, shape index: {}]
  %s2 = inlined_call_operand.vmem [shape: f32[1,32], index: 2, kind: input, shape index: {}]
  %s3 = inlined_call_operand.<no memory space> [shape: f32[1], index: 3, kind: input, shape index: {}]
  %s4 = inlined_call_operand.vmem [shape: f32[1024,32], index: 4, kind: output, shape index: {}]
  %s5 = sld [smem:[#allocation0]]
  $region49: #{rnet_forward.5} parent=0
    _
  %s7 = ssub.s32 1, %s5
  %s8 = scalar_select 0, %s7, %s5
  %9 = sst [smem:[#allocation2]] %s3
  loop: start=0, step=1, limit=4
  $region2: #{rnet_forward.5} parent=0 // loop_pre_header
    _
  $region3: #{rnet_forward.5} parent=0 // loop_header
    %s11 = sphi 0, %s15
    %p12 = scmp.ge.s32.totalorder %s11, 4
    %s21 = sphi 0, %s23
    %s24 = sphi 0, %s21
    %s25 = sphi 0, %s24
    %s41 = sphi 0, %s25
    %s45 = sphi 0, %s45
    %s47 = sphi 0, %s45
    %s48 = sphi 0, %s47
    %s62 = sphi 0, %s48
    %s66 = sphi 0, %s66
    %s68 = sphi 0, %s66
    %s69 = sphi 0, %s68
    %s83 = sphi 0, %s69
    %s87 = sphi 0, %s87
    %s89 = sphi 0, %s87
    %s90 = sphi 0, %s89
    %s104 = sphi 0, %s90
    %s110 = sphi 0, %s112
    %s113 = sphi 0, %s110
    %s114 = sphi 0, %s113
    %s130 = sphi 0, %s114
  $region4: #{rnet_forward.5} parent=0 // loop_header_branch
    %14 = sbr.rel (%p12) target = $region8
  $region5: #{rnet_forward.5} parent=0 // loop_body
    %s16 = ssub.s32 %s11, 1
    %s17 = ssub.s32 %s11, 2
    %s18 = sadd.s32 %s11, 1
    %s19 = ssub.s32 %s11, %s18
    %p20 = scmp.eq.s32.totalorder %s19, 0
    %s22 = sadd.s32 %s21, 1
    %s23 = scalar_select %p20, %s21, %s22
    %p26 = pneg %p20
    %p27 = scmp.eq.s32.totalorder %s11, 1
    %p28 = por %p26, %p27
    %p29 = scmp.ne.s32.totalorder %s21, %s24
    %p30 = scmp.eq.s32.totalorder %s11, 0
    %p31 = por %p29, %p30
    %p32 = scmp.ne.s32.totalorder %s21, %s24
    %p33 = scmp.eq.s32.totalorder %s16, 1
    %p34 = por %p32, %p33
    %p35 = scmp.ne.s32.totalorder %s24, %s25
    %p36 = scmp.eq.s32.totalorder %s16, 0
    %p37 = por %p35, %p36
    %p38 = scmp.ne.s32.totalorder %s24, %s25
    %p39 = scmp.eq.s32.totalorder %s17, 1
    %p40 = por %p38, %p39
    %p42 = scmp.ne.s32.totalorder %s25, %s41
    %p43 = scmp.eq.s32.totalorder %s17, 0
    %p44 = por %p42, %p43
    %s46 = sadd.s32 %s45, 1
    %p49 = scmp.eq.s32.totalorder %s11, 1
    %p50 = scmp.ne.s32.totalorder %s45, %s47
    %p51 = scmp.eq.s32.totalorder %s11, 0
    %p52 = por %p50, %p51
    %p53 = scmp.ne.s32.totalorder %s45, %s47
    %p54 = scmp.eq.s32.totalorder %s16, 1
    %p55 = por %p53, %p54
    %p56 = scmp.ne.s32.totalorder %s47, %s48
    %p57 = scmp.eq.s32.totalorder %s16, 0
    %p58 = por %p56, %p57
    %p59 = scmp.ne.s32.totalorder %s47, %s48
    %p60 = scmp.eq.s32.totalorder %s17, 1
    %p61 = por %p59, %p60
    %p63 = scmp.ne.s32.totalorder %s48, %s62
    %p64 = scmp.eq.s32.totalorder %s17, 0
    %p65 = por %p63, %p64
    %s67 = sadd.s32 %s66, 1
    %p70 = scmp.eq.s32.totalorder %s11, 1
    %p71 = scmp.ne.s32.totalorder %s66, %s68
    %p72 = scmp.eq.s32.totalorder %s11, 0
    %p73 = por %p71, %p72
    %p74 = scmp.ne.s32.totalorder %s66, %s68
    %p75 = scmp.eq.s32.totalorder %s16, 1
    %p76 = por %p74, %p75
    %p77 = scmp.ne.s32.totalorder %s68, %s69
    %p78 = scmp.eq.s32.totalorder %s16, 0
    %p79 = por %p77, %p78
    %p80 = scmp.ne.s32.totalorder %s68, %s69
    %p81 = scmp.eq.s32.totalorder %s17, 1
    %p82 = por %p80, %p81
    %p84 = scmp.ne.s32.totalorder %s69, %s83
    %p85 = scmp.eq.s32.totalorder %s17, 0
    %p86 = por %p84, %p85
    %s88 = sadd.s32 %s87, 1
    %p91 = scmp.eq.s32.totalorder %s11, 1
    %p92 = scmp.ne.s32.totalorder %s87, %s89
    %p93 = scmp.eq.s32.totalorder %s11, 0
    %p94 = por %p92, %p93
    %p95 = scmp.ne.s32.totalorder %s87, %s89
    %p96 = scmp.eq.s32.totalorder %s16, 1
    %p97 = por %p95, %p96
    %p98 = scmp.ne.s32.totalorder %s89, %s90
    %p99 = scmp.eq.s32.totalorder %s16, 0
    %p100 = por %p98, %p99
    %p101 = scmp.ne.s32.totalorder %s89, %s90
    %p102 = scmp.eq.s32.totalorder %s17, 1
    %p103 = por %p101, %p102
    %p105 = scmp.ne.s32.totalorder %s90, %s104
    %p106 = scmp.eq.s32.totalorder %s17, 0
    %p107 = por %p105, %p106
    %s108 = ssub.s32 %s11, %s18
    %p109 = scmp.eq.s32.totalorder %s108, 0
    %s111 = sadd.s32 %s110, 1
    %s112 = scalar_select %p109, %s110, %s111
    %p115 = pneg %p109
    %p116 = scmp.eq.s32.totalorder %s11, 1
    %p117 = por %p115, %p116
    %p118 = scmp.ne.s32.totalorder %s110, %s113
    %p119 = scmp.eq.s32.totalorder %s11, 0
    %p120 = por %p118, %p119
    %p121 = scmp.ne.s32.totalorder %s110, %s113
    %p122 = scmp.eq.s32.totalorder %s16, 1
    %p123 = por %p121, %p122
    %p124 = scmp.ne.s32.totalorder %s113, %s114
    %p125 = scmp.eq.s32.totalorder %s16, 0
    %p126 = por %p124, %p125
    %p127 = scmp.ne.s32.totalorder %s113, %s114
    %p128 = scmp.eq.s32.totalorder %s17, 1
    %p129 = por %p127, %p128
    %p131 = scmp.ne.s32.totalorder %s114, %s130
    %p132 = scmp.eq.s32.totalorder %s17, 0
    %p133 = por %p131, %p132
    %p134 = scmp.le.s32.totalorder 1, %s11
    %p135 = scmp.lt.s32.totalorder %s11, 3
    %p136 = pnand %p134, %p135
    %p137 = pneg %p136
    // Predicated region
    $region9: #{rnet_forward.5} parent=5 // pred_check
      _
    $region10: #{rnet_forward.5} parent=5 // pred_check_branch
      %139 = sbr.rel (%p136) target = $region12
    $region11: #{rnet_forward.5} parent=5 // pred_region
      %s140 = ssub.s32 %s11, 1
      // Predicated region
      $region13: #{rnet_forward.5} parent=11 // pred_check
        %p141 = pneg %p58
      $region14: #{rnet_forward.5} parent=11 // pred_check_branch
        %143 = sbr.rel (%p141) target = $region16
      $region15: #{rnet_forward.5} parent=11 // pred_region
        _
      $region16: #{rnet_forward.5} parent=11 // pred_fallthru
        _
      // Predicated region
      $region17: #{rnet_forward.5} parent=11 // pred_check
        %p144 = pneg %p79
      $region18: #{rnet_forward.5} parent=11 // pred_check_branch
        %146 = sbr.rel (%p144) target = $region20
      $region19: #{rnet_forward.5} parent=11 // pred_region
        _
      $region20: #{rnet_forward.5} parent=11 // pred_fallthru
        _
      // Predicated region
      $region21: #{rnet_forward.5} parent=11 // pred_check
        %p147 = pneg %p100
      $region22: #{rnet_forward.5} parent=11 // pred_check_branch
        %149 = sbr.rel (%p147) target = $region24
      $region23: #{rnet_forward.5} parent=11 // pred_region
        _
      $region24: #{rnet_forward.5} parent=11 // pred_fallthru
        _
    $region12: #{rnet_forward.5} parent=5 // pred_fallthru
      _
    %p150 = scmp.lt.s32.totalorder %s11, 2
    // Predicated region
    $region25: #{rnet_forward.5} parent=5 // pred_check
      %p151 = pneg %p150
    $region26: #{rnet_forward.5} parent=5 // pred_check_branch
      %153 = sbr.rel (%p151) target = $region28
    $region27: #{rnet_forward.5} parent=5 // pred_region
      // Predicated region
      $region29: #{rnet_forward.5} parent=27 // pred_check
        %p154 = pneg %p31
      $region30: #{rnet_forward.5} parent=27 // pred_check_branch
        %156 = sbr.rel (%p154) target = $region32
      $region31: #{rnet_forward.5} parent=27 // pred_region
        %s157 = smul.u32 64, %s11
        %p158 = scmp.lt.s32.totalorder %s157, 127
        %s159 = scalar_select %p158, %s157, 127
        %s160 = smul.addr %s159, 8
        %s161 = scalar_lea.vmem %s0, %s160
        %s162 = smul.u32 64, %s11
      $region32: #{rnet_forward.5} parent=27 // pred_fallthru
        _
    $region28: #{rnet_forward.5} parent=5 // pred_fallthru
      _
    %p163 = scmp.le.s32.totalorder 1, %s11
    %p164 = scmp.lt.s32.totalorder %s11, 3
    %p165 = pnand %p163, %p164
    %p166 = pneg %p165
    // Predicated region
    $region33: #{rnet_forward.5} parent=5 // pred_check
      _
    $region34: #{rnet_forward.5} parent=5 // pred_check_branch
      %168 = sbr.rel (%p165) target = $region36
    $region35: #{rnet_forward.5} parent=5 // pred_region
      %s169 = ssub.s32 %s11, 1
      %s170 = smul.u32 64, %s16
      %p171 = scmp.lt.s32.totalorder %s170, 127
      %s172 = scalar_select %p171, %s170, 127
      %s173 = smul.addr %s172, 8
      %s174 = scalar_lea.vmem %s0, %s173
      %p175 = pneg %p37
      %p176 = pneg %p34
      %p177 = pneg %p58
      %p178 = pneg %p55
      %p179 = pneg %p79
      %p180 = pneg %p76
      %p181 = pneg %p100
      %p182 = pneg %p97
      %p183 = pneg %p126
      %p184 = pneg %p123
      %s185 = smul.u32 64, %s16
      %p186 = scmp.lt.s32.totalorder %s185, 127
      %s187 = scalar_select %p186, %s185, 127
      %s188 = smul.addr %s187, 8
      %s189 = scalar_lea.vmem %s4, %s188
      %s190 = smul.u32 64, %s16
      %p191 = scmp.lt.s32.totalorder %s190, 127
      %s192 = scalar_select %p191, %s190, 127
      %s193 = smul.addr %s192, 8
      %s194 = scalar_lea.vmem %s0, %s193
      %s195 = smul.u32 64, %s16
      %s196 = smul.u32 64, %s16
      %p197 = scmp.lt.s32.totalorder %s196, 127
      %s198 = scalar_select %p197, %s196, 127
      %s199 = smul.addr %s198, 8
      %s200 = scalar_lea.vmem %s4, %s199
      %s201 = smul.u32 64, %s16
      %v202 = vld [vmem:[%s194] sm:$0xff]
      %v203 = vld [vmem:[%s194 + $0x8] sm:$0xff]
      %v204 = vld [vmem:[%s194 + $0x10] sm:$0xff]
      %v205 = vld [vmem:[%s194 + $0x18] sm:$0xff]
      %v206 = vld [vmem:[%s194 + $0x20] sm:$0xff]
      %v207 = vld [vmem:[%s194 + $0x28] sm:$0xff]
      %v208 = vld [vmem:[%s194 + $0x30] sm:$0xff]
      %v209 = vld [vmem:[%s194 + $0x38] sm:$0xff]
      %v210 = vld [vmem:[%s194 + $0x40] sm:$0xff]
      %v211 = vld [vmem:[%s194 + $0x48] sm:$0xff]
      %v212 = vld [vmem:[%s194 + $0x50] sm:$0xff]
      %v213 = vld [vmem:[%s194 + $0x58] sm:$0xff]
      %v214 = vld [vmem:[%s194 + $0x60] sm:$0xff]
      %v215 = vld [vmem:[%s194 + $0x68] sm:$0xff]
      %v216 = vld [vmem:[%s194 + $0x70] sm:$0xff]
      %v217 = vld [vmem:[%s194 + $0x78] sm:$0xff]
      %v218 = vld [vmem:[%s194 + $0x80] sm:$0xff]
      %v219 = vld [vmem:[%s194 + $0x88] sm:$0xff]
      %v220 = vld [vmem:[%s194 + $0x90] sm:$0xff]
      %v221 = vld [vmem:[%s194 + $0x98] sm:$0xff]
      %v222 = vld [vmem:[%s194 + $0xa0] sm:$0xff]
      %v223 = vld [vmem:[%s194 + $0xa8] sm:$0xff]
      %v224 = vld [vmem:[%s194 + $0xb0] sm:$0xff]
      %v225 = vld [vmem:[%s194 + $0xb8] sm:$0xff]
      %v226 = vld [vmem:[%s194 + $0xc0] sm:$0xff]
      %v227 = vld [vmem:[%s194 + $0xc8] sm:$0xff]
      %v228 = vld [vmem:[%s194 + $0xd0] sm:$0xff]
      %v229 = vld [vmem:[%s194 + $0xd8] sm:$0xff]
      %v230 = vld [vmem:[%s194 + $0xe0] sm:$0xff]
      %v231 = vld [vmem:[%s194 + $0xe8] sm:$0xff]
      %v232 = vld [vmem:[%s194 + $0xf0] sm:$0xff]
      %v233 = vld [vmem:[%s194 + $0xf8] sm:$0xff]
      %v234 = vld [vmem:[%s194 + $0x100] sm:$0xff]
      %v235 = vld [vmem:[%s194 + $0x108] sm:$0xff]
      %v236 = vld [vmem:[%s194 + $0x110] sm:$0xff]
      %v237 = vld [vmem:[%s194 + $0x118] sm:$0xff]
      %v238 = vld [vmem:[%s194 + $0x120] sm:$0xff]
      %v239 = vld [vmem:[%s194 + $0x128] sm:$0xff]
      %v240 = vld [vmem:[%s194 + $0x130] sm:$0xff]
      %v241 = vld [vmem:[%s194 + $0x138] sm:$0xff]
      %v242 = vld [vmem:[%s194 + $0x140] sm:$0xff]
      %v243 = vld [vmem:[%s194 + $0x148] sm:$0xff]
      %v244 = vld [vmem:[%s194 + $0x150] sm:$0xff]
      %v245 = vld [vmem:[%s194 + $0x158] sm:$0xff]
      %v246 = vld [vmem:[%s194 + $0x160] sm:$0xff]
      %v247 = vld [vmem:[%s194 + $0x168] sm:$0xff]
      %v248 = vld [vmem:[%s194 + $0x170] sm:$0xff]
      %v249 = vld [vmem:[%s194 + $0x178] sm:$0xff]
      %v250 = vld [vmem:[%s194 + $0x180] sm:$0xff]
      %v251 = vld [vmem:[%s194 + $0x188] sm:$0xff]
      %v252 = vld [vmem:[%s194 + $0x190] sm:$0xff]
      %v253 = vld [vmem:[%s194 + $0x198] sm:$0xff]
      %v254 = vld [vmem:[%s194 + $0x1a0] sm:$0xff]
      %v255 = vld [vmem:[%s194 + $0x1a8] sm:$0xff]
      %v256 = vld [vmem:[%s194 + $0x1b0] sm:$0xff]
      %v257 = vld [vmem:[%s194 + $0x1b8] sm:$0xff]
      %v258 = vld [vmem:[%s194 + $0x1c0] sm:$0xff]
      %v259 = vld [vmem:[%s194 + $0x1c8] sm:$0xff]
      %v260 = vld [vmem:[%s194 + $0x1d0] sm:$0xff]
      %v261 = vld [vmem:[%s194 + $0x1d8] sm:$0xff]
      %v262 = vld [vmem:[%s194 + $0x1e0] sm:$0xff]
      %v263 = vld [vmem:[%s194 + $0x1e8] sm:$0xff]
      %v264 = vld [vmem:[%s194 + $0x1f0] sm:$0xff]
      %v265 = vld [vmem:[%s194 + $0x1f8] sm:$0xff]
      %v266 = vld [vmem:[%s1] sm:$0xff]
      %v267 = vld [vmem:[%s1 + $0x8] sm:$0xff]
      %v268 = vld [vmem:[%s1 + $0x10] sm:$0xff]
      %v269 = vld [vmem:[%s1 + $0x18] sm:$0xff]
      %v270 = vld [vmem:[%s1 + $0x20] sm:$0xff]
      %v271 = vld [vmem:[%s1 + $0x28] sm:$0xff]
      %v272 = vld [vmem:[%s1 + $0x30] sm:$0xff]
      %v273 = vld [vmem:[%s1 + $0x38] sm:$0xff]
      %v274 = vld [vmem:[%s1 + $0x40] sm:$0xff]
      %v275 = vld [vmem:[%s2] sm:$0x1]
      %v277 = vlaneseq
      %v278 = vshrl.u32 %v277, 7
      %v279 = vsub.s32 0, %v278
      %v280 = vrot.slane %v275, %v279
      %vm282 = vcmask 588800
      %v284 = vsel %vm282, %v202, 0
      %v287 = vsel %vm282, %v203, 0
      %v290 = vsel %vm282, %v204, 0
      %v293 = vsel %vm282, %v205, 0
      %v296 = vsel %vm282, %v206, 0
      %v299 = vsel %vm282, %v207, 0
      %v302 = vsel %vm282, %v208, 0
      %v305 = vsel %vm282, %v209, 0
      %v308 = vsel %vm282, %v210, 0
      %v311 = vsel %vm282, %v211, 0
      %v314 = vsel %vm282, %v212, 0
      %v317 = vsel %vm282, %v213, 0
      %v320 = vsel %vm282, %v214, 0
      %v323 = vsel %vm282, %v215, 0
      %v326 = vsel %vm282, %v216, 0
      %v329 = vsel %vm282, %v217, 0
      %v332 = vsel %vm282, %v218, 0
      %v335 = vsel %vm282, %v219, 0
      %v338 = vsel %vm282, %v220, 0
      %v341 = vsel %vm282, %v221, 0
      %v344 = vsel %vm282, %v222, 0
      %v347 = vsel %vm282, %v223, 0
      %v350 = vsel %vm282, %v224, 0
      %v353 = vsel %vm282, %v225, 0
      %v356 = vsel %vm282, %v226, 0
      %v359 = vsel %vm282, %v227, 0
      %v362 = vsel %vm282, %v228, 0
      %v365 = vsel %vm282, %v229, 0
      %v368 = vsel %vm282, %v230, 0
      %v371 = vsel %vm282, %v231, 0
      %v374 = vsel %vm282, %v232, 0
      %v377 = vsel %vm282, %v233, 0
      %v380 = vsel %vm282, %v234, 0
      %v383 = vsel %vm282, %v235, 0
      %v386 = vsel %vm282, %v236, 0
      %v389 = vsel %vm282, %v237, 0
      %v392 = vsel %vm282, %v238, 0
      %v395 = vsel %vm282, %v239, 0
      %v398 = vsel %vm282, %v240, 0
      %v401 = vsel %vm282, %v241, 0
      %v404 = vsel %vm282, %v242, 0
      %v407 = vsel %vm282, %v243, 0
      %v410 = vsel %vm282, %v244, 0
      %v413 = vsel %vm282, %v245, 0
      %v416 = vsel %vm282, %v246, 0
      %v419 = vsel %vm282, %v247, 0
      %v422 = vsel %vm282, %v248, 0
      %v425 = vsel %vm282, %v249, 0
      %v428 = vsel %vm282, %v250, 0
      %v431 = vsel %vm282, %v251, 0
      %v434 = vsel %vm282, %v252, 0
      %v437 = vsel %vm282, %v253, 0
      %v440 = vsel %vm282, %v254, 0
      %v443 = vsel %vm282, %v255, 0
      %v446 = vsel %vm282, %v256, 0
      %v449 = vsel %vm282, %v257, 0
      %v452 = vsel %vm282, %v258, 0
      %v455 = vsel %vm282, %v259, 0
      %v458 = vsel %vm282, %v260, 0
      %v461 = vsel %vm282, %v261, 0
      %v464 = vsel %vm282, %v262, 0
      %v467 = vsel %vm282, %v263, 0
      %v470 = vsel %vm282, %v264, 0
      %v473 = vsel %vm282, %v265, 0
      %475 = vmatprep.subr.mxu0 0.0
      %476 = vmatpush1.msra.mxu0 0.0
      %477 = vmatprep.subr.mxu0 0.0
      %478 = vmatpush1.msra.mxu0 0.0
      %479 = vmatprep.subr.mxu0 0.0
      %480 = vmatpush1.msra.mxu0 0.0
      %481 = vmatprep.subr.mxu0 0.0
      %482 = vmatpush1.msra.mxu0 0.0
      %483 = vmatprep.subr.mxu0 0.0
      %484 = vmatpush1.msra.mxu0 0.0
      %485 = vmatprep.subr.mxu0 0.0
      %486 = vmatpush1.msra.mxu0 0.0
      %487 = vmatprep.subr.mxu0 0.0
      %488 = vmatpush1.msra.mxu0 0.0
      %489 = vmatprep.subr.mxu0 0.0
      %490 = vmatpush1.msra.mxu0 %v274
      %491 = vmatprep.subr.mxu0 0.0
      %492 = vmatpush1.msra.mxu0 %v273
      %493 = vmatprep.subr.mxu0 0.0
      %494 = vmatpush1.msra.mxu0 %v272
      %495 = vmatprep.subr.mxu0 0.0
      %496 = vmatpush1.msra.mxu0 %v271
      %497 = vmatprep.subr.mxu0 0.0
      %498 = vmatpush1.msra.mxu0 %v270
      %499 = vmatprep.subr.mxu0 0.0
      %500 = vmatpush1.msra.mxu0 %v269
      %501 = vmatprep.subr.mxu0 0.0
      %502 = vmatpush1.msra.mxu0 %v268
      %503 = vmatprep.subr.mxu0 0.0
      %504 = vmatpush1.msra.mxu0 %v267
      %505 = vmatprep.subr.mxu0 0.0
      %506 = vmatpush1.msra.mxu0 %v266
      %507 = vmatprep.subr.mxu0 0.0
      %508 = vmatpush2.msra.mxu0 0.0
      %509 = vmatprep.subr.mxu0 0.0
      %510 = vmatpush2.msra.mxu0 0.0
      %511 = vmatprep.subr.mxu0 0.0
      %512 = vmatpush2.msra.mxu0 0.0
      %513 = vmatprep.subr.mxu0 0.0
      %514 = vmatpush2.msra.mxu0 0.0
      %515 = vmatprep.subr.mxu0 0.0
      %516 = vmatpush2.msra.mxu0 0.0
      %517 = vmatprep.subr.mxu0 0.0
      %518 = vmatpush2.msra.mxu0 0.0
      %519 = vmatprep.subr.mxu0 0.0
      %520 = vmatpush2.msra.mxu0 0.0
      %521 = vmatprep.subr.mxu0 0.0
      %522 = vmatpush2.msra.mxu0 0.0
      %523 = vmatprep.subr.mxu0 0.0
      %524 = vmatpush2.msra.mxu0 0.0
      %525 = vmatprep.subr.mxu0 0.0
      %526 = vmatpush2.msra.mxu0 0.0
      %527 = vmatprep.subr.mxu0 0.0
      %528 = vmatpush2.msra.mxu0 0.0
      %529 = vmatprep.subr.mxu0 0.0
      %530 = vmatpush2.msra.mxu0 0.0
      %531 = vmatprep.subr.mxu0 0.0
      %532 = vmatpush2.msra.mxu0 0.0
      %533 = vmatprep.subr.mxu0 0.0
      %534 = vmatpush2.msra.mxu0 0.0
      %535 = vmatprep.subr.mxu0 0.0
      %536 = vmatpush2.msra.mxu0 0.0
      %537 = vmatprep.subr.mxu0 0.0
      %538 = vmatpush2.msra.mxu0 0.0
      %539 = vmatprep.mubr.f32.mxu0 0.0
      %540 = vmatmul.mubr.f32.gmra.mxu0 %v284
      %v541 = vpop.f32.mrf.mxu0
      %v542 = vadd.f32 %v280, %v541
      %v543 = vpop.f32.mrf.mxu0
      %544 = vmatprep.mubr.f32.mxu0 0.0
      %545 = vmatmul.mubr.f32.gmra.mxu0 %v287
      %v546 = vpop.f32.mrf.mxu0
      %v547 = vadd.f32 %v280, %v546
      %v548 = vpop.f32.mrf.mxu0
      %549 = vmatprep.mubr.f32.mxu0 0.0
      %550 = vmatmul.mubr.f32.gmra.mxu0 %v290
      %v551 = vpop.f32.mrf.mxu0
      %v552 = vadd.f32 %v280, %v551
      %v553 = vpop.f32.mrf.mxu0
      %554 = vmatprep.mubr.f32.mxu0 0.0
      %555 = vmatmul.mubr.f32.gmra.mxu0 %v293
      %v556 = vpop.f32.mrf.mxu0
      %v557 = vadd.f32 %v280, %v556
      %v558 = vpop.f32.mrf.mxu0
      %559 = vmatprep.mubr.f32.mxu0 0.0
      %560 = vmatmul.mubr.f32.gmra.mxu0 %v296
      %v561 = vpop.f32.mrf.mxu0
      %v562 = vadd.f32 %v280, %v561
      %v563 = vpop.f32.mrf.mxu0
      %564 = vmatprep.mubr.f32.mxu0 0.0
      %565 = vmatmul.mubr.f32.gmra.mxu0 %v299
      %v566 = vpop.f32.mrf.mxu0
      %v567 = vadd.f32 %v280, %v566
      %v568 = vpop.f32.mrf.mxu0
      %569 = vmatprep.mubr.f32.mxu0 0.0
      %570 = vmatmul.mubr.f32.gmra.mxu0 %v302
      %v571 = vpop.f32.mrf.mxu0
      %v572 = vadd.f32 %v280, %v571
      %v573 = vpop.f32.mrf.mxu0
      %574 = vmatprep.mubr.f32.mxu0 0.0
      %575 = vmatmul.mubr.f32.gmra.mxu0 %v305
      %v576 = vpop.f32.mrf.mxu0
      %v577 = vadd.f32 %v280, %v576
      %v578 = vpop.f32.mrf.mxu0
      %579 = vmatprep.mubr.f32.mxu0 0.0
      %580 = vmatmul.mubr.f32.gmra.mxu0 %v308
      %v581 = vpop.f32.mrf.mxu0
      %v582 = vadd.f32 %v280, %v581
      %v583 = vpop.f32.mrf.mxu0
      %584 = vmatprep.mubr.f32.mxu0 0.0
      %585 = vmatmul.mubr.f32.gmra.mxu0 %v311
      %v586 = vpop.f32.mrf.mxu0
      %v587 = vadd.f32 %v280, %v586
      %v588 = vpop.f32.mrf.mxu0
      %589 = vmatprep.mubr.f32.mxu0 0.0
      %590 = vmatmul.mubr.f32.gmra.mxu0 %v314
      %v591 = vpop.f32.mrf.mxu0
      %v592 = vadd.f32 %v280, %v591
      %v593 = vpop.f32.mrf.mxu0
      %594 = vmatprep.mubr.f32.mxu0 0.0
      %595 = vmatmul.mubr.f32.gmra.mxu0 %v317
      %v596 = vpop.f32.mrf.mxu0
      %v597 = vadd.f32 %v280, %v596
      %v598 = vpop.f32.mrf.mxu0
      %599 = vmatprep.mubr.f32.mxu0 0.0
      %600 = vmatmul.mubr.f32.gmra.mxu0 %v320
      %v601 = vpop.f32.mrf.mxu0
      %v602 = vadd.f32 %v280, %v601
      %v603 = vpop.f32.mrf.mxu0
      %604 = vmatprep.mubr.f32.mxu0 0.0
      %605 = vmatmul.mubr.f32.gmra.mxu0 %v323
      %v606 = vpop.f32.mrf.mxu0
      %v607 = vadd.f32 %v280, %v606
      %v608 = vpop.f32.mrf.mxu0
      %609 = vmatprep.mubr.f32.mxu0 0.0
      %610 = vmatmul.mubr.f32.gmra.mxu0 %v326
      %v611 = vpop.f32.mrf.mxu0
      %v612 = vadd.f32 %v280, %v611
      %v613 = vpop.f32.mrf.mxu0
      %614 = vmatprep.mubr.f32.mxu0 0.0
      %615 = vmatmul.mubr.f32.gmra.mxu0 %v329
      %v616 = vpop.f32.mrf.mxu0
      %v617 = vadd.f32 %v280, %v616
      %v618 = vpop.f32.mrf.mxu0
      %619 = vmatprep.mubr.f32.mxu0 0.0
      %620 = vmatmul.mubr.f32.gmra.mxu0 %v332
      %v621 = vpop.f32.mrf.mxu0
      %v622 = vadd.f32 %v280, %v621
      %v623 = vpop.f32.mrf.mxu0
      %624 = vmatprep.mubr.f32.mxu0 0.0
      %625 = vmatmul.mubr.f32.gmra.mxu0 %v335
      %v626 = vpop.f32.mrf.mxu0
      %v627 = vadd.f32 %v280, %v626
      %v628 = vpop.f32.mrf.mxu0
      %629 = vmatprep.mubr.f32.mxu0 0.0
      %630 = vmatmul.mubr.f32.gmra.mxu0 %v338
      %v631 = vpop.f32.mrf.mxu0
      %v632 = vadd.f32 %v280, %v631
      %v633 = vpop.f32.mrf.mxu0
      %634 = vmatprep.mubr.f32.mxu0 0.0
      %635 = vmatmul.mubr.f32.gmra.mxu0 %v341
      %v636 = vpop.f32.mrf.mxu0
      %v637 = vadd.f32 %v280, %v636
      %v638 = vpop.f32.mrf.mxu0
      %639 = vmatprep.mubr.f32.mxu0 0.0
      %640 = vmatmul.mubr.f32.gmra.mxu0 %v344
      %v641 = vpop.f32.mrf.mxu0
      %v642 = vadd.f32 %v280, %v641
      %v643 = vpop.f32.mrf.mxu0
      %644 = vmatprep.mubr.f32.mxu0 0.0
      %645 = vmatmul.mubr.f32.gmra.mxu0 %v347
      %v646 = vpop.f32.mrf.mxu0
      %v647 = vadd.f32 %v280, %v646
      %v648 = vpop.f32.mrf.mxu0
      %649 = vmatprep.mubr.f32.mxu0 0.0
      %650 = vmatmul.mubr.f32.gmra.mxu0 %v350
      %v651 = vpop.f32.mrf.mxu0
      %v652 = vadd.f32 %v280, %v651
      %v653 = vpop.f32.mrf.mxu0
      %654 = vmatprep.mubr.f32.mxu0 0.0
      %655 = vmatmul.mubr.f32.gmra.mxu0 %v353
      %v656 = vpop.f32.mrf.mxu0
      %v657 = vadd.f32 %v280, %v656
      %v658 = vpop.f32.mrf.mxu0
      %659 = vmatprep.mubr.f32.mxu0 0.0
      %660 = vmatmul.mubr.f32.gmra.mxu0 %v356
      %v661 = vpop.f32.mrf.mxu0
      %v662 = vadd.f32 %v280, %v661
      %v663 = vpop.f32.mrf.mxu0
      %664 = vmatprep.mubr.f32.mxu0 0.0
      %665 = vmatmul.mubr.f32.gmra.mxu0 %v359
      %v666 = vpop.f32.mrf.mxu0
      %v667 = vadd.f32 %v280, %v666
      %v668 = vpop.f32.mrf.mxu0
      %669 = vmatprep.mubr.f32.mxu0 0.0
      %670 = vmatmul.mubr.f32.gmra.mxu0 %v362
      %v671 = vpop.f32.mrf.mxu0
      %v672 = vadd.f32 %v280, %v671
      %v673 = vpop.f32.mrf.mxu0
      %674 = vmatprep.mubr.f32.mxu0 0.0
      %675 = vmatmul.mubr.f32.gmra.mxu0 %v365
      %v676 = vpop.f32.mrf.mxu0
      %v677 = vadd.f32 %v280, %v676
      %v678 = vpop.f32.mrf.mxu0
      %679 = vmatprep.mubr.f32.mxu0 0.0
      %680 = vmatmul.mubr.f32.gmra.mxu0 %v368
      %v681 = vpop.f32.mrf.mxu0
      %v682 = vadd.f32 %v280, %v681
      %v683 = vpop.f32.mrf.mxu0
      %684 = vmatprep.mubr.f32.mxu0 0.0
      %685 = vmatmul.mubr.f32.gmra.mxu0 %v371
      %v686 = vpop.f32.mrf.mxu0
      %v687 = vadd.f32 %v280, %v686
      %v688 = vpop.f32.mrf.mxu0
      %689 = vmatprep.mubr.f32.mxu0 0.0
      %690 = vmatmul.mubr.f32.gmra.mxu0 %v374
      %v691 = vpop.f32.mrf.mxu0
      %v692 = vadd.f32 %v280, %v691
      %v693 = vpop.f32.mrf.mxu0
      %694 = vmatprep.mubr.f32.mxu0 0.0
      %695 = vmatmul.mubr.f32.gmra.mxu0 %v377
      %v696 = vpop.f32.mrf.mxu0
      %v697 = vadd.f32 %v280, %v696
      %v698 = vpop.f32.mrf.mxu0
      %699 = vmatprep.mubr.f32.mxu0 0.0
      %700 = vmatmul.mubr.f32.gmra.mxu0 %v380
      %v701 = vpop.f32.mrf.mxu0
      %v702 = vadd.f32 %v280, %v701
      %v703 = vpop.f32.mrf.mxu0
      %704 = vmatprep.mubr.f32.mxu0 0.0
      %705 = vmatmul.mubr.f32.gmra.mxu0 %v383
      %v706 = vpop.f32.mrf.mxu0
      %v707 = vadd.f32 %v280, %v706
      %v708 = vpop.f32.mrf.mxu0
      %709 = vmatprep.mubr.f32.mxu0 0.0
      %710 = vmatmul.mubr.f32.gmra.mxu0 %v386
      %v711 = vpop.f32.mrf.mxu0
      %v712 = vadd.f32 %v280, %v711
      %v713 = vpop.f32.mrf.mxu0
      %714 = vmatprep.mubr.f32.mxu0 0.0
      %715 = vmatmul.mubr.f32.gmra.mxu0 %v389
      %v716 = vpop.f32.mrf.mxu0
      %v717 = vadd.f32 %v280, %v716
      %v718 = vpop.f32.mrf.mxu0
      %719 = vmatprep.mubr.f32.mxu0 0.0
      %720 = vmatmul.mubr.f32.gmra.mxu0 %v392
      %v721 = vpop.f32.mrf.mxu0
      %v722 = vadd.f32 %v280, %v721
      %v723 = vpop.f32.mrf.mxu0
      %724 = vmatprep.mubr.f32.mxu0 0.0
      %725 = vmatmul.mubr.f32.gmra.mxu0 %v395
      %v726 = vpop.f32.mrf.mxu0
      %v727 = vadd.f32 %v280, %v726
      %v728 = vpop.f32.mrf.mxu0
      %729 = vmatprep.mubr.f32.mxu0 0.0
      %730 = vmatmul.mubr.f32.gmra.mxu0 %v398
      %v731 = vpop.f32.mrf.mxu0
      %v732 = vadd.f32 %v280, %v731
      %v733 = vpop.f32.mrf.mxu0
      %734 = vmatprep.mubr.f32.mxu0 0.0
      %735 = vmatmul.mubr.f32.gmra.mxu0 %v401
      %v736 = vpop.f32.mrf.mxu0
      %v737 = vadd.f32 %v280, %v736
      %v738 = vpop.f32.mrf.mxu0
      %739 = vmatprep.mubr.f32.mxu0 0.0
      %740 = vmatmul.mubr.f32.gmra.mxu0 %v404
      %v741 = vpop.f32.mrf.mxu0
      %v742 = vadd.f32 %v280, %v741
      %v743 = vpop.f32.mrf.mxu0
      %744 = vmatprep.mubr.f32.mxu0 0.0
      %745 = vmatmul.mubr.f32.gmra.mxu0 %v407
      %v746 = vpop.f32.mrf.mxu0
      %v747 = vadd.f32 %v280, %v746
      %v748 = vpop.f32.mrf.mxu0
      %749 = vmatprep.mubr.f32.mxu0 0.0
      %750 = vmatmul.mubr.f32.gmra.mxu0 %v410
      %v751 = vpop.f32.mrf.mxu0
      %v752 = vadd.f32 %v280, %v751
      %v753 = vpop.f32.mrf.mxu0
      %754 = vmatprep.mubr.f32.mxu0 0.0
      %755 = vmatmul.mubr.f32.gmra.mxu0 %v413
      %v756 = vpop.f32.mrf.mxu0
      %v757 = vadd.f32 %v280, %v756
      %v758 = vpop.f32.mrf.mxu0
      %759 = vmatprep.mubr.f32.mxu0 0.0
      %760 = vmatmul.mubr.f32.gmra.mxu0 %v416
      %v761 = vpop.f32.mrf.mxu0
      %v762 = vadd.f32 %v280, %v761
      %v763 = vpop.f32.mrf.mxu0
      %764 = vmatprep.mubr.f32.mxu0 0.0
      %765 = vmatmul.mubr.f32.gmra.mxu0 %v419
      %v766 = vpop.f32.mrf.mxu0
      %v767 = vadd.f32 %v280, %v766
      %v768 = vpop.f32.mrf.mxu0
      %769 = vmatprep.mubr.f32.mxu0 0.0
      %770 = vmatmul.mubr.f32.gmra.mxu0 %v422
      %v771 = vpop.f32.mrf.mxu0
      %v772 = vadd.f32 %v280, %v771
      %v773 = vpop.f32.mrf.mxu0
      %774 = vmatprep.mubr.f32.mxu0 0.0
      %775 = vmatmul.mubr.f32.gmra.mxu0 %v425
      %v776 = vpop.f32.mrf.mxu0
      %v777 = vadd.f32 %v280, %v776
      %v778 = vpop.f32.mrf.mxu0
      %779 = vmatprep.mubr.f32.mxu0 0.0
      %780 = vmatmul.mubr.f32.gmra.mxu0 %v428
      %v781 = vpop.f32.mrf.mxu0
      %v782 = vadd.f32 %v280, %v781
      %v783 = vpop.f32.mrf.mxu0
      %784 = vmatprep.mubr.f32.mxu0 0.0
      %785 = vmatmul.mubr.f32.gmra.mxu0 %v431
      %v786 = vpop.f32.mrf.mxu0
      %v787 = vadd.f32 %v280, %v786
      %v788 = vpop.f32.mrf.mxu0
      %789 = vmatprep.mubr.f32.mxu0 0.0
      %790 = vmatmul.mubr.f32.gmra.mxu0 %v434
      %v791 = vpop.f32.mrf.mxu0
      %v792 = vadd.f32 %v280, %v791
      %v793 = vpop.f32.mrf.mxu0
      %794 = vmatprep.mubr.f32.mxu0 0.0
      %795 = vmatmul.mubr.f32.gmra.mxu0 %v437
      %v796 = vpop.f32.mrf.mxu0
      %v797 = vadd.f32 %v280, %v796
      %v798 = vpop.f32.mrf.mxu0
      %799 = vmatprep.mubr.f32.mxu0 0.0
      %800 = vmatmul.mubr.f32.gmra.mxu0 %v440
      %v801 = vpop.f32.mrf.mxu0
      %v802 = vadd.f32 %v280, %v801
      %v803 = vpop.f32.mrf.mxu0
      %804 = vmatprep.mubr.f32.mxu0 0.0
      %805 = vmatmul.mubr.f32.gmra.mxu0 %v443
      %v806 = vpop.f32.mrf.mxu0
      %v807 = vadd.f32 %v280, %v806
      %v808 = vpop.f32.mrf.mxu0
      %809 = vmatprep.mubr.f32.mxu0 0.0
      %810 = vmatmul.mubr.f32.gmra.mxu0 %v446
      %v811 = vpop.f32.mrf.mxu0
      %v812 = vadd.f32 %v280, %v811
      %v813 = vpop.f32.mrf.mxu0
      %814 = vmatprep.mubr.f32.mxu0 0.0
      %815 = vmatmul.mubr.f32.gmra.mxu0 %v449
      %v816 = vpop.f32.mrf.mxu0
      %v817 = vadd.f32 %v280, %v816
      %v818 = vpop.f32.mrf.mxu0
      %819 = vmatprep.mubr.f32.mxu0 0.0
      %820 = vmatmul.mubr.f32.gmra.mxu0 %v452
      %v821 = vpop.f32.mrf.mxu0
      %v822 = vadd.f32 %v280, %v821
      %v823 = vpop.f32.mrf.mxu0
      %824 = vmatprep.mubr.f32.mxu0 0.0
      %825 = vmatmul.mubr.f32.gmra.mxu0 %v455
      %v826 = vpop.f32.mrf.mxu0
      %v827 = vadd.f32 %v280, %v826
      %v828 = vpop.f32.mrf.mxu0
      %829 = vmatprep.mubr.f32.mxu0 0.0
      %830 = vmatmul.mubr.f32.gmra.mxu0 %v458
      %v831 = vpop.f32.mrf.mxu0
      %v832 = vadd.f32 %v280, %v831
      %v833 = vpop.f32.mrf.mxu0
      %834 = vmatprep.mubr.f32.mxu0 0.0
      %835 = vmatmul.mubr.f32.gmra.mxu0 %v461
      %v836 = vpop.f32.mrf.mxu0
      %v837 = vadd.f32 %v280, %v836
      %v838 = vpop.f32.mrf.mxu0
      %839 = vmatprep.mubr.f32.mxu0 0.0
      %840 = vmatmul.mubr.f32.gmra.mxu0 %v464
      %v841 = vpop.f32.mrf.mxu0
      %v842 = vadd.f32 %v280, %v841
      %v843 = vpop.f32.mrf.mxu0
      %844 = vmatprep.mubr.f32.mxu0 0.0
      %845 = vmatmul.mubr.f32.gmra.mxu0 %v467
      %v846 = vpop.f32.mrf.mxu0
      %v847 = vadd.f32 %v280, %v846
      %v848 = vpop.f32.mrf.mxu0
      %849 = vmatprep.mubr.f32.mxu0 0.0
      %850 = vmatmul.mubr.f32.gmra.mxu0 %v470
      %v851 = vpop.f32.mrf.mxu0
      %v852 = vadd.f32 %v280, %v851
      %v853 = vpop.f32.mrf.mxu0
      %854 = vmatprep.mubr.f32.mxu0 0.0
      %855 = vmatmul.mubr.f32.gmra.mxu0 %v473
      %v856 = vpop.f32.mrf.mxu0
      %v857 = vadd.f32 %v280, %v856
      %v858 = vpop.f32.mrf.mxu0
      %859 = vdwg.mxu0
      %s860 = sld [smem:[#allocation2]]
      %vm861 = vcmp.gt.f32.partialorder %v542, 0.0
      %vm862 = vcmp.gt.f32.partialorder %v547, 0.0
      %vm863 = vcmp.gt.f32.partialorder %v552, 0.0
      %vm864 = vcmp.gt.f32.partialorder %v557, 0.0
      %vm865 = vcmp.gt.f32.partialorder %v562, 0.0
      %vm866 = vcmp.gt.f32.partialorder %v567, 0.0
      %vm867 = vcmp.gt.f32.partialorder %v572, 0.0
      %vm868 = vcmp.gt.f32.partialorder %v577, 0.0
      %vm869 = vcmp.gt.f32.partialorder %v582, 0.0
      %vm870 = vcmp.gt.f32.partialorder %v587, 0.0
      %vm871 = vcmp.gt.f32.partialorder %v592, 0.0
      %vm872 = vcmp.gt.f32.partialorder %v597, 0.0
      %vm873 = vcmp.gt.f32.partialorder %v602, 0.0
      %vm874 = vcmp.gt.f32.partialorder %v607, 0.0
      %vm875 = vcmp.gt.f32.partialorder %v612, 0.0
      %vm876 = vcmp.gt.f32.partialorder %v617, 0.0
      %vm877 = vcmp.gt.f32.partialorder %v622, 0.0
      %vm878 = vcmp.gt.f32.partialorder %v627, 0.0
      %vm879 = vcmp.gt.f32.partialorder %v632, 0.0
      %vm880 = vcmp.gt.f32.partialorder %v637, 0.0
      %vm881 = vcmp.gt.f32.partialorder %v642, 0.0
      %vm882 = vcmp.gt.f32.partialorder %v647, 0.0
      %vm883 = vcmp.gt.f32.partialorder %v652, 0.0
      %vm884 = vcmp.gt.f32.partialorder %v657, 0.0
      %vm885 = vcmp.gt.f32.partialorder %v662, 0.0
      %vm886 = vcmp.gt.f32.partialorder %v667, 0.0
      %vm887 = vcmp.gt.f32.partialorder %v672, 0.0
      %vm888 = vcmp.gt.f32.partialorder %v677, 0.0
      %vm889 = vcmp.gt.f32.partialorder %v682, 0.0
      %vm890 = vcmp.gt.f32.partialorder %v687, 0.0
      %vm891 = vcmp.gt.f32.partialorder %v692, 0.0
      %vm892 = vcmp.gt.f32.partialorder %v697, 0.0
      %vm893 = vcmp.gt.f32.partialorder %v702, 0.0
      %vm894 = vcmp.gt.f32.partialorder %v707, 0.0
      %vm895 = vcmp.gt.f32.partialorder %v712, 0.0
      %vm896 = vcmp.gt.f32.partialorder %v717, 0.0
      %vm897 = vcmp.gt.f32.partialorder %v722, 0.0
      %vm898 = vcmp.gt.f32.partialorder %v727, 0.0
      %vm899 = vcmp.gt.f32.partialorder %v732, 0.0
      %vm900 = vcmp.gt.f32.partialorder %v737, 0.0
      %vm901 = vcmp.gt.f32.partialorder %v742, 0.0
      %vm902 = vcmp.gt.f32.partialorder %v747, 0.0
      %vm903 = vcmp.gt.f32.partialorder %v752, 0.0
      %vm904 = vcmp.gt.f32.partialorder %v757, 0.0
      %vm905 = vcmp.gt.f32.partialorder %v762, 0.0
      %vm906 = vcmp.gt.f32.partialorder %v767, 0.0
      %vm907 = vcmp.gt.f32.partialorder %v772, 0.0
      %vm908 = vcmp.gt.f32.partialorder %v777, 0.0
      %vm909 = vcmp.gt.f32.partialorder %v782, 0.0
      %vm910 = vcmp.gt.f32.partialorder %v787, 0.0
      %vm911 = vcmp.gt.f32.partialorder %v792, 0.0
      %vm912 = vcmp.gt.f32.partialorder %v797, 0.0
      %vm913 = vcmp.gt.f32.partialorder %v802, 0.0
      %vm914 = vcmp.gt.f32.partialorder %v807, 0.0
      %vm915 = vcmp.gt.f32.partialorder %v812, 0.0
      %vm916 = vcmp.gt.f32.partialorder %v817, 0.0
      %vm917 = vcmp.gt.f32.partialorder %v822, 0.0
      %vm918 = vcmp.gt.f32.partialorder %v827, 0.0
      %vm919 = vcmp.gt.f32.partialorder %v832, 0.0
      %vm920 = vcmp.gt.f32.partialorder %v837, 0.0
      %vm921 = vcmp.gt.f32.partialorder %v842, 0.0
      %vm922 = vcmp.gt.f32.partialorder %v847, 0.0
      %vm923 = vcmp.gt.f32.partialorder %v852, 0.0
      %vm924 = vcmp.gt.f32.partialorder %v857, 0.0
      %v925 = vstv %s860
      %v926 = vmul.f32 %v542, %v925
      %v927 = vmul.f32 %v547, %v925
      %v928 = vmul.f32 %v552, %v925
      %v929 = vmul.f32 %v557, %v925
      %v930 = vmul.f32 %v562, %v925
      %v931 = vmul.f32 %v567, %v925
      %v932 = vmul.f32 %v572, %v925
      %v933 = vmul.f32 %v577, %v925
      %v934 = vmul.f32 %v582, %v925
      %v935 = vmul.f32 %v587, %v925
      %v936 = vmul.f32 %v592, %v925
      %v937 = vmul.f32 %v597, %v925
      %v938 = vmul.f32 %v602, %v925
      %v939 = vmul.f32 %v607, %v925
      %v940 = vmul.f32 %v612, %v925
      %v941 = vmul.f32 %v617, %v925
      %v942 = vmul.f32 %v622, %v925
      %v943 = vmul.f32 %v627, %v925
      %v944 = vmul.f32 %v632, %v925
      %v945 = vmul.f32 %v637, %v925
      %v946 = vmul.f32 %v642, %v925
      %v947 = vmul.f32 %v647, %v925
      %v948 = vmul.f32 %v652, %v925
      %v949 = vmul.f32 %v657, %v925
      %v950 = vmul.f32 %v662, %v925
      %v951 = vmul.f32 %v667, %v925
      %v952 = vmul.f32 %v672, %v925
      %v953 = vmul.f32 %v677, %v925
      %v954 = vmul.f32 %v682, %v925
      %v955 = vmul.f32 %v687, %v925
      %v956 = vmul.f32 %v692, %v925
      %v957 = vmul.f32 %v697, %v925
      %v958 = vmul.f32 %v702, %v925
      %v959 = vmul.f32 %v707, %v925
      %v960 = vmul.f32 %v712, %v925
      %v961 = vmul.f32 %v717, %v925
      %v962 = vmul.f32 %v722, %v925
      %v963 = vmul.f32 %v727, %v925
      %v964 = vmul.f32 %v732, %v925
      %v965 = vmul.f32 %v737, %v925
      %v966 = vmul.f32 %v742, %v925
      %v967 = vmul.f32 %v747, %v925
      %v968 = vmul.f32 %v752, %v925
      %v969 = vmul.f32 %v757, %v925
      %v970 = vmul.f32 %v762, %v925
      %v971 = vmul.f32 %v767, %v925
      %v972 = vmul.f32 %v772, %v925
      %v973 = vmul.f32 %v777, %v925
      %v974 = vmul.f32 %v782, %v925
      %v975 = vmul.f32 %v787, %v925
      %v976 = vmul.f32 %v792, %v925
      %v977 = vmul.f32 %v797, %v925
      %v978 = vmul.f32 %v802, %v925
      %v979 = vmul.f32 %v807, %v925
      %v980 = vmul.f32 %v812, %v925
      %v981 = vmul.f32 %v817, %v925
      %v982 = vmul.f32 %v822, %v925
      %v983 = vmul.f32 %v827, %v925
      %v984 = vmul.f32 %v832, %v925
      %v985 = vmul.f32 %v837, %v925
      %v986 = vmul.f32 %v842, %v925
      %v987 = vmul.f32 %v847, %v925
      %v988 = vmul.f32 %v852, %v925
      %v989 = vmul.f32 %v857, %v925
      %v990 = vsel %vm861, %v542, %v926
      %v991 = vsel %vm862, %v547, %v927
      %v992 = vsel %vm863, %v552, %v928
      %v993 = vsel %vm864, %v557, %v929
      %v994 = vsel %vm865, %v562, %v930
      %v995 = vsel %vm866, %v567, %v931
      %v996 = vsel %vm867, %v572, %v932
      %v997 = vsel %vm868, %v577, %v933
      %v998 = vsel %vm869, %v582, %v934
      %v999 = vsel %vm870, %v587, %v935
      %v1000 = vsel %vm871, %v592, %v936
      %v1001 = vsel %vm872, %v597, %v937
      %v1002 = vsel %vm873, %v602, %v938
      %v1003 = vsel %vm874, %v607, %v939
      %v1004 = vsel %vm875, %v612, %v940
      %v1005 = vsel %vm876, %v617, %v941
      %v1006 = vsel %vm877, %v622, %v942
      %v1007 = vsel %vm878, %v627, %v943
      %v1008 = vsel %vm879, %v632, %v944
      %v1009 = vsel %vm880, %v637, %v945
      %v1010 = vsel %vm881, %v642, %v946
      %v1011 = vsel %vm882, %v647, %v947
      %v1012 = vsel %vm883, %v652, %v948
      %v1013 = vsel %vm884, %v657, %v949
      %v1014 = vsel %vm885, %v662, %v950
      %v1015 = vsel %vm886, %v667, %v951
      %v1016 = vsel %vm887, %v672, %v952
      %v1017 = vsel %vm888, %v677, %v953
      %v1018 = vsel %vm889, %v682, %v954
      %v1019 = vsel %vm890, %v687, %v955
      %v1020 = vsel %vm891, %v692, %v956
      %v1021 = vsel %vm892, %v697, %v957
      %v1022 = vsel %vm893, %v702, %v958
      %v1023 = vsel %vm894, %v707, %v959
      %v1024 = vsel %vm895, %v712, %v960
      %v1025 = vsel %vm896, %v717, %v961
      %v1026 = vsel %vm897, %v722, %v962
      %v1027 = vsel %vm898, %v727, %v963
      %v1028 = vsel %vm899, %v732, %v964
      %v1029 = vsel %vm900, %v737, %v965
      %v1030 = vsel %vm901, %v742, %v966
      %v1031 = vsel %vm902, %v747, %v967
      %v1032 = vsel %vm903, %v752, %v968
      %v1033 = vsel %vm904, %v757, %v969
      %v1034 = vsel %vm905, %v762, %v970
      %v1035 = vsel %vm906, %v767, %v971
      %v1036 = vsel %vm907, %v772, %v972
      %v1037 = vsel %vm908, %v777, %v973
      %v1038 = vsel %vm909, %v782, %v974
      %v1039 = vsel %vm910, %v787, %v975
      %v1040 = vsel %vm911, %v792, %v976
      %v1041 = vsel %vm912, %v797, %v977
      %v1042 = vsel %vm913, %v802, %v978
      %v1043 = vsel %vm914, %v807, %v979
      %v1044 = vsel %vm915, %v812, %v980
      %v1045 = vsel %vm916, %v817, %v981
      %v1046 = vsel %vm917, %v822, %v982
      %v1047 = vsel %vm918, %v827, %v983
      %v1048 = vsel %vm919, %v832, %v984
      %v1049 = vsel %vm920, %v837, %v985
      %v1050 = vsel %vm921, %v842, %v986
      %v1051 = vsel %vm922, %v847, %v987
      %v1052 = vsel %vm923, %v852, %v988
      %v1053 = vsel %vm924, %v857, %v989
      %vm1054 = vcmask 261120
      %1055 = vst.msk [vmem:[%s200] sm:$0xff] %vm1054, %v990
      %1056 = vst.msk [vmem:[%s200 + $0x8] sm:$0xff] %vm1054, %v991
      %1057 = vst.msk [vmem:[%s200 + $0x10] sm:$0xff] %vm1054, %v992
      %1058 = vst.msk [vmem:[%s200 + $0x18] sm:$0xff] %vm1054, %v993
      %1059 = vst.msk [vmem:[%s200 + $0x20] sm:$0xff] %vm1054, %v994
      %1060 = vst.msk [vmem:[%s200 + $0x28] sm:$0xff] %vm1054, %v995
      %1061 = vst.msk [vmem:[%s200 + $0x30] sm:$0xff] %vm1054, %v996
      %1062 = vst.msk [vmem:[%s200 + $0x38] sm:$0xff] %vm1054, %v997
      %1063 = vst.msk [vmem:[%s200 + $0x40] sm:$0xff] %vm1054, %v998
      %1064 = vst.msk [vmem:[%s200 + $0x48] sm:$0xff] %vm1054, %v999
      %1065 = vst.msk [vmem:[%s200 + $0x50] sm:$0xff] %vm1054, %v1000
      %1066 = vst.msk [vmem:[%s200 + $0x58] sm:$0xff] %vm1054, %v1001
      %1067 = vst.msk [vmem:[%s200 + $0x60] sm:$0xff] %vm1054, %v1002
      %1068 = vst.msk [vmem:[%s200 + $0x68] sm:$0xff] %vm1054, %v1003
      %1069 = vst.msk [vmem:[%s200 + $0x70] sm:$0xff] %vm1054, %v1004
      %1070 = vst.msk [vmem:[%s200 + $0x78] sm:$0xff] %vm1054, %v1005
      %1071 = vst.msk [vmem:[%s200 + $0x80] sm:$0xff] %vm1054, %v1006
      %1072 = vst.msk [vmem:[%s200 + $0x88] sm:$0xff] %vm1054, %v1007
      %1073 = vst.msk [vmem:[%s200 + $0x90] sm:$0xff] %vm1054, %v1008
      %1074 = vst.msk [vmem:[%s200 + $0x98] sm:$0xff] %vm1054, %v1009
      %1075 = vst.msk [vmem:[%s200 + $0xa0] sm:$0xff] %vm1054, %v1010
      %1076 = vst.msk [vmem:[%s200 + $0xa8] sm:$0xff] %vm1054, %v1011
      %1077 = vst.msk [vmem:[%s200 + $0xb0] sm:$0xff] %vm1054, %v1012
      %1078 = vst.msk [vmem:[%s200 + $0xb8] sm:$0xff] %vm1054, %v1013
      %1079 = vst.msk [vmem:[%s200 + $0xc0] sm:$0xff] %vm1054, %v1014
      %1080 = vst.msk [vmem:[%s200 + $0xc8] sm:$0xff] %vm1054, %v1015
      %1081 = vst.msk [vmem:[%s200 + $0xd0] sm:$0xff] %vm1054, %v1016
      %1082 = vst.msk [vmem:[%s200 + $0xd8] sm:$0xff] %vm1054, %v1017
      %1083 = vst.msk [vmem:[%s200 + $0xe0] sm:$0xff] %vm1054, %v1018
      %1084 = vst.msk [vmem:[%s200 + $0xe8] sm:$0xff] %vm1054, %v1019
      %1085 = vst.msk [vmem:[%s200 + $0xf0] sm:$0xff] %vm1054, %v1020
      %1086 = vst.msk [vmem:[%s200 + $0xf8] sm:$0xff] %vm1054, %v1021
      %1087 = vst.msk [vmem:[%s200 + $0x100] sm:$0xff] %vm1054, %v1022
      %1088 = vst.msk [vmem:[%s200 + $0x108] sm:$0xff] %vm1054, %v1023
      %1089 = vst.msk [vmem:[%s200 + $0x110] sm:$0xff] %vm1054, %v1024
      %1090 = vst.msk [vmem:[%s200 + $0x118] sm:$0xff] %vm1054, %v1025
      %1091 = vst.msk [vmem:[%s200 + $0x120] sm:$0xff] %vm1054, %v1026
      %1092 = vst.msk [vmem:[%s200 + $0x128] sm:$0xff] %vm1054, %v1027
      %1093 = vst.msk [vmem:[%s200 + $0x130] sm:$0xff] %vm1054, %v1028
      %1094 = vst.msk [vmem:[%s200 + $0x138] sm:$0xff] %vm1054, %v1029
      %1095 = vst.msk [vmem:[%s200 + $0x140] sm:$0xff] %vm1054, %v1030
      %1096 = vst.msk [vmem:[%s200 + $0x148] sm:$0xff] %vm1054, %v1031
      %1097 = vst.msk [vmem:[%s200 + $0x150] sm:$0xff] %vm1054, %v1032
      %1098 = vst.msk [vmem:[%s200 + $0x158] sm:$0xff] %vm1054, %v1033
      %1099 = vst.msk [vmem:[%s200 + $0x160] sm:$0xff] %vm1054, %v1034
      %1100 = vst.msk [vmem:[%s200 + $0x168] sm:$0xff] %vm1054, %v1035
      %1101 = vst.msk [vmem:[%s200 + $0x170] sm:$0xff] %vm1054, %v1036
      %1102 = vst.msk [vmem:[%s200 + $0x178] sm:$0xff] %vm1054, %v1037
      %1103 = vst.msk [vmem:[%s200 + $0x180] sm:$0xff] %vm1054, %v1038
      %1104 = vst.msk [vmem:[%s200 + $0x188] sm:$0xff] %vm1054, %v1039
      %1105 = vst.msk [vmem:[%s200 + $0x190] sm:$0xff] %vm1054, %v1040
      %1106 = vst.msk [vmem:[%s200 + $0x198] sm:$0xff] %vm1054, %v1041
      %1107 = vst.msk [vmem:[%s200 + $0x1a0] sm:$0xff] %vm1054, %v1042
      %1108 = vst.msk [vmem:[%s200 + $0x1a8] sm:$0xff] %vm1054, %v1043
      %1109 = vst.msk [vmem:[%s200 + $0x1b0] sm:$0xff] %vm1054, %v1044
      %1110 = vst.msk [vmem:[%s200 + $0x1b8] sm:$0xff] %vm1054, %v1045
      %1111 = vst.msk [vmem:[%s200 + $0x1c0] sm:$0xff] %vm1054, %v1046
      %1112 = vst.msk [vmem:[%s200 + $0x1c8] sm:$0xff] %vm1054, %v1047
      %1113 = vst.msk [vmem:[%s200 + $0x1d0] sm:$0xff] %vm1054, %v1048
      %1114 = vst.msk [vmem:[%s200 + $0x1d8] sm:$0xff] %vm1054, %v1049
      %1115 = vst.msk [vmem:[%s200 + $0x1e0] sm:$0xff] %vm1054, %v1050
      %1116 = vst.msk [vmem:[%s200 + $0x1e8] sm:$0xff] %vm1054, %v1051
      %1117 = vst.msk [vmem:[%s200 + $0x1f0] sm:$0xff] %vm1054, %v1052
      %1118 = vst.msk [vmem:[%s200 + $0x1f8] sm:$0xff] %vm1054, %v1053
      %s1119 = smul.u32 64, %s16
      %p1120 = scmp.lt.s32.totalorder %s1119, 127
      %s1121 = scalar_select %p1120, %s1119, 127
      %s1122 = smul.addr %s1121, 8
      %s1123 = scalar_lea.vmem %s4, %s1122
      // Predicated region
      $region37: #{rnet_forward.5} parent=35 // pred_check
        %p1124 = pneg %p123
      $region38: #{rnet_forward.5} parent=35 // pred_check_branch
        %1126 = sbr.rel (%p1124) target = $region40
      $region39: #{rnet_forward.5} parent=35 // pred_region
        %s1127 = smul.u32 64, %s16
      $region40: #{rnet_forward.5} parent=35 // pred_fallthru
        _
    $region36: #{rnet_forward.5} parent=5 // pred_fallthru
      _
    %p1128 = scmp.le.s32.totalorder 2, %s11
    // Predicated region
    $region41: #{rnet_forward.5} parent=5 // pred_check
      %p1129 = pneg %p1128
    $region42: #{rnet_forward.5} parent=5 // pred_check_branch
      %1131 = sbr.rel (%p1129) target = $region44
    $region43: #{rnet_forward.5} parent=5 // pred_region
      %s1132 = ssub.s32 %s11, 2
      // Predicated region
      $region45: #{rnet_forward.5} parent=43 // pred_check
        %p1133 = pneg %p129
      $region46: #{rnet_forward.5} parent=43 // pred_check_branch
        %1135 = sbr.rel (%p1133) target = $region48
      $region47: #{rnet_forward.5} parent=43 // pred_region
        %s1136 = smul.u32 64, %s17
        %p1137 = scmp.lt.s32.totalorder %s1136, 127
        %s1138 = scalar_select %p1137, %s1136, 127
        %s1139 = smul.addr %s1138, 8
        %s1140 = scalar_lea.vmem %s4, %s1139
      $region48: #{rnet_forward.5} parent=43 // pred_fallthru
        _
    $region44: #{rnet_forward.5} parent=5 // pred_fallthru
      _
  $region6: #{rnet_forward.5} parent=0 // loop_footer
    %s15 = sadd.s32 1, %s11
  $region7: #{rnet_forward.5} parent=0 // loop_footer_branch
    %10 = sbr.rel target = $region3
  $region8: #{rnet_forward.5} parent=0 // loop_exit
    _

// kernel: rnet_forward.6
$region0: #{rnet_forward.6}
  #allocation0 [shape = 'u32[]', space=smem, size = 0x4, offset = 0x4, fixed_abs, tag = 'smem constant byte address 0x4 - core index']
  #allocation1 [shape = 'u32[144,128]{1,0:T(1,128)}', space=vmem, size = 0x12000, scoped, tag = 'internal scratch']
  %s0 = inlined_call_operand.vmem [shape: f32[9,200,32], index: 0, kind: input, shape index: {}]
  %s1 = inlined_call_operand.vmem [shape: f32[200,32], index: 1, kind: output, shape index: {}]
  %s2 = sld [smem:[#allocation0]]
  $region14: #{rnet_forward.6} parent=0
    _
  %s4 = ssub.s32 1, %s2
  %s5 = scalar_select 0, %s4, %s2
  // Predicated region
  $region2: #{rnet_forward.6} parent=0 // pred_check
    _
  $region3: #{rnet_forward.6} parent=0 // pred_check_branch
    %7 = sbr.rel (0) target = $region5
  $region4: #{rnet_forward.6} parent=0 // pred_region
    _
  $region5: #{rnet_forward.6} parent=0 // pred_fallthru
    _
  %v8 = vld [vmem:[%s0] sm:$0xff]
  %v9 = vld [vmem:[%s0 + $0x8] sm:$0xff]
  %v10 = vld [vmem:[%s0 + $0x10] sm:$0xff]
  %v11 = vld [vmem:[%s0 + $0x18] sm:$0xff]
  %v12 = vld [vmem:[%s0 + $0x20] sm:$0xff]
  %v13 = vld [vmem:[%s0 + $0x28] sm:$0xff]
  %v14 = vld [vmem:[%s0 + $0x30] sm:$0xff]
  %v15 = vld [vmem:[%s0 + $0x38] sm:$0xff]
  %v16 = vld [vmem:[%s0 + $0x40] sm:$0xff]
  %v17 = vld [vmem:[%s0 + $0x48] sm:$0xff]
  %v18 = vld [vmem:[%s0 + $0x50] sm:$0xff]
  %v19 = vld [vmem:[%s0 + $0x58] sm:$0xff]
  %v20 = vld [vmem:[%s0 + $0x60] sm:$0xff]
  %v21 = vld [vmem:[%s0 + $0x68] sm:$0xff]
  %v22 = vld [vmem:[%s0 + $0x70] sm:$0xff]
  %v23 = vld [vmem:[%s0 + $0x78] sm:$0xff]
  %v24 = vld [vmem:[%s0 + $0x80] sm:$0xff]
  %v25 = vld [vmem:[%s0 + $0x88] sm:$0xff]
  %v26 = vld [vmem:[%s0 + $0x90] sm:$0xff]
  %v27 = vld [vmem:[%s0 + $0x98] sm:$0xff]
  %v28 = vld [vmem:[%s0 + $0xa0] sm:$0xff]
  %v29 = vld [vmem:[%s0 + $0xa8] sm:$0xff]
  %v30 = vld [vmem:[%s0 + $0xb0] sm:$0xff]
  %v31 = vld [vmem:[%s0 + $0xb8] sm:$0xff]
  %v32 = vld [vmem:[%s0 + $0xc0] sm:$0xff]
  %v33 = vld [vmem:[%s0 + $0xc8] sm:$0xff]
  %v34 = vld [vmem:[%s0 + $0xd0] sm:$0xff]
  %v35 = vld [vmem:[%s0 + $0xd8] sm:$0xff]
  %v36 = vld [vmem:[%s0 + $0xe0] sm:$0xff]
  %v37 = vld [vmem:[%s0 + $0xe8] sm:$0xff]
  %v38 = vld [vmem:[%s0 + $0xf0] sm:$0xff]
  %v39 = vld [vmem:[%s0 + $0xf8] sm:$0xff]
  %v40 = vld [vmem:[%s0 + $0x100] sm:$0xff]
  %v41 = vld [vmem:[%s0 + $0x108] sm:$0xff]
  %v42 = vld [vmem:[%s0 + $0x110] sm:$0xff]
  %v43 = vld [vmem:[%s0 + $0x118] sm:$0xff]
  %v44 = vld [vmem:[%s0 + $0x120] sm:$0xff]
  %v45 = vld [vmem:[%s0 + $0x128] sm:$0xff]
  %v46 = vld [vmem:[%s0 + $0x130] sm:$0xff]
  %v47 = vld [vmem:[%s0 + $0x138] sm:$0xff]
  %v48 = vld [vmem:[%s0 + $0x140] sm:$0xff]
  %v49 = vld [vmem:[%s0 + $0x148] sm:$0xff]
  %v50 = vld [vmem:[%s0 + $0x150] sm:$0xff]
  %v51 = vld [vmem:[%s0 + $0x158] sm:$0xff]
  %v52 = vld [vmem:[%s0 + $0x160] sm:$0xff]
  %v53 = vld [vmem:[%s0 + $0x168] sm:$0xff]
  %v54 = vld [vmem:[%s0 + $0x170] sm:$0xff]
  %v55 = vld [vmem:[%s0 + $0x178] sm:$0xff]
  %v56 = vld [vmem:[%s0 + $0x180] sm:$0xff]
  %v57 = vld [vmem:[%s0 + $0x188] sm:$0xff]
  %v58 = vld [vmem:[%s0 + $0x190] sm:$0xff]
  %v59 = vld [vmem:[%s0 + $0x198] sm:$0xff]
  %v60 = vld [vmem:[%s0 + $0x1a0] sm:$0xff]
  %v61 = vld [vmem:[%s0 + $0x1a8] sm:$0xff]
  %v62 = vld [vmem:[%s0 + $0x1b0] sm:$0xff]
  %v63 = vld [vmem:[%s0 + $0x1b8] sm:$0xff]
  %v64 = vld [vmem:[%s0 + $0x1c0] sm:$0xff]
  %v65 = vld [vmem:[%s0 + $0x1c8] sm:$0xff]
  %v66 = vld [vmem:[%s0 + $0x1d0] sm:$0xff]
  %v67 = vld [vmem:[%s0 + $0x1d8] sm:$0xff]
  %v68 = vld [vmem:[%s0 + $0x1e0] sm:$0xff]
  %v69 = vld [vmem:[%s0 + $0x1e8] sm:$0xff]
  %v70 = vld [vmem:[%s0 + $0x1f0] sm:$0xff]
  %v71 = vld [vmem:[%s0 + $0x1f8] sm:$0xff]
  %v72 = vld [vmem:[%s0 + $0x200] sm:$0xff]
  %v73 = vld [vmem:[%s0 + $0x208] sm:$0xff]
  %v74 = vld [vmem:[%s0 + $0x210] sm:$0xff]
  %v75 = vld [vmem:[%s0 + $0x218] sm:$0xff]
  %v76 = vld [vmem:[%s0 + $0x220] sm:$0xff]
  %v77 = vld [vmem:[%s0 + $0x228] sm:$0xff]
  %v78 = vld [vmem:[%s0 + $0x230] sm:$0xff]
  %v79 = vld [vmem:[%s0 + $0x238] sm:$0xff]
  %v80 = vld [vmem:[%s0 + $0x240] sm:$0xff]
  %v81 = vld [vmem:[%s0 + $0x248] sm:$0xff]
  %v82 = vld [vmem:[%s0 + $0x250] sm:$0xff]
  %v83 = vld [vmem:[%s0 + $0x258] sm:$0xff]
  %v84 = vld [vmem:[%s0 + $0x260] sm:$0xff]
  %v85 = vld [vmem:[%s0 + $0x268] sm:$0xff]
  %v86 = vld [vmem:[%s0 + $0x270] sm:$0xff]
  %v87 = vld [vmem:[%s0 + $0x278] sm:$0xff]
  %v88 = vld [vmem:[%s0 + $0x280] sm:$0xff]
  %v89 = vld [vmem:[%s0 + $0x288] sm:$0xff]
  %v90 = vld [vmem:[%s0 + $0x290] sm:$0xff]
  %v91 = vld [vmem:[%s0 + $0x298] sm:$0xff]
  %v92 = vld [vmem:[%s0 + $0x2a0] sm:$0xff]
  %v93 = vld [vmem:[%s0 + $0x2a8] sm:$0xff]
  %v94 = vld [vmem:[%s0 + $0x2b0] sm:$0xff]
  %v95 = vld [vmem:[%s0 + $0x2b8] sm:$0xff]
  %v96 = vld [vmem:[%s0 + $0x2c0] sm:$0xff]
  %v97 = vld [vmem:[%s0 + $0x2c8] sm:$0xff]
  %v98 = vld [vmem:[%s0 + $0x2d0] sm:$0xff]
  %v99 = vld [vmem:[%s0 + $0x2d8] sm:$0xff]
  %v100 = vld [vmem:[%s0 + $0x2e0] sm:$0xff]
  %v101 = vld [vmem:[%s0 + $0x2e8] sm:$0xff]
  %v102 = vld [vmem:[%s0 + $0x2f0] sm:$0xff]
  %v103 = vld [vmem:[%s0 + $0x2f8] sm:$0xff]
  %v104 = vld [vmem:[%s0 + $0x300] sm:$0xff]
  %v105 = vld [vmem:[%s0 + $0x308] sm:$0xff]
  %v106 = vld [vmem:[%s0 + $0x310] sm:$0xff]
  %v107 = vld [vmem:[%s0 + $0x318] sm:$0xff]
  %v108 = vld [vmem:[%s0 + $0x320] sm:$0xff]
  %v109 = vld [vmem:[%s0 + $0x328] sm:$0xff]
  %v110 = vld [vmem:[%s0 + $0x330] sm:$0xff]
  %v111 = vld [vmem:[%s0 + $0x338] sm:$0xff]
  %v112 = vld [vmem:[%s0 + $0x340] sm:$0xff]
  %v113 = vld [vmem:[%s0 + $0x348] sm:$0xff]
  %v114 = vld [vmem:[%s0 + $0x350] sm:$0xff]
  %v115 = vld [vmem:[%s0 + $0x358] sm:$0xff]
  %v116 = vld [vmem:[%s0 + $0x360] sm:$0xff]
  %v117 = vld [vmem:[%s0 + $0x368] sm:$0xff]
  %v118 = vld [vmem:[%s0 + $0x370] sm:$0xff]
  %v119 = vld [vmem:[%s0 + $0x378] sm:$0xff]
  %v120 = vld [vmem:[%s0 + $0x380] sm:$0xff]
  %v121 = vld [vmem:[%s0 + $0x388] sm:$0xff]
  %v122 = vld [vmem:[%s0 + $0x390] sm:$0xff]
  %v123 = vld [vmem:[%s0 + $0x398] sm:$0xff]
  %v124 = vld [vmem:[%s0 + $0x3a0] sm:$0xff]
  %v125 = vld [vmem:[%s0 + $0x3a8] sm:$0xff]
  %v126 = vld [vmem:[%s0 + $0x3b0] sm:$0xff]
  %v127 = vld [vmem:[%s0 + $0x3b8] sm:$0xff]
  %v128 = vld [vmem:[%s0 + $0x3c0] sm:$0xff]
  %v129 = vld [vmem:[%s0 + $0x3c8] sm:$0xff]
  %v130 = vld [vmem:[%s0 + $0x3d0] sm:$0xff]
  %v131 = vld [vmem:[%s0 + $0x3d8] sm:$0xff]
  %v132 = vld [vmem:[%s0 + $0x3e0] sm:$0xff]
  %v133 = vld [vmem:[%s0 + $0x3e8] sm:$0xff]
  %v134 = vld [vmem:[%s0 + $0x3f0] sm:$0xff]
  %v135 = vld [vmem:[%s0 + $0x3f8] sm:$0xff]
  %v136 = vld [vmem:[%s0 + $0x400] sm:$0xff]
  %v137 = vld [vmem:[%s0 + $0x408] sm:$0xff]
  %v138 = vld [vmem:[%s0 + $0x410] sm:$0xff]
  %v139 = vld [vmem:[%s0 + $0x418] sm:$0xff]
  %v140 = vld [vmem:[%s0 + $0x420] sm:$0xff]
  %v141 = vld [vmem:[%s0 + $0x428] sm:$0xff]
  %v142 = vld [vmem:[%s0 + $0x430] sm:$0xff]
  %v143 = vld [vmem:[%s0 + $0x438] sm:$0xff]
  %v144 = vld [vmem:[%s0 + $0x440] sm:$0xff]
  %v145 = vld [vmem:[%s0 + $0x448] sm:$0xff]
  %v146 = vld [vmem:[%s0 + $0x450] sm:$0xff]
  %v147 = vld [vmem:[%s0 + $0x458] sm:$0xff]
  %v148 = vld [vmem:[%s0 + $0x460] sm:$0xff]
  %v149 = vld [vmem:[%s0 + $0x468] sm:$0xff]
  %v150 = vld [vmem:[%s0 + $0x470] sm:$0xff]
  %v151 = vld [vmem:[%s0 + $0x478] sm:$0xff]
  %v152 = vld [vmem:[%s0 + $0x480] sm:$0xff]
  %v153 = vld [vmem:[%s0 + $0x488] sm:$0xff]
  %v154 = vld [vmem:[%s0 + $0x490] sm:$0xff]
  %v155 = vld [vmem:[%s0 + $0x498] sm:$0xff]
  %v156 = vld [vmem:[%s0 + $0x4a0] sm:$0xff]
  %v157 = vld [vmem:[%s0 + $0x4a8] sm:$0xff]
  %v158 = vld [vmem:[%s0 + $0x4b0] sm:$0xff]
  %v159 = vld [vmem:[%s0 + $0x4b8] sm:$0xff]
  %v160 = vld [vmem:[%s0 + $0x4c0] sm:$0xff]
  %v161 = vld [vmem:[%s0 + $0x4c8] sm:$0xff]
  %v162 = vld [vmem:[%s0 + $0x4d0] sm:$0xff]
  %v163 = vld [vmem:[%s0 + $0x4d8] sm:$0xff]
  %v164 = vld [vmem:[%s0 + $0x4e0] sm:$0xff]
  %v165 = vld [vmem:[%s0 + $0x4e8] sm:$0xff]
  %v166 = vld [vmem:[%s0 + $0x4f0] sm:$0xff]
  %v167 = vld [vmem:[%s0 + $0x4f8] sm:$0xff]
  %v168 = vld [vmem:[%s0 + $0x500] sm:$0xff]
  %v169 = vld [vmem:[%s0 + $0x508] sm:$0xff]
  %v170 = vld [vmem:[%s0 + $0x510] sm:$0xff]
  %v171 = vld [vmem:[%s0 + $0x518] sm:$0xff]
  %v172 = vld [vmem:[%s0 + $0x520] sm:$0xff]
  %v173 = vld [vmem:[%s0 + $0x528] sm:$0xff]
  %v174 = vld [vmem:[%s0 + $0x530] sm:$0xff]
  %v175 = vld [vmem:[%s0 + $0x538] sm:$0xff]
  %v176 = vld [vmem:[%s0 + $0x540] sm:$0xff]
  %v177 = vld [vmem:[%s0 + $0x548] sm:$0xff]
  %v178 = vld [vmem:[%s0 + $0x550] sm:$0xff]
  %v179 = vld [vmem:[%s0 + $0x558] sm:$0xff]
  %v180 = vld [vmem:[%s0 + $0x560] sm:$0xff]
  %v181 = vld [vmem:[%s0 + $0x568] sm:$0xff]
  %v182 = vld [vmem:[%s0 + $0x570] sm:$0xff]
  %v183 = vld [vmem:[%s0 + $0x578] sm:$0xff]
  %v184 = vld [vmem:[%s0 + $0x580] sm:$0xff]
  %v185 = vld [vmem:[%s0 + $0x588] sm:$0xff]
  %v186 = vld [vmem:[%s0 + $0x590] sm:$0xff]
  %v187 = vld [vmem:[%s0 + $0x598] sm:$0xff]
  %v188 = vld [vmem:[%s0 + $0x5a0] sm:$0xff]
  %v189 = vld [vmem:[%s0 + $0x5a8] sm:$0xff]
  %v190 = vld [vmem:[%s0 + $0x5b0] sm:$0xff]
  %v191 = vld [vmem:[%s0 + $0x5b8] sm:$0xff]
  %v192 = vld [vmem:[%s0 + $0x5c0] sm:$0xff]
  %v193 = vld [vmem:[%s0 + $0x5c8] sm:$0xff]
  %v194 = vld [vmem:[%s0 + $0x5d0] sm:$0xff]
  %v195 = vld [vmem:[%s0 + $0x5d8] sm:$0xff]
  %v196 = vld [vmem:[%s0 + $0x5e0] sm:$0xff]
  %v197 = vld [vmem:[%s0 + $0x5e8] sm:$0xff]
  %v198 = vld [vmem:[%s0 + $0x5f0] sm:$0xff]
  %v199 = vld [vmem:[%s0 + $0x5f8] sm:$0xff]
  %v200 = vld [vmem:[%s0 + $0x600] sm:$0xff]
  %v201 = vld [vmem:[%s0 + $0x608] sm:$0xff]
  %v202 = vld [vmem:[%s0 + $0x610] sm:$0xff]
  %v203 = vld [vmem:[%s0 + $0x618] sm:$0xff]
  %v204 = vld [vmem:[%s0 + $0x620] sm:$0xff]
  %v205 = vld [vmem:[%s0 + $0x628] sm:$0xff]
  %v206 = vld [vmem:[%s0 + $0x630] sm:$0xff]
  %v207 = vld [vmem:[%s0 + $0x638] sm:$0xff]
  %v208 = vld [vmem:[%s0 + $0x640] sm:$0xff]
  %v209 = vld [vmem:[%s0 + $0x648] sm:$0xff]
  %v210 = vld [vmem:[%s0 + $0x650] sm:$0xff]
  %v211 = vld [vmem:[%s0 + $0x658] sm:$0xff]
  %v212 = vld [vmem:[%s0 + $0x660] sm:$0xff]
  %v213 = vld [vmem:[%s0 + $0x668] sm:$0xff]
  %v214 = vld [vmem:[%s0 + $0x670] sm:$0xff]
  %v215 = vld [vmem:[%s0 + $0x678] sm:$0xff]
  %v216 = vld [vmem:[%s0 + $0x680] sm:$0xff]
  %v217 = vld [vmem:[%s0 + $0x688] sm:$0xff]
  %v218 = vld [vmem:[%s0 + $0x690] sm:$0xff]
  %v219 = vld [vmem:[%s0 + $0x698] sm:$0xff]
  %v220 = vld [vmem:[%s0 + $0x6a0] sm:$0xff]
  %v221 = vld [vmem:[%s0 + $0x6a8] sm:$0xff]
  %v222 = vld [vmem:[%s0 + $0x6b0] sm:$0xff]
  %v223 = vld [vmem:[%s0 + $0x6b8] sm:$0xff]
  %v224 = vld [vmem:[%s0 + $0x6c0] sm:$0xff]
  %v225 = vld [vmem:[%s0 + $0x6c8] sm:$0xff]
  %v226 = vld [vmem:[%s0 + $0x6d0] sm:$0xff]
  %v227 = vld [vmem:[%s0 + $0x6d8] sm:$0xff]
  %v228 = vld [vmem:[%s0 + $0x6e0] sm:$0xff]
  %v229 = vld [vmem:[%s0 + $0x6e8] sm:$0xff]
  %v230 = vld [vmem:[%s0 + $0x6f0] sm:$0xff]
  %v231 = vld [vmem:[%s0 + $0x6f8] sm:$0xff]
  %v232 = vld [vmem:[%s0 + $0x700] sm:$0xff]
  %v233 = vmax.f32 %v8, %v33
  %v234 = vmax.f32 %v9, %v34
  %v235 = vmax.f32 %v10, %v35
  %v236 = vmax.f32 %v11, %v36
  %v237 = vmax.f32 %v12, %v37
  %v238 = vmax.f32 %v13, %v38
  %v239 = vmax.f32 %v14, %v39
  %v240 = vmax.f32 %v15, %v40
  %v241 = vmax.f32 %v16, %v41
  %v242 = vmax.f32 %v17, %v42
  %v243 = vmax.f32 %v18, %v43
  %v244 = vmax.f32 %v19, %v44
  %v245 = vmax.f32 %v20, %v45
  %v246 = vmax.f32 %v21, %v46
  %v247 = vmax.f32 %v22, %v47
  %v248 = vmax.f32 %v23, %v48
  %v249 = vmax.f32 %v24, %v49
  %v250 = vmax.f32 %v25, %v50
  %v251 = vmax.f32 %v26, %v51
  %v252 = vmax.f32 %v27, %v52
  %v253 = vmax.f32 %v28, %v53
  %v254 = vmax.f32 %v29, %v54
  %v255 = vmax.f32 %v30, %v55
  %v256 = vmax.f32 %v31, %v56
  %v257 = vmax.f32 %v32, %v57
  %v258 = vmax.f32 %v233, %v58
  %v259 = vmax.f32 %v234, %v59
  %v260 = vmax.f32 %v235, %v60
  %v261 = vmax.f32 %v236, %v61
  %v262 = vmax.f32 %v237, %v62
  %v263 = vmax.f32 %v238, %v63
  %v264 = vmax.f32 %v239, %v64
  %v265 = vmax.f32 %v240, %v65
  %v266 = vmax.f32 %v241, %v66
  %v267 = vmax.f32 %v242, %v67
  %v268 = vmax.f32 %v243, %v68
  %v269 = vmax.f32 %v244, %v69
  %v270 = vmax.f32 %v245, %v70
  %v271 = vmax.f32 %v246, %v71
  %v272 = vmax.f32 %v247, %v72
  %v273 = vmax.f32 %v248, %v73
  %v274 = vmax.f32 %v249, %v74
  %v275 = vmax.f32 %v250, %v75
  %v276 = vmax.f32 %v251, %v76
  %v277 = vmax.f32 %v252, %v77
  %v278 = vmax.f32 %v253, %v78
  %v279 = vmax.f32 %v254, %v79
  %v280 = vmax.f32 %v255, %v80
  %v281 = vmax.f32 %v256, %v81
  %v282 = vmax.f32 %v257, %v82
  %v283 = vmax.f32 %v258, %v83
  %v284 = vmax.f32 %v259, %v84
  %v285 = vmax.f32 %v260, %v85
  %v286 = vmax.f32 %v261, %v86
  %v287 = vmax.f32 %v262, %v87
  %v288 = vmax.f32 %v263, %v88
  %v289 = vmax.f32 %v264, %v89
  %v290 = vmax.f32 %v265, %v90
  %v291 = vmax.f32 %v266, %v91
  %v292 = vmax.f32 %v267, %v92
  %v293 = vmax.f32 %v268, %v93
  %v294 = vmax.f32 %v269, %v94
  %v295 = vmax.f32 %v270, %v95
  %v296 = vmax.f32 %v271, %v96
  %v297 = vmax.f32 %v272, %v97
  %v298 = vmax.f32 %v273, %v98
  %v299 = vmax.f32 %v274, %v99
  %v300 = vmax.f32 %v275, %v100
  %v301 = vmax.f32 %v276, %v101
  %v302 = vmax.f32 %v277, %v102
  %v303 = vmax.f32 %v278, %v103
  %v304 = vmax.f32 %v279, %v104
  %v305 = vmax.f32 %v280, %v105
  %v306 = vmax.f32 %v281, %v106
  %v307 = vmax.f32 %v282, %v107
  %v308 = vmax.f32 %v283, %v108
  %v309 = vmax.f32 %v284, %v109
  %v310 = vmax.f32 %v285, %v110
  %v311 = vmax.f32 %v286, %v111
  %v312 = vmax.f32 %v287, %v112
  %v313 = vmax.f32 %v288, %v113
  %v314 = vmax.f32 %v289, %v114
  %v315 = vmax.f32 %v290, %v115
  %v316 = vmax.f32 %v291, %v116
  %v317 = vmax.f32 %v292, %v117
  %v318 = vmax.f32 %v293, %v118
  %v319 = vmax.f32 %v294, %v119
  %v320 = vmax.f32 %v295, %v120
  %v321 = vmax.f32 %v296, %v121
  %v322 = vmax.f32 %v297, %v122
  %v323 = vmax.f32 %v298, %v123
  %v324 = vmax.f32 %v299, %v124
  %v325 = vmax.f32 %v300, %v125
  %v326 = vmax.f32 %v301, %v126
  %v327 = vmax.f32 %v302, %v127
  %v328 = vmax.f32 %v303, %v128
  %v329 = vmax.f32 %v304, %v129
  %v330 = vmax.f32 %v305, %v130
  %v331 = vmax.f32 %v306, %v131
  %v332 = vmax.f32 %v307, %v132
  %v333 = vmax.f32 %v308, %v133
  %v334 = vmax.f32 %v309, %v134
  %v335 = vmax.f32 %v310, %v135
  %v336 = vmax.f32 %v311, %v136
  %v337 = vmax.f32 %v312, %v137
  %v338 = vmax.f32 %v313, %v138
  %v339 = vmax.f32 %v314, %v139
  %v340 = vmax.f32 %v315, %v140
  %v341 = vmax.f32 %v316, %v141
  %v342 = vmax.f32 %v317, %v142
  %v343 = vmax.f32 %v318, %v143
  %v344 = vmax.f32 %v319, %v144
  %v345 = vmax.f32 %v320, %v145
  %v346 = vmax.f32 %v321, %v146
  %v347 = vmax.f32 %v322, %v147
  %v348 = vmax.f32 %v323, %v148
  %v349 = vmax.f32 %v324, %v149
  %v350 = vmax.f32 %v325, %v150
  %v351 = vmax.f32 %v326, %v151
  %v352 = vmax.f32 %v327, %v152
  %v353 = vmax.f32 %v328, %v153
  %v354 = vmax.f32 %v329, %v154
  %v355 = vmax.f32 %v330, %v155
  %v356 = vmax.f32 %v331, %v156
  %v357 = vmax.f32 %v332, %v157
  %v358 = vmax.f32 %v333, %v158
  %v359 = vmax.f32 %v334, %v159
  %v360 = vmax.f32 %v335, %v160
  %v361 = vmax.f32 %v336, %v161
  %v362 = vmax.f32 %v337, %v162
  %v363 = vmax.f32 %v338, %v163
  %v364 = vmax.f32 %v339, %v164
  %v365 = vmax.f32 %v340, %v165
  %v366 = vmax.f32 %v341, %v166
  %v367 = vmax.f32 %v342, %v167
  %v368 = vmax.f32 %v343, %v168
  %v369 = vmax.f32 %v344, %v169
  %v370 = vmax.f32 %v345, %v170
  %v371 = vmax.f32 %v346, %v171
  %v372 = vmax.f32 %v347, %v172
  %v373 = vmax.f32 %v348, %v173
  %v374 = vmax.f32 %v349, %v174
  %v375 = vmax.f32 %v350, %v175
  %v376 = vmax.f32 %v351, %v176
  %v377 = vmax.f32 %v352, %v177
  %v378 = vmax.f32 %v353, %v178
  %v379 = vmax.f32 %v354, %v179
  %v380 = vmax.f32 %v355, %v180
  %v381 = vmax.f32 %v356, %v181
  %v382 = vmax.f32 %v357, %v182
  %v383 = vmax.f32 %v358, %v183
  %v384 = vmax.f32 %v359, %v184
  %v385 = vmax.f32 %v360, %v185
  %v386 = vmax.f32 %v361, %v186
  %v387 = vmax.f32 %v362, %v187
  %v388 = vmax.f32 %v363, %v188
  %v389 = vmax.f32 %v364, %v189
  %v390 = vmax.f32 %v365, %v190
  %v391 = vmax.f32 %v366, %v191
  %v392 = vmax.f32 %v367, %v192
  %v393 = vmax.f32 %v368, %v193
  %v394 = vmax.f32 %v369, %v194
  %v395 = vmax.f32 %v370, %v195
  %v396 = vmax.f32 %v371, %v196
  %v397 = vmax.f32 %v372, %v197
  %v398 = vmax.f32 %v373, %v198
  %v399 = vmax.f32 %v374, %v199
  %v400 = vmax.f32 %v375, %v200
  %v401 = vmax.f32 %v376, %v201
  %v402 = vmax.f32 %v377, %v202
  %v403 = vmax.f32 %v378, %v203
  %v404 = vmax.f32 %v379, %v204
  %v405 = vmax.f32 %v380, %v205
  %v406 = vmax.f32 %v381, %v206
  %v407 = vmax.f32 %v382, %v207
  %v408 = vmax.f32 %v383, %v208
  %v409 = vmax.f32 %v384, %v209
  %v410 = vmax.f32 %v385, %v210
  %v411 = vmax.f32 %v386, %v211
  %v412 = vmax.f32 %v387, %v212
  %v413 = vmax.f32 %v388, %v213
  %v414 = vmax.f32 %v389, %v214
  %v415 = vmax.f32 %v390, %v215
  %v416 = vmax.f32 %v391, %v216
  %v417 = vmax.f32 %v392, %v217
  %v418 = vmax.f32 %v393, %v218
  %v419 = vmax.f32 %v394, %v219
  %v420 = vmax.f32 %v395, %v220
  %v421 = vmax.f32 %v396, %v221
  %v422 = vmax.f32 %v397, %v222
  %v423 = vmax.f32 %v398, %v223
  %v424 = vmax.f32 %v399, %v224
  %v425 = vmax.f32 %v400, %v225
  %v426 = vmax.f32 %v401, %v226
  %v427 = vmax.f32 %v402, %v227
  %v428 = vmax.f32 %v403, %v228
  %v429 = vmax.f32 %v404, %v229
  %v430 = vmax.f32 %v405, %v230
  %v431 = vmax.f32 %v406, %v231
  %v432 = vmax.f32 %v407, %v232
  %vm433 = vcmask 261120
  %434 = vst.msk [vmem:[%s1] sm:$0xff] %vm433, %v408
  %435 = vst.msk [vmem:[%s1 + $0x8] sm:$0xff] %vm433, %v409
  %436 = vst.msk [vmem:[%s1 + $0x10] sm:$0xff] %vm433, %v410
  %437 = vst.msk [vmem:[%s1 + $0x18] sm:$0xff] %vm433, %v411
  %438 = vst.msk [vmem:[%s1 + $0x20] sm:$0xff] %vm433, %v412
  %439 = vst.msk [vmem:[%s1 + $0x28] sm:$0xff] %vm433, %v413
  %440 = vst.msk [vmem:[%s1 + $0x30] sm:$0xff] %vm433, %v414
  %441 = vst.msk [vmem:[%s1 + $0x38] sm:$0xff] %vm433, %v415
  %442 = vst.msk [vmem:[%s1 + $0x40] sm:$0xff] %vm433, %v416
  %443 = vst.msk [vmem:[%s1 + $0x48] sm:$0xff] %vm433, %v417
  %444 = vst.msk [vmem:[%s1 + $0x50] sm:$0xff] %vm433, %v418
  %445 = vst.msk [vmem:[%s1 + $0x58] sm:$0xff] %vm433, %v419
  %446 = vst.msk [vmem:[%s1 + $0x60] sm:$0xff] %vm433, %v420
  %447 = vst.msk [vmem:[%s1 + $0x68] sm:$0xff] %vm433, %v421
  %448 = vst.msk [vmem:[%s1 + $0x70] sm:$0xff] %vm433, %v422
  %449 = vst.msk [vmem:[%s1 + $0x78] sm:$0xff] %vm433, %v423
  %450 = vst.msk [vmem:[%s1 + $0x80] sm:$0xff] %vm433, %v424
  %451 = vst.msk [vmem:[%s1 + $0x88] sm:$0xff] %vm433, %v425
  %452 = vst.msk [vmem:[%s1 + $0x90] sm:$0xff] %vm433, %v426
  %453 = vst.msk [vmem:[%s1 + $0x98] sm:$0xff] %vm433, %v427
  %454 = vst.msk [vmem:[%s1 + $0xa0] sm:$0xff] %vm433, %v428
  %455 = vst.msk [vmem:[%s1 + $0xa8] sm:$0xff] %vm433, %v429
  %456 = vst.msk [vmem:[%s1 + $0xb0] sm:$0xff] %vm433, %v430
  %457 = vst.msk [vmem:[%s1 + $0xb8] sm:$0xff] %vm433, %v431
  %458 = vst.msk [vmem:[%s1 + $0xc0] sm:$0xff] %vm433, %v432
  // Predicated region
  $region6: #{rnet_forward.6} parent=0 // pred_check
    _
  $region7: #{rnet_forward.6} parent=0 // pred_check_branch
    %460 = sbr.rel (0) target = $region9
  $region8: #{rnet_forward.6} parent=0 // pred_region
    _
  $region9: #{rnet_forward.6} parent=0 // pred_fallthru
    _
  // Predicated region
  $region10: #{rnet_forward.6} parent=0 // pred_check
    _
  $region11: #{rnet_forward.6} parent=0 // pred_check_branch
    %462 = sbr.rel (0) target = $region13
  $region12: #{rnet_forward.6} parent=0 // pred_region
    _
  $region13: #{rnet_forward.6} parent=0 // pred_fallthru
    _

// kernel: rnet_forward.7
$region0: #{rnet_forward.7}
  #allocation0 [shape = 'u32[]', space=smem, size = 0x4, offset = 0x4, fixed_abs, tag = 'smem constant byte address 0x4 - core index']
  #allocation1 [shape = 'u32[144,128]{1,0:T(1,128)}', space=vmem, size = 0x12000, scoped, tag = 'internal scratch']
  #allocation2 [shape = 'f32[1]{0:T(128)S(6)}', space=smem, size = 0x200, scoped, tag = 'scoped memory for rnet_forward.7']
  %s0 = inlined_call_operand.vmem [shape: f32[128,288], index: 0, kind: input, shape index: {}]
  %s1 = inlined_call_operand.vmem [shape: f32[288,64], index: 1, kind: input, shape index: {}]
  %s2 = inlined_call_operand.vmem [shape: f32[1,64], index: 2, kind: input, shape index: {}]
  %s3 = inlined_call_operand.<no memory space> [shape: f32[1], index: 3, kind: input, shape index: {}]
  %s4 = inlined_call_operand.vmem [shape: f32[128,64], index: 4, kind: output, shape index: {}]
  %s5 = sld [smem:[#allocation0]]
  $region26: #{rnet_forward.7} parent=0
    _
  %s7 = ssub.s32 1, %s5
  %s8 = scalar_select 0, %s7, %s5
  %9 = sst [smem:[#allocation2]] %s3
  // Predicated region
  $region2: #{rnet_forward.7} parent=0 // pred_check
    _
  $region3: #{rnet_forward.7} parent=0 // pred_check_branch
    %11 = sbr.rel (0) target = $region5
  $region4: #{rnet_forward.7} parent=0 // pred_region
    _
  $region5: #{rnet_forward.7} parent=0 // pred_fallthru
    _
  // Predicated region
  $region6: #{rnet_forward.7} parent=0 // pred_check
    _
  $region7: #{rnet_forward.7} parent=0 // pred_check_branch
    %13 = sbr.rel (0) target = $region9
  $region8: #{rnet_forward.7} parent=0 // pred_region
    _
  $region9: #{rnet_forward.7} parent=0 // pred_fallthru
    _
  // Predicated region
  $region10: #{rnet_forward.7} parent=0 // pred_check
    _
  $region11: #{rnet_forward.7} parent=0 // pred_check_branch
    %15 = sbr.rel (0) target = $region13
  $region12: #{rnet_forward.7} parent=0 // pred_region
    _
  $region13: #{rnet_forward.7} parent=0 // pred_fallthru
    _
  // Predicated region
  $region14: #{rnet_forward.7} parent=0 // pred_check
    _
  $region15: #{rnet_forward.7} parent=0 // pred_check_branch
    %17 = sbr.rel (0) target = $region17
  $region16: #{rnet_forward.7} parent=0 // pred_region
    _
  $region17: #{rnet_forward.7} parent=0 // pred_fallthru
    _
  %v18 = vld [vmem:[%s0] sm:$0xff]
  %v19 = vld [vmem:[%s0 + $0x8] sm:$0xff]
  %v20 = vld [vmem:[%s0 + $0x10] sm:$0xff]
  %v21 = vld [vmem:[%s0 + $0x18] sm:$0xff]
  %v22 = vld [vmem:[%s0 + $0x20] sm:$0xff]
  %v23 = vld [vmem:[%s0 + $0x28] sm:$0xff]
  %v24 = vld [vmem:[%s0 + $0x30] sm:$0xff]
  %v25 = vld [vmem:[%s0 + $0x38] sm:$0xff]
  %v26 = vld [vmem:[%s0 + $0x40] sm:$0xff]
  %v27 = vld [vmem:[%s0 + $0x48] sm:$0xff]
  %v28 = vld [vmem:[%s0 + $0x50] sm:$0xff]
  %v29 = vld [vmem:[%s0 + $0x58] sm:$0xff]
  %v30 = vld [vmem:[%s0 + $0x60] sm:$0xff]
  %v31 = vld [vmem:[%s0 + $0x68] sm:$0xff]
  %v32 = vld [vmem:[%s0 + $0x70] sm:$0xff]
  %v33 = vld [vmem:[%s0 + $0x78] sm:$0xff]
  %v34 = vld [vmem:[%s0 + $0x80] sm:$0xff]
  %v35 = vld [vmem:[%s0 + $0x88] sm:$0xff]
  %v36 = vld [vmem:[%s0 + $0x90] sm:$0xff]
  %v37 = vld [vmem:[%s0 + $0x98] sm:$0xff]
  %v38 = vld [vmem:[%s0 + $0xa0] sm:$0xff]
  %v39 = vld [vmem:[%s0 + $0xa8] sm:$0xff]
  %v40 = vld [vmem:[%s0 + $0xb0] sm:$0xff]
  %v41 = vld [vmem:[%s0 + $0xb8] sm:$0xff]
  %v42 = vld [vmem:[%s0 + $0xc0] sm:$0xff]
  %v43 = vld [vmem:[%s0 + $0xc8] sm:$0xff]
  %v44 = vld [vmem:[%s0 + $0xd0] sm:$0xff]
  %v45 = vld [vmem:[%s0 + $0xd8] sm:$0xff]
  %v46 = vld [vmem:[%s0 + $0xe0] sm:$0xff]
  %v47 = vld [vmem:[%s0 + $0xe8] sm:$0xff]
  %v48 = vld [vmem:[%s0 + $0xf0] sm:$0xff]
  %v49 = vld [vmem:[%s0 + $0xf8] sm:$0xff]
  %v50 = vld [vmem:[%s0 + $0x100] sm:$0xff]
  %v51 = vld [vmem:[%s0 + $0x108] sm:$0xff]
  %v52 = vld [vmem:[%s0 + $0x110] sm:$0xff]
  %v53 = vld [vmem:[%s0 + $0x118] sm:$0xff]
  %v54 = vld [vmem:[%s0 + $0x120] sm:$0xff]
  %v55 = vld [vmem:[%s0 + $0x128] sm:$0xff]
  %v56 = vld [vmem:[%s0 + $0x130] sm:$0xff]
  %v57 = vld [vmem:[%s0 + $0x138] sm:$0xff]
  %v58 = vld [vmem:[%s0 + $0x140] sm:$0xff]
  %v59 = vld [vmem:[%s0 + $0x148] sm:$0xff]
  %v60 = vld [vmem:[%s0 + $0x150] sm:$0xff]
  %v61 = vld [vmem:[%s0 + $0x158] sm:$0xff]
  %v62 = vld [vmem:[%s0 + $0x160] sm:$0xff]
  %v63 = vld [vmem:[%s0 + $0x168] sm:$0xff]
  %v64 = vld [vmem:[%s0 + $0x170] sm:$0xff]
  %v65 = vld [vmem:[%s0 + $0x178] sm:$0xff]
  %v66 = vld [vmem:[%s1] sm:$0xff]
  %v67 = vld [vmem:[%s1 + $0x8] sm:$0xff]
  %v68 = vld [vmem:[%s1 + $0x10] sm:$0xff]
  %v69 = vld [vmem:[%s1 + $0x18] sm:$0xff]
  %v70 = vld [vmem:[%s1 + $0x20] sm:$0xff]
  %v71 = vld [vmem:[%s1 + $0x28] sm:$0xff]
  %v72 = vld [vmem:[%s1 + $0x30] sm:$0xff]
  %v73 = vld [vmem:[%s1 + $0x38] sm:$0xff]
  %v74 = vld [vmem:[%s1 + $0x40] sm:$0xff]
  %v75 = vld [vmem:[%s1 + $0x48] sm:$0xff]
  %v76 = vld [vmem:[%s1 + $0x50] sm:$0xff]
  %v77 = vld [vmem:[%s1 + $0x58] sm:$0xff]
  %v78 = vld [vmem:[%s1 + $0x60] sm:$0xff]
  %v79 = vld [vmem:[%s1 + $0x68] sm:$0xff]
  %v80 = vld [vmem:[%s1 + $0x70] sm:$0xff]
  %v81 = vld [vmem:[%s1 + $0x78] sm:$0xff]
  %v82 = vld [vmem:[%s1 + $0x80] sm:$0xff]
  %v83 = vld [vmem:[%s1 + $0x88] sm:$0xff]
  %v84 = vld [vmem:[%s1 + $0x90] sm:$0xff]
  %v85 = vld [vmem:[%s1 + $0x98] sm:$0xff]
  %v86 = vld [vmem:[%s1 + $0xa0] sm:$0xff]
  %v87 = vld [vmem:[%s1 + $0xa8] sm:$0xff]
  %v88 = vld [vmem:[%s1 + $0xb0] sm:$0xff]
  %v89 = vld [vmem:[%s1 + $0xb8] sm:$0xff]
  %v90 = vld [vmem:[%s1 + $0xc0] sm:$0xff]
  %v91 = vld [vmem:[%s1 + $0xc8] sm:$0xff]
  %v92 = vld [vmem:[%s1 + $0xd0] sm:$0xff]
  %v93 = vld [vmem:[%s1 + $0xd8] sm:$0xff]
  %v94 = vld [vmem:[%s1 + $0xe0] sm:$0xff]
  %v95 = vld [vmem:[%s1 + $0xe8] sm:$0xff]
  %v96 = vld [vmem:[%s1 + $0xf0] sm:$0xff]
  %v97 = vld [vmem:[%s1 + $0xf8] sm:$0xff]
  %v98 = vld [vmem:[%s1 + $0x100] sm:$0xff]
  %v99 = vld [vmem:[%s1 + $0x108] sm:$0xff]
  %v100 = vld [vmem:[%s1 + $0x110] sm:$0xff]
  %v101 = vld [vmem:[%s1 + $0x118] sm:$0xff]
  %v102 = vld [vmem:[%s2] sm:$0x1]
  %v104 = vlaneseq
  %v105 = vshrl.u32 %v104, 7
  %v106 = vsub.s32 0, %v105
  %v107 = vrot.slane %v102, %v106
  %vm109 = vcmask 261120
  %v111 = vsel %vm109, %v20, 0
  %v114 = vsel %vm109, %v23, 0
  %v117 = vsel %vm109, %v26, 0
  %v120 = vsel %vm109, %v29, 0
  %v123 = vsel %vm109, %v32, 0
  %v126 = vsel %vm109, %v35, 0
  %v129 = vsel %vm109, %v38, 0
  %v132 = vsel %vm109, %v41, 0
  %v135 = vsel %vm109, %v44, 0
  %v138 = vsel %vm109, %v47, 0
  %v141 = vsel %vm109, %v50, 0
  %v144 = vsel %vm109, %v53, 0
  %v147 = vsel %vm109, %v56, 0
  %v150 = vsel %vm109, %v59, 0
  %v153 = vsel %vm109, %v62, 0
  %v156 = vsel %vm109, %v65, 0
  %158 = vmatprep.subr.mxu0 0.0
  %159 = vmatpush1.msra.mxu0 %v81
  %160 = vmatprep.subr.mxu0 0.0
  %161 = vmatpush1.msra.mxu0 %v80
  %162 = vmatprep.subr.mxu0 0.0
  %163 = vmatpush1.msra.mxu0 %v79
  %164 = vmatprep.subr.mxu0 0.0
  %165 = vmatpush1.msra.mxu0 %v78
  %166 = vmatprep.subr.mxu0 0.0
  %167 = vmatpush1.msra.mxu0 %v77
  %168 = vmatprep.subr.mxu0 0.0
  %169 = vmatpush1.msra.mxu0 %v76
  %170 = vmatprep.subr.mxu0 0.0
  %171 = vmatpush1.msra.mxu0 %v75
  %172 = vmatprep.subr.mxu0 0.0
  %173 = vmatpush1.msra.mxu0 %v74
  %174 = vmatprep.subr.mxu0 0.0
  %175 = vmatpush1.msra.mxu0 %v73
  %176 = vmatprep.subr.mxu0 0.0
  %177 = vmatpush1.msra.mxu0 %v72
  %178 = vmatprep.subr.mxu0 0.0
  %179 = vmatpush1.msra.mxu0 %v71
  %180 = vmatprep.subr.mxu0 0.0
  %181 = vmatpush1.msra.mxu0 %v70
  %182 = vmatprep.subr.mxu0 0.0
  %183 = vmatpush1.msra.mxu0 %v69
  %184 = vmatprep.subr.mxu0 0.0
  %185 = vmatpush1.msra.mxu0 %v68
  %186 = vmatprep.subr.mxu0 0.0
  %187 = vmatpush1.msra.mxu0 %v67
  %188 = vmatprep.subr.mxu0 0.0
  %189 = vmatpush1.msra.mxu0 %v66
  %190 = vmatprep.subr.mxu0 0.0
  %191 = vmatpush2.msra.mxu0 %v97
  %192 = vmatprep.subr.mxu0 0.0
  %193 = vmatpush2.msra.mxu0 %v96
  %194 = vmatprep.subr.mxu0 0.0
  %195 = vmatpush2.msra.mxu0 %v95
  %196 = vmatprep.subr.mxu0 0.0
  %197 = vmatpush2.msra.mxu0 %v94
  %198 = vmatprep.subr.mxu0 0.0
  %199 = vmatpush2.msra.mxu0 %v93
  %200 = vmatprep.subr.mxu0 0.0
  %201 = vmatpush2.msra.mxu0 %v92
  %202 = vmatprep.subr.mxu0 0.0
  %203 = vmatpush2.msra.mxu0 %v91
  %204 = vmatprep.subr.mxu0 0.0
  %205 = vmatpush2.msra.mxu0 %v90
  %206 = vmatprep.subr.mxu0 0.0
  %207 = vmatpush2.msra.mxu0 %v89
  %208 = vmatprep.subr.mxu0 0.0
  %209 = vmatpush2.msra.mxu0 %v88
  %210 = vmatprep.subr.mxu0 0.0
  %211 = vmatpush2.msra.mxu0 %v87
  %212 = vmatprep.subr.mxu0 0.0
  %213 = vmatpush2.msra.mxu0 %v86
  %214 = vmatprep.subr.mxu0 0.0
  %215 = vmatpush2.msra.mxu0 %v85
  %216 = vmatprep.subr.mxu0 0.0
  %217 = vmatpush2.msra.mxu0 %v84
  %218 = vmatprep.subr.mxu0 0.0
  %219 = vmatpush2.msra.mxu0 %v83
  %220 = vmatprep.subr.mxu0 0.0
  %221 = vmatpush2.msra.mxu0 %v82
  %222 = vmatprep.mubr.f32.mxu0 %v19
  %223 = vmatmul.mubr.f32.gmra.mxu0 %v18
  %v224 = vpop.f32.mrf.mxu0
  %v225 = vadd.f32 %v107, %v224
  %v226 = vpop.f32.mrf.mxu0
  %227 = vmatprep.mubr.f32.mxu0 %v22
  %228 = vmatmul.mubr.f32.gmra.mxu0 %v21
  %v229 = vpop.f32.mrf.mxu0
  %v230 = vadd.f32 %v107, %v229
  %v231 = vpop.f32.mrf.mxu0
  %232 = vmatprep.mubr.f32.mxu0 %v25
  %233 = vmatmul.mubr.f32.gmra.mxu0 %v24
  %v234 = vpop.f32.mrf.mxu0
  %v235 = vadd.f32 %v107, %v234
  %v236 = vpop.f32.mrf.mxu0
  %237 = vmatprep.mubr.f32.mxu0 %v28
  %238 = vmatmul.mubr.f32.gmra.mxu0 %v27
  %v239 = vpop.f32.mrf.mxu0
  %v240 = vadd.f32 %v107, %v239
  %v241 = vpop.f32.mrf.mxu0
  %242 = vmatprep.mubr.f32.mxu0 %v31
  %243 = vmatmul.mubr.f32.gmra.mxu0 %v30
  %v244 = vpop.f32.mrf.mxu0
  %v245 = vadd.f32 %v107, %v244
  %v246 = vpop.f32.mrf.mxu0
  %247 = vmatprep.mubr.f32.mxu0 %v34
  %248 = vmatmul.mubr.f32.gmra.mxu0 %v33
  %v249 = vpop.f32.mrf.mxu0
  %v250 = vadd.f32 %v107, %v249
  %v251 = vpop.f32.mrf.mxu0
  %252 = vmatprep.mubr.f32.mxu0 %v37
  %253 = vmatmul.mubr.f32.gmra.mxu0 %v36
  %v254 = vpop.f32.mrf.mxu0
  %v255 = vadd.f32 %v107, %v254
  %v256 = vpop.f32.mrf.mxu0
  %257 = vmatprep.mubr.f32.mxu0 %v40
  %258 = vmatmul.mubr.f32.gmra.mxu0 %v39
  %v259 = vpop.f32.mrf.mxu0
  %v260 = vadd.f32 %v107, %v259
  %v261 = vpop.f32.mrf.mxu0
  %262 = vmatprep.mubr.f32.mxu0 %v43
  %263 = vmatmul.mubr.f32.gmra.mxu0 %v42
  %v264 = vpop.f32.mrf.mxu0
  %v265 = vadd.f32 %v107, %v264
  %v266 = vpop.f32.mrf.mxu0
  %267 = vmatprep.mubr.f32.mxu0 %v46
  %268 = vmatmul.mubr.f32.gmra.mxu0 %v45
  %v269 = vpop.f32.mrf.mxu0
  %v270 = vadd.f32 %v107, %v269
  %v271 = vpop.f32.mrf.mxu0
  %272 = vmatprep.mubr.f32.mxu0 %v49
  %273 = vmatmul.mubr.f32.gmra.mxu0 %v48
  %v274 = vpop.f32.mrf.mxu0
  %v275 = vadd.f32 %v107, %v274
  %v276 = vpop.f32.mrf.mxu0
  %277 = vmatprep.mubr.f32.mxu0 %v52
  %278 = vmatmul.mubr.f32.gmra.mxu0 %v51
  %v279 = vpop.f32.mrf.mxu0
  %v280 = vadd.f32 %v107, %v279
  %v281 = vpop.f32.mrf.mxu0
  %282 = vmatprep.mubr.f32.mxu0 %v55
  %283 = vmatmul.mubr.f32.gmra.mxu0 %v54
  %v284 = vpop.f32.mrf.mxu0
  %v285 = vadd.f32 %v107, %v284
  %v286 = vpop.f32.mrf.mxu0
  %287 = vmatprep.mubr.f32.mxu0 %v58
  %288 = vmatmul.mubr.f32.gmra.mxu0 %v57
  %v289 = vpop.f32.mrf.mxu0
  %v290 = vadd.f32 %v107, %v289
  %v291 = vpop.f32.mrf.mxu0
  %292 = vmatprep.mubr.f32.mxu0 %v61
  %293 = vmatmul.mubr.f32.gmra.mxu0 %v60
  %v294 = vpop.f32.mrf.mxu0
  %v295 = vadd.f32 %v107, %v294
  %v296 = vpop.f32.mrf.mxu0
  %297 = vmatprep.mubr.f32.mxu0 %v64
  %298 = vmatmul.mubr.f32.gmra.mxu0 %v63
  %v299 = vpop.f32.mrf.mxu0
  %v300 = vadd.f32 %v107, %v299
  %v301 = vpop.f32.mrf.mxu0
  %302 = vdwg.mxu0
  %303 = vmatprep.subr.mxu0 0.0
  %304 = vmatpush1.msra.mxu0 0.0
  %305 = vmatprep.subr.mxu0 0.0
  %306 = vmatpush1.msra.mxu0 0.0
  %307 = vmatprep.subr.mxu0 0.0
  %308 = vmatpush1.msra.mxu0 0.0
  %309 = vmatprep.subr.mxu0 0.0
  %310 = vmatpush1.msra.mxu0 0.0
  %311 = vmatprep.subr.mxu0 0.0
  %312 = vmatpush1.msra.mxu0 0.0
  %313 = vmatprep.subr.mxu0 0.0
  %314 = vmatpush1.msra.mxu0 0.0
  %315 = vmatprep.subr.mxu0 0.0
  %316 = vmatpush1.msra.mxu0 0.0
  %317 = vmatprep.subr.mxu0 0.0
  %318 = vmatpush1.msra.mxu0 0.0
  %319 = vmatprep.subr.mxu0 0.0
  %320 = vmatpush1.msra.mxu0 0.0
  %321 = vmatprep.subr.mxu0 0.0
  %322 = vmatpush1.msra.mxu0 0.0
  %323 = vmatprep.subr.mxu0 0.0
  %324 = vmatpush1.msra.mxu0 0.0
  %325 = vmatprep.subr.mxu0 0.0
  %326 = vmatpush1.msra.mxu0 0.0
  %327 = vmatprep.subr.mxu0 0.0
  %328 = vmatpush1.msra.mxu0 %v101
  %329 = vmatprep.subr.mxu0 0.0
  %330 = vmatpush1.msra.mxu0 %v100
  %331 = vmatprep.subr.mxu0 0.0
  %332 = vmatpush1.msra.mxu0 %v99
  %333 = vmatprep.subr.mxu0 0.0
  %334 = vmatpush1.msra.mxu0 %v98
  %335 = vmatprep.subr.mxu0 0.0
  %336 = vmatpush2.msra.mxu0 0.0
  %337 = vmatprep.subr.mxu0 0.0
  %338 = vmatpush2.msra.mxu0 0.0
  %339 = vmatprep.subr.mxu0 0.0
  %340 = vmatpush2.msra.mxu0 0.0
  %341 = vmatprep.subr.mxu0 0.0
  %342 = vmatpush2.msra.mxu0 0.0
  %343 = vmatprep.subr.mxu0 0.0
  %344 = vmatpush2.msra.mxu0 0.0
  %345 = vmatprep.subr.mxu0 0.0
  %346 = vmatpush2.msra.mxu0 0.0
  %347 = vmatprep.subr.mxu0 0.0
  %348 = vmatpush2.msra.mxu0 0.0
  %349 = vmatprep.subr.mxu0 0.0
  %350 = vmatpush2.msra.mxu0 0.0
  %351 = vmatprep.subr.mxu0 0.0
  %352 = vmatpush2.msra.mxu0 0.0
  %353 = vmatprep.subr.mxu0 0.0
  %354 = vmatpush2.msra.mxu0 0.0
  %355 = vmatprep.subr.mxu0 0.0
  %356 = vmatpush2.msra.mxu0 0.0
  %357 = vmatprep.subr.mxu0 0.0
  %358 = vmatpush2.msra.mxu0 0.0
  %359 = vmatprep.subr.mxu0 0.0
  %360 = vmatpush2.msra.mxu0 0.0
  %361 = vmatprep.subr.mxu0 0.0
  %362 = vmatpush2.msra.mxu0 0.0
  %363 = vmatprep.subr.mxu0 0.0
  %364 = vmatpush2.msra.mxu0 0.0
  %365 = vmatprep.subr.mxu0 0.0
  %366 = vmatpush2.msra.mxu0 0.0
  %367 = vmatprep.mubr.f32.mxu0 0.0
  %368 = vmatmul.mubr.f32.gmra.mxu0 %v111
  %v369 = vpop.f32.mrf.mxu0
  %v370 = vadd.f32 %v225, %v369
  %v371 = vpop.f32.mrf.mxu0
  %372 = vmatprep.mubr.f32.mxu0 0.0
  %373 = vmatmul.mubr.f32.gmra.mxu0 %v114
  %v374 = vpop.f32.mrf.mxu0
  %v375 = vadd.f32 %v230, %v374
  %v376 = vpop.f32.mrf.mxu0
  %377 = vmatprep.mubr.f32.mxu0 0.0
  %378 = vmatmul.mubr.f32.gmra.mxu0 %v117
  %v379 = vpop.f32.mrf.mxu0
  %v380 = vadd.f32 %v235, %v379
  %v381 = vpop.f32.mrf.mxu0
  %382 = vmatprep.mubr.f32.mxu0 0.0
  %383 = vmatmul.mubr.f32.gmra.mxu0 %v120
  %v384 = vpop.f32.mrf.mxu0
  %v385 = vadd.f32 %v240, %v384
  %v386 = vpop.f32.mrf.mxu0
  %387 = vmatprep.mubr.f32.mxu0 0.0
  %388 = vmatmul.mubr.f32.gmra.mxu0 %v123
  %v389 = vpop.f32.mrf.mxu0
  %v390 = vadd.f32 %v245, %v389
  %v391 = vpop.f32.mrf.mxu0
  %392 = vmatprep.mubr.f32.mxu0 0.0
  %393 = vmatmul.mubr.f32.gmra.mxu0 %v126
  %v394 = vpop.f32.mrf.mxu0
  %v395 = vadd.f32 %v250, %v394
  %v396 = vpop.f32.mrf.mxu0
  %397 = vmatprep.mubr.f32.mxu0 0.0
  %398 = vmatmul.mubr.f32.gmra.mxu0 %v129
  %v399 = vpop.f32.mrf.mxu0
  %v400 = vadd.f32 %v255, %v399
  %v401 = vpop.f32.mrf.mxu0
  %402 = vmatprep.mubr.f32.mxu0 0.0
  %403 = vmatmul.mubr.f32.gmra.mxu0 %v132
  %v404 = vpop.f32.mrf.mxu0
  %v405 = vadd.f32 %v260, %v404
  %v406 = vpop.f32.mrf.mxu0
  %407 = vmatprep.mubr.f32.mxu0 0.0
  %408 = vmatmul.mubr.f32.gmra.mxu0 %v135
  %v409 = vpop.f32.mrf.mxu0
  %v410 = vadd.f32 %v265, %v409
  %v411 = vpop.f32.mrf.mxu0
  %412 = vmatprep.mubr.f32.mxu0 0.0
  %413 = vmatmul.mubr.f32.gmra.mxu0 %v138
  %v414 = vpop.f32.mrf.mxu0
  %v415 = vadd.f32 %v270, %v414
  %v416 = vpop.f32.mrf.mxu0
  %417 = vmatprep.mubr.f32.mxu0 0.0
  %418 = vmatmul.mubr.f32.gmra.mxu0 %v141
  %v419 = vpop.f32.mrf.mxu0
  %v420 = vadd.f32 %v275, %v419
  %v421 = vpop.f32.mrf.mxu0
  %422 = vmatprep.mubr.f32.mxu0 0.0
  %423 = vmatmul.mubr.f32.gmra.mxu0 %v144
  %v424 = vpop.f32.mrf.mxu0
  %v425 = vadd.f32 %v280, %v424
  %v426 = vpop.f32.mrf.mxu0
  %427 = vmatprep.mubr.f32.mxu0 0.0
  %428 = vmatmul.mubr.f32.gmra.mxu0 %v147
  %v429 = vpop.f32.mrf.mxu0
  %v430 = vadd.f32 %v285, %v429
  %v431 = vpop.f32.mrf.mxu0
  %432 = vmatprep.mubr.f32.mxu0 0.0
  %433 = vmatmul.mubr.f32.gmra.mxu0 %v150
  %v434 = vpop.f32.mrf.mxu0
  %v435 = vadd.f32 %v290, %v434
  %v436 = vpop.f32.mrf.mxu0
  %437 = vmatprep.mubr.f32.mxu0 0.0
  %438 = vmatmul.mubr.f32.gmra.mxu0 %v153
  %v439 = vpop.f32.mrf.mxu0
  %v440 = vadd.f32 %v295, %v439
  %v441 = vpop.f32.mrf.mxu0
  %442 = vmatprep.mubr.f32.mxu0 0.0
  %443 = vmatmul.mubr.f32.gmra.mxu0 %v156
  %v444 = vpop.f32.mrf.mxu0
  %v445 = vadd.f32 %v300, %v444
  %v446 = vpop.f32.mrf.mxu0
  %447 = vdwg.mxu0
  %s448 = sld [smem:[#allocation2]]
  %vm449 = vcmp.gt.f32.partialorder %v370, 0.0
  %vm450 = vcmp.gt.f32.partialorder %v375, 0.0
  %vm451 = vcmp.gt.f32.partialorder %v380, 0.0
  %vm452 = vcmp.gt.f32.partialorder %v385, 0.0
  %vm453 = vcmp.gt.f32.partialorder %v390, 0.0
  %vm454 = vcmp.gt.f32.partialorder %v395, 0.0
  %vm455 = vcmp.gt.f32.partialorder %v400, 0.0
  %vm456 = vcmp.gt.f32.partialorder %v405, 0.0
  %vm457 = vcmp.gt.f32.partialorder %v410, 0.0
  %vm458 = vcmp.gt.f32.partialorder %v415, 0.0
  %vm459 = vcmp.gt.f32.partialorder %v420, 0.0
  %vm460 = vcmp.gt.f32.partialorder %v425, 0.0
  %vm461 = vcmp.gt.f32.partialorder %v430, 0.0
  %vm462 = vcmp.gt.f32.partialorder %v435, 0.0
  %vm463 = vcmp.gt.f32.partialorder %v440, 0.0
  %vm464 = vcmp.gt.f32.partialorder %v445, 0.0
  %v465 = vstv %s448
  %v466 = vmul.f32 %v370, %v465
  %v467 = vmul.f32 %v375, %v465
  %v468 = vmul.f32 %v380, %v465
  %v469 = vmul.f32 %v385, %v465
  %v470 = vmul.f32 %v390, %v465
  %v471 = vmul.f32 %v395, %v465
  %v472 = vmul.f32 %v400, %v465
  %v473 = vmul.f32 %v405, %v465
  %v474 = vmul.f32 %v410, %v465
  %v475 = vmul.f32 %v415, %v465
  %v476 = vmul.f32 %v420, %v465
  %v477 = vmul.f32 %v425, %v465
  %v478 = vmul.f32 %v430, %v465
  %v479 = vmul.f32 %v435, %v465
  %v480 = vmul.f32 %v440, %v465
  %v481 = vmul.f32 %v445, %v465
  %v482 = vsel %vm449, %v370, %v466
  %v483 = vsel %vm450, %v375, %v467
  %v484 = vsel %vm451, %v380, %v468
  %v485 = vsel %vm452, %v385, %v469
  %v486 = vsel %vm453, %v390, %v470
  %v487 = vsel %vm454, %v395, %v471
  %v488 = vsel %vm455, %v400, %v472
  %v489 = vsel %vm456, %v405, %v473
  %v490 = vsel %vm457, %v410, %v474
  %v491 = vsel %vm458, %v415, %v475
  %v492 = vsel %vm459, %v420, %v476
  %v493 = vsel %vm460, %v425, %v477
  %v494 = vsel %vm461, %v430, %v478
  %v495 = vsel %vm462, %v435, %v479
  %v496 = vsel %vm463, %v440, %v480
  %v497 = vsel %vm464, %v445, %v481
  %vm498 = vcmask 523264
  %499 = vst.msk [vmem:[%s4] sm:$0xff] %vm498, %v482
  %500 = vst.msk [vmem:[%s4 + $0x8] sm:$0xff] %vm498, %v483
  %501 = vst.msk [vmem:[%s4 + $0x10] sm:$0xff] %vm498, %v484
  %502 = vst.msk [vmem:[%s4 + $0x18] sm:$0xff] %vm498, %v485
  %503 = vst.msk [vmem:[%s4 + $0x20] sm:$0xff] %vm498, %v486
  %504 = vst.msk [vmem:[%s4 + $0x28] sm:$0xff] %vm498, %v487
  %505 = vst.msk [vmem:[%s4 + $0x30] sm:$0xff] %vm498, %v488
  %506 = vst.msk [vmem:[%s4 + $0x38] sm:$0xff] %vm498, %v489
  %507 = vst.msk [vmem:[%s4 + $0x40] sm:$0xff] %vm498, %v490
  %508 = vst.msk [vmem:[%s4 + $0x48] sm:$0xff] %vm498, %v491
  %509 = vst.msk [vmem:[%s4 + $0x50] sm:$0xff] %vm498, %v492
  %510 = vst.msk [vmem:[%s4 + $0x58] sm:$0xff] %vm498, %v493
  %511 = vst.msk [vmem:[%s4 + $0x60] sm:$0xff] %vm498, %v494
  %512 = vst.msk [vmem:[%s4 + $0x68] sm:$0xff] %vm498, %v495
  %513 = vst.msk [vmem:[%s4 + $0x70] sm:$0xff] %vm498, %v496
  %514 = vst.msk [vmem:[%s4 + $0x78] sm:$0xff] %vm498, %v497
  // Predicated region
  $region18: #{rnet_forward.7} parent=0 // pred_check
    _
  $region19: #{rnet_forward.7} parent=0 // pred_check_branch
    %516 = sbr.rel (0) target = $region21
  $region20: #{rnet_forward.7} parent=0 // pred_region
    _
  $region21: #{rnet_forward.7} parent=0 // pred_fallthru
    _
  // Predicated region
  $region22: #{rnet_forward.7} parent=0 // pred_check
    _
  $region23: #{rnet_forward.7} parent=0 // pred_check_branch
    %518 = sbr.rel (0) target = $region25
  $region24: #{rnet_forward.7} parent=0 // pred_region
    _
  $region25: #{rnet_forward.7} parent=0 // pred_fallthru
    _

// kernel: rnet_forward.8
$region0: #{rnet_forward.8}
  #allocation0 [shape = 'u32[]', space=smem, size = 0x4, offset = 0x4, fixed_abs, tag = 'smem constant byte address 0x4 - core index']
  #allocation1 [shape = 'u32[144,128]{1,0:T(1,128)}', space=vmem, size = 0x12000, scoped, tag = 'internal scratch']
  %s0 = inlined_call_operand.vmem [shape: f32[9,24,64], index: 0, kind: input, shape index: {}]
  %s1 = inlined_call_operand.vmem [shape: f32[24,64], index: 1, kind: output, shape index: {}]
  %s2 = sld [smem:[#allocation0]]
  $region14: #{rnet_forward.8} parent=0
    _
  %s4 = ssub.s32 1, %s2
  %s5 = scalar_select 0, %s4, %s2
  // Predicated region
  $region2: #{rnet_forward.8} parent=0 // pred_check
    _
  $region3: #{rnet_forward.8} parent=0 // pred_check_branch
    %7 = sbr.rel (0) target = $region5
  $region4: #{rnet_forward.8} parent=0 // pred_region
    _
  $region5: #{rnet_forward.8} parent=0 // pred_fallthru
    _
  %v8 = vld [vmem:[%s0] sm:$0xff]
  %v9 = vld [vmem:[%s0 + $0x8] sm:$0xff]
  %v10 = vld [vmem:[%s0 + $0x10] sm:$0xff]
  %v11 = vld [vmem:[%s0 + $0x18] sm:$0xff]
  %v12 = vld [vmem:[%s0 + $0x20] sm:$0xff]
  %v13 = vld [vmem:[%s0 + $0x28] sm:$0xff]
  %v14 = vld [vmem:[%s0 + $0x30] sm:$0xff]
  %v15 = vld [vmem:[%s0 + $0x38] sm:$0xff]
  %v16 = vld [vmem:[%s0 + $0x40] sm:$0xff]
  %v17 = vld [vmem:[%s0 + $0x48] sm:$0xff]
  %v18 = vld [vmem:[%s0 + $0x50] sm:$0xff]
  %v19 = vld [vmem:[%s0 + $0x58] sm:$0xff]
  %v20 = vld [vmem:[%s0 + $0x60] sm:$0xff]
  %v21 = vld [vmem:[%s0 + $0x68] sm:$0xff]
  %v22 = vld [vmem:[%s0 + $0x70] sm:$0xff]
  %v23 = vld [vmem:[%s0 + $0x78] sm:$0xff]
  %v24 = vld [vmem:[%s0 + $0x80] sm:$0xff]
  %v25 = vld [vmem:[%s0 + $0x88] sm:$0xff]
  %v26 = vld [vmem:[%s0 + $0x90] sm:$0xff]
  %v27 = vld [vmem:[%s0 + $0x98] sm:$0xff]
  %v28 = vld [vmem:[%s0 + $0xa0] sm:$0xff]
  %v29 = vld [vmem:[%s0 + $0xa8] sm:$0xff]
  %v30 = vld [vmem:[%s0 + $0xb0] sm:$0xff]
  %v31 = vld [vmem:[%s0 + $0xb8] sm:$0xff]
  %v32 = vld [vmem:[%s0 + $0xc0] sm:$0xff]
  %v33 = vld [vmem:[%s0 + $0xc8] sm:$0xff]
  %v34 = vld [vmem:[%s0 + $0xd0] sm:$0xff]
  %v35 = vmax.f32 %v8, %v11
  %v36 = vmax.f32 %v9, %v12
  %v37 = vmax.f32 %v10, %v13
  %v38 = vmax.f32 %v35, %v14
  %v39 = vmax.f32 %v36, %v15
  %v40 = vmax.f32 %v37, %v16
  %v41 = vmax.f32 %v38, %v17
  %v42 = vmax.f32 %v39, %v18
  %v43 = vmax.f32 %v40, %v19
  %v44 = vmax.f32 %v41, %v20
  %v45 = vmax.f32 %v42, %v21
  %v46 = vmax.f32 %v43, %v22
  %v47 = vmax.f32 %v44, %v23
  %v48 = vmax.f32 %v45, %v24
  %v49 = vmax.f32 %v46, %v25
  %v50 = vmax.f32 %v47, %v26
  %v51 = vmax.f32 %v48, %v27
  %v52 = vmax.f32 %v49, %v28
  %v53 = vmax.f32 %v50, %v29
  %v54 = vmax.f32 %v51, %v30
  %v55 = vmax.f32 %v52, %v31
  %v56 = vmax.f32 %v53, %v32
  %v57 = vmax.f32 %v54, %v33
  %v58 = vmax.f32 %v55, %v34
  %vm59 = vcmask 523264
  %60 = vst.msk [vmem:[%s1] sm:$0xff] %vm59, %v56
  %61 = vst.msk [vmem:[%s1 + $0x8] sm:$0xff] %vm59, %v57
  %62 = vst.msk [vmem:[%s1 + $0x10] sm:$0xff] %vm59, %v58
  // Predicated region
  $region6: #{rnet_forward.8} parent=0 // pred_check
    _
  $region7: #{rnet_forward.8} parent=0 // pred_check_branch
    %64 = sbr.rel (0) target = $region9
  $region8: #{rnet_forward.8} parent=0 // pred_region
    _
  $region9: #{rnet_forward.8} parent=0 // pred_fallthru
    _
  // Predicated region
  $region10: #{rnet_forward.8} parent=0 // pred_check
    _
  $region11: #{rnet_forward.8} parent=0 // pred_check_branch
    %66 = sbr.rel (0) target = $region13
  $region12: #{rnet_forward.8} parent=0 // pred_region
    _
  $region13: #{rnet_forward.8} parent=0 // pred_fallthru
    _

// kernel: rnet_forward.9
$region0: #{rnet_forward.9}
  #allocation0 [shape = 'u32[]', space=smem, size = 0x4, offset = 0x4, fixed_abs, tag = 'smem constant byte address 0x4 - core index']
  #allocation1 [shape = 'u32[144,128]{1,0:T(1,128)}', space=vmem, size = 0x12000, scoped, tag = 'internal scratch']
  #allocation2 [shape = 'f32[1]{0:T(128)S(6)}', space=smem, size = 0x200, scoped, tag = 'scoped memory for rnet_forward.9']
  #allocation3 [shape = 'f32[1]{0:T(128)S(6)}', space=smem, size = 0x200, scoped, tag = 'scoped memory for rnet_forward.9']
  %s0 = inlined_call_operand.vmem [shape: f32[8,576], index: 0, kind: input, shape index: {}]
  %s1 = inlined_call_operand.vmem [shape: f32[576,256], index: 1, kind: input, shape index: {}]
  %s2 = inlined_call_operand.vmem [shape: f32[1,256], index: 2, kind: input, shape index: {}]
  %s3 = inlined_call_operand.<no memory space> [shape: f32[1], index: 3, kind: input, shape index: {}]
  %s4 = inlined_call_operand.vmem [shape: f32[256,128], index: 4, kind: input, shape index: {}]
  %s5 = inlined_call_operand.vmem [shape: f32[1,128], index: 5, kind: input, shape index: {}]
  %s6 = inlined_call_operand.<no memory space> [shape: f32[1], index: 6, kind: input, shape index: {}]
  %s7 = inlined_call_operand.vmem [shape: f32[128,15], index: 7, kind: input, shape index: {}]
  %s8 = inlined_call_operand.vmem [shape: f32[1,15], index: 8, kind: input, shape index: {}]
  %s9 = inlined_call_operand.vmem [shape: f32[8,15], index: 9, kind: output, shape index: {}]
  %s10 = sld [smem:[#allocation0]]
  $region46: #{rnet_forward.9} parent=0
    _
  %s12 = ssub.s32 1, %s10
  %s13 = scalar_select 0, %s12, %s10
  %14 = sst [smem:[#allocation2]] %s3
  %15 = sst [smem:[#allocation3]] %s6
  // Predicated region
  $region2: #{rnet_forward.9} parent=0 // pred_check
    _
  $region3: #{rnet_forward.9} parent=0 // pred_check_branch
    %17 = sbr.rel (0) target = $region5
  $region4: #{rnet_forward.9} parent=0 // pred_region
    _
  $region5: #{rnet_forward.9} parent=0 // pred_fallthru
    _
  // Predicated region
  $region6: #{rnet_forward.9} parent=0 // pred_check
    _
  $region7: #{rnet_forward.9} parent=0 // pred_check_branch
    %19 = sbr.rel (0) target = $region9
  $region8: #{rnet_forward.9} parent=0 // pred_region
    _
  $region9: #{rnet_forward.9} parent=0 // pred_fallthru
    _
  // Predicated region
  $region10: #{rnet_forward.9} parent=0 // pred_check
    _
  $region11: #{rnet_forward.9} parent=0 // pred_check_branch
    %21 = sbr.rel (0) target = $region13
  $region12: #{rnet_forward.9} parent=0 // pred_region
    _
  $region13: #{rnet_forward.9} parent=0 // pred_fallthru
    _
  // Predicated region
  $region14: #{rnet_forward.9} parent=0 // pred_check
    _
  $region15: #{rnet_forward.9} parent=0 // pred_check_branch
    %23 = sbr.rel (0) target = $region17
  $region16: #{rnet_forward.9} parent=0 // pred_region
    _
  $region17: #{rnet_forward.9} parent=0 // pred_fallthru
    _
  // Predicated region
  $region18: #{rnet_forward.9} parent=0 // pred_check
    _
  $region19: #{rnet_forward.9} parent=0 // pred_check_branch
    %25 = sbr.rel (0) target = $region21
  $region20: #{rnet_forward.9} parent=0 // pred_region
    _
  $region21: #{rnet_forward.9} parent=0 // pred_fallthru
    _
  // Predicated region
  $region22: #{rnet_forward.9} parent=0 // pred_check
    _
  $region23: #{rnet_forward.9} parent=0 // pred_check_branch
    %27 = sbr.rel (0) target = $region25
  $region24: #{rnet_forward.9} parent=0 // pred_region
    _
  $region25: #{rnet_forward.9} parent=0 // pred_fallthru
    _
  // Predicated region
  $region26: #{rnet_forward.9} parent=0 // pred_check
    _
  $region27: #{rnet_forward.9} parent=0 // pred_check_branch
    %29 = sbr.rel (0) target = $region29
  $region28: #{rnet_forward.9} parent=0 // pred_region
    _
  $region29: #{rnet_forward.9} parent=0 // pred_fallthru
    _
  // Predicated region
  $region30: #{rnet_forward.9} parent=0 // pred_check
    _
  $region31: #{rnet_forward.9} parent=0 // pred_check_branch
    %31 = sbr.rel (0) target = $region33
  $region32: #{rnet_forward.9} parent=0 // pred_region
    _
  $region33: #{rnet_forward.9} parent=0 // pred_fallthru
    _
  // Predicated region
  $region34: #{rnet_forward.9} parent=0 // pred_check
    _
  $region35: #{rnet_forward.9} parent=0 // pred_check_branch
    %33 = sbr.rel (0) target = $region37
  $region36: #{rnet_forward.9} parent=0 // pred_region
    _
  $region37: #{rnet_forward.9} parent=0 // pred_fallthru
    _
  %v34 = vld [vmem:[%s0] sm:$0xff]
  %v35 = vld [vmem:[%s0 + $0x8] sm:$0xff]
  %v36 = vld [vmem:[%s0 + $0x10] sm:$0xff]
  %v37 = vld [vmem:[%s0 + $0x18] sm:$0xff]
  %v38 = vld [vmem:[%s0 + $0x20] sm:$0xff]
  %v39 = vld [vmem:[%s1] sm:$0xff]
  %v40 = vld [vmem:[%s1 + $0x8] sm:$0xff]
  %v41 = vld [vmem:[%s1 + $0x10] sm:$0xff]
  %v42 = vld [vmem:[%s1 + $0x18] sm:$0xff]
  %v43 = vld [vmem:[%s1 + $0x20] sm:$0xff]
  %v44 = vld [vmem:[%s1 + $0x28] sm:$0xff]
  %v45 = vld [vmem:[%s1 + $0x30] sm:$0xff]
  %v46 = vld [vmem:[%s1 + $0x38] sm:$0xff]
  %v47 = vld [vmem:[%s1 + $0x40] sm:$0xff]
  %v48 = vld [vmem:[%s1 + $0x48] sm:$0xff]
  %v49 = vld [vmem:[%s1 + $0x50] sm:$0xff]
  %v50 = vld [vmem:[%s1 + $0x58] sm:$0xff]
  %v51 = vld [vmem:[%s1 + $0x60] sm:$0xff]
  %v52 = vld [vmem:[%s1 + $0x68] sm:$0xff]
  %v53 = vld [vmem:[%s1 + $0x70] sm:$0xff]
  %v54 = vld [vmem:[%s1 + $0x78] sm:$0xff]
  %v55 = vld [vmem:[%s1 + $0x80] sm:$0xff]
  %v56 = vld [vmem:[%s1 + $0x88] sm:$0xff]
  %v57 = vld [vmem:[%s1 + $0x90] sm:$0xff]
  %v58 = vld [vmem:[%s1 + $0x98] sm:$0xff]
  %v59 = vld [vmem:[%s1 + $0xa0] sm:$0xff]
  %v60 = vld [vmem:[%s1 + $0xa8] sm:$0xff]
  %v61 = vld [vmem:[%s1 + $0xb0] sm:$0xff]
  %v62 = vld [vmem:[%s1 + $0xb8] sm:$0xff]
  %v63 = vld [vmem:[%s1 + $0xc0] sm:$0xff]
  %v64 = vld [vmem:[%s1 + $0xc8] sm:$0xff]
  %v65 = vld [vmem:[%s1 + $0xd0] sm:$0xff]
  %v66 = vld [vmem:[%s1 + $0xd8] sm:$0xff]
  %v67 = vld [vmem:[%s1 + $0xe0] sm:$0xff]
  %v68 = vld [vmem:[%s1 + $0xe8] sm:$0xff]
  %v69 = vld [vmem:[%s1 + $0xf0] sm:$0xff]
  %v70 = vld [vmem:[%s1 + $0xf8] sm:$0xff]
  %v71 = vld [vmem:[%s1 + $0x100] sm:$0xff]
  %v72 = vld [vmem:[%s1 + $0x108] sm:$0xff]
  %v73 = vld [vmem:[%s1 + $0x110] sm:$0xff]
  %v74 = vld [vmem:[%s1 + $0x118] sm:$0xff]
  %v75 = vld [vmem:[%s1 + $0x120] sm:$0xff]
  %v76 = vld [vmem:[%s1 + $0x128] sm:$0xff]
  %v77 = vld [vmem:[%s1 + $0x130] sm:$0xff]
  %v78 = vld [vmem:[%s1 + $0x138] sm:$0xff]
  %v79 = vld [vmem:[%s1 + $0x140] sm:$0xff]
  %v80 = vld [vmem:[%s1 + $0x148] sm:$0xff]
  %v81 = vld [vmem:[%s1 + $0x150] sm:$0xff]
  %v82 = vld [vmem:[%s1 + $0x158] sm:$0xff]
  %v83 = vld [vmem:[%s1 + $0x160] sm:$0xff]
  %v84 = vld [vmem:[%s1 + $0x168] sm:$0xff]
  %v85 = vld [vmem:[%s1 + $0x170] sm:$0xff]
  %v86 = vld [vmem:[%s1 + $0x178] sm:$0xff]
  %v87 = vld [vmem:[%s1 + $0x180] sm:$0xff]
  %v88 = vld [vmem:[%s1 + $0x188] sm:$0xff]
  %v89 = vld [vmem:[%s1 + $0x190] sm:$0xff]
  %v90 = vld [vmem:[%s1 + $0x198] sm:$0xff]
  %v91 = vld [vmem:[%s1 + $0x1a0] sm:$0xff]
  %v92 = vld [vmem:[%s1 + $0x1a8] sm:$0xff]
  %v93 = vld [vmem:[%s1 + $0x1b0] sm:$0xff]
  %v94 = vld [vmem:[%s1 + $0x1b8] sm:$0xff]
  %v95 = vld [vmem:[%s1 + $0x1c0] sm:$0xff]
  %v96 = vld [vmem:[%s1 + $0x1c8] sm:$0xff]
  %v97 = vld [vmem:[%s1 + $0x1d0] sm:$0xff]
  %v98 = vld [vmem:[%s1 + $0x1d8] sm:$0xff]
  %v99 = vld [vmem:[%s1 + $0x1e0] sm:$0xff]
  %v100 = vld [vmem:[%s1 + $0x1e8] sm:$0xff]
  %v101 = vld [vmem:[%s1 + $0x1f0] sm:$0xff]
  %v102 = vld [vmem:[%s1 + $0x1f8] sm:$0xff]
  %v103 = vld [vmem:[%s1 + $0x200] sm:$0xff]
  %v104 = vld [vmem:[%s1 + $0x208] sm:$0xff]
  %v105 = vld [vmem:[%s1 + $0x210] sm:$0xff]
  %v106 = vld [vmem:[%s1 + $0x218] sm:$0xff]
  %v107 = vld [vmem:[%s1 + $0x220] sm:$0xff]
  %v108 = vld [vmem:[%s1 + $0x228] sm:$0xff]
  %v109 = vld [vmem:[%s1 + $0x230] sm:$0xff]
  %v110 = vld [vmem:[%s1 + $0x238] sm:$0xff]
  %v111 = vld [vmem:[%s1 + $0x240] sm:$0xff]
  %v112 = vld [vmem:[%s1 + $0x248] sm:$0xff]
  %v113 = vld [vmem:[%s1 + $0x250] sm:$0xff]
  %v114 = vld [vmem:[%s1 + $0x258] sm:$0xff]
  %v115 = vld [vmem:[%s1 + $0x260] sm:$0xff]
  %v116 = vld [vmem:[%s1 + $0x268] sm:$0xff]
  %v117 = vld [vmem:[%s1 + $0x270] sm:$0xff]
  %v118 = vld [vmem:[%s1 + $0x278] sm:$0xff]
  %v119 = vld [vmem:[%s1 + $0x280] sm:$0xff]
  %v120 = vld [vmem:[%s1 + $0x288] sm:$0xff]
  %v121 = vld [vmem:[%s1 + $0x290] sm:$0xff]
  %v122 = vld [vmem:[%s1 + $0x298] sm:$0xff]
  %v123 = vld [vmem:[%s1 + $0x2a0] sm:$0xff]
  %v124 = vld [vmem:[%s1 + $0x2a8] sm:$0xff]
  %v125 = vld [vmem:[%s1 + $0x2b0] sm:$0xff]
  %v126 = vld [vmem:[%s1 + $0x2b8] sm:$0xff]
  %v127 = vld [vmem:[%s1 + $0x2c0] sm:$0xff]
  %v128 = vld [vmem:[%s1 + $0x2c8] sm:$0xff]
  %v129 = vld [vmem:[%s1 + $0x2d0] sm:$0xff]
  %v130 = vld [vmem:[%s1 + $0x2d8] sm:$0xff]
  %v131 = vld [vmem:[%s1 + $0x2e0] sm:$0xff]
  %v132 = vld [vmem:[%s1 + $0x2e8] sm:$0xff]
  %v133 = vld [vmem:[%s1 + $0x2f0] sm:$0xff]
  %v134 = vld [vmem:[%s1 + $0x2f8] sm:$0xff]
  %v135 = vld [vmem:[%s1 + $0x300] sm:$0xff]
  %v136 = vld [vmem:[%s1 + $0x308] sm:$0xff]
  %v137 = vld [vmem:[%s1 + $0x310] sm:$0xff]
  %v138 = vld [vmem:[%s1 + $0x318] sm:$0xff]
  %v139 = vld [vmem:[%s1 + $0x320] sm:$0xff]
  %v140 = vld [vmem:[%s1 + $0x328] sm:$0xff]
  %v141 = vld [vmem:[%s1 + $0x330] sm:$0xff]
  %v142 = vld [vmem:[%s1 + $0x338] sm:$0xff]
  %v143 = vld [vmem:[%s1 + $0x340] sm:$0xff]
  %v144 = vld [vmem:[%s1 + $0x348] sm:$0xff]
  %v145 = vld [vmem:[%s1 + $0x350] sm:$0xff]
  %v146 = vld [vmem:[%s1 + $0x358] sm:$0xff]
  %v147 = vld [vmem:[%s1 + $0x360] sm:$0xff]
  %v148 = vld [vmem:[%s1 + $0x368] sm:$0xff]
  %v149 = vld [vmem:[%s1 + $0x370] sm:$0xff]
  %v150 = vld [vmem:[%s1 + $0x378] sm:$0xff]
  %v151 = vld [vmem:[%s1 + $0x380] sm:$0xff]
  %v152 = vld [vmem:[%s1 + $0x388] sm:$0xff]
  %v153 = vld [vmem:[%s1 + $0x390] sm:$0xff]
  %v154 = vld [vmem:[%s1 + $0x398] sm:$0xff]
  %v155 = vld [vmem:[%s1 + $0x3a0] sm:$0xff]
  %v156 = vld [vmem:[%s1 + $0x3a8] sm:$0xff]
  %v157 = vld [vmem:[%s1 + $0x3b0] sm:$0xff]
  %v158 = vld [vmem:[%s1 + $0x3b8] sm:$0xff]
  %v159 = vld [vmem:[%s1 + $0x3c0] sm:$0xff]
  %v160 = vld [vmem:[%s1 + $0x3c8] sm:$0xff]
  %v161 = vld [vmem:[%s1 + $0x3d0] sm:$0xff]
  %v162 = vld [vmem:[%s1 + $0x3d8] sm:$0xff]
  %v163 = vld [vmem:[%s1 + $0x3e0] sm:$0xff]
  %v164 = vld [vmem:[%s1 + $0x3e8] sm:$0xff]
  %v165 = vld [vmem:[%s1 + $0x3f0] sm:$0xff]
  %v166 = vld [vmem:[%s1 + $0x3f8] sm:$0xff]
  %v167 = vld [vmem:[%s1 + $0x400] sm:$0xff]
  %v168 = vld [vmem:[%s1 + $0x408] sm:$0xff]
  %v169 = vld [vmem:[%s1 + $0x410] sm:$0xff]
  %v170 = vld [vmem:[%s1 + $0x418] sm:$0xff]
  %v171 = vld [vmem:[%s1 + $0x420] sm:$0xff]
  %v172 = vld [vmem:[%s1 + $0x428] sm:$0xff]
  %v173 = vld [vmem:[%s1 + $0x430] sm:$0xff]
  %v174 = vld [vmem:[%s1 + $0x438] sm:$0xff]
  %v175 = vld [vmem:[%s1 + $0x440] sm:$0xff]
  %v176 = vld [vmem:[%s1 + $0x448] sm:$0xff]
  %v177 = vld [vmem:[%s1 + $0x450] sm:$0xff]
  %v178 = vld [vmem:[%s1 + $0x458] sm:$0xff]
  %v179 = vld [vmem:[%s1 + $0x460] sm:$0xff]
  %v180 = vld [vmem:[%s1 + $0x468] sm:$0xff]
  %v181 = vld [vmem:[%s1 + $0x470] sm:$0xff]
  %v182 = vld [vmem:[%s1 + $0x478] sm:$0xff]
  %v183 = vld [vmem:[%s2] sm:$0x3]
  %v185 = vlaneseq
  %v186 = vshrl.u32 %v185, 7
  %v187 = vsub.s32 0, %v186
  %v188 = vrot.slane %v183, %v187
  %v189 = vlaneseq
  %v190 = vshrl.u32 %v189, 7
  %v191 = vsub.s32 1, %v190
  %v192 = vrot.slane %v183, %v191
  %vm195 = vcmask 523264
  %v197 = vsel %vm195, %v38, 0
  %199 = vmatprep.subr.mxu0 %v70
  %200 = vmatpush1.msra.mxu0 %v69
  %201 = vmatprep.subr.mxu0 %v68
  %202 = vmatpush1.msra.mxu0 %v67
  %203 = vmatprep.subr.mxu0 %v66
  %204 = vmatpush1.msra.mxu0 %v65
  %205 = vmatprep.subr.mxu0 %v64
  %206 = vmatpush1.msra.mxu0 %v63
  %207 = vmatprep.subr.mxu0 %v62
  %208 = vmatpush1.msra.mxu0 %v61
  %209 = vmatprep.subr.mxu0 %v60
  %210 = vmatpush1.msra.mxu0 %v59
  %211 = vmatprep.subr.mxu0 %v58
  %212 = vmatpush1.msra.mxu0 %v57
  %213 = vmatprep.subr.mxu0 %v56
  %214 = vmatpush1.msra.mxu0 %v55
  %215 = vmatprep.subr.mxu0 %v54
  %216 = vmatpush1.msra.mxu0 %v53
  %217 = vmatprep.subr.mxu0 %v52
  %218 = vmatpush1.msra.mxu0 %v51
  %219 = vmatprep.subr.mxu0 %v50
  %220 = vmatpush1.msra.mxu0 %v49
  %221 = vmatprep.subr.mxu0 %v48
  %222 = vmatpush1.msra.mxu0 %v47
  %223 = vmatprep.subr.mxu0 %v46
  %224 = vmatpush1.msra.mxu0 %v45
  %225 = vmatprep.subr.mxu0 %v44
  %226 = vmatpush1.msra.mxu0 %v43
  %227 = vmatprep.subr.mxu0 %v42
  %228 = vmatpush1.msra.mxu0 %v41
  %229 = vmatprep.subr.mxu0 %v40
  %230 = vmatpush1.msra.mxu0 %v39
  %231 = vmatprep.subr.mxu0 %v102
  %232 = vmatpush2.msra.mxu0 %v101
  %233 = vmatprep.subr.mxu0 %v100
  %234 = vmatpush2.msra.mxu0 %v99
  %235 = vmatprep.subr.mxu0 %v98
  %236 = vmatpush2.msra.mxu0 %v97
  %237 = vmatprep.subr.mxu0 %v96
  %238 = vmatpush2.msra.mxu0 %v95
  %239 = vmatprep.subr.mxu0 %v94
  %240 = vmatpush2.msra.mxu0 %v93
  %241 = vmatprep.subr.mxu0 %v92
  %242 = vmatpush2.msra.mxu0 %v91
  %243 = vmatprep.subr.mxu0 %v90
  %244 = vmatpush2.msra.mxu0 %v89
  %245 = vmatprep.subr.mxu0 %v88
  %246 = vmatpush2.msra.mxu0 %v87
  %247 = vmatprep.subr.mxu0 %v86
  %248 = vmatpush2.msra.mxu0 %v85
  %249 = vmatprep.subr.mxu0 %v84
  %250 = vmatpush2.msra.mxu0 %v83
  %251 = vmatprep.subr.mxu0 %v82
  %252 = vmatpush2.msra.mxu0 %v81
  %253 = vmatprep.subr.mxu0 %v80
  %254 = vmatpush2.msra.mxu0 %v79
  %255 = vmatprep.subr.mxu0 %v78
  %256 = vmatpush2.msra.mxu0 %v77
  %257 = vmatprep.subr.mxu0 %v76
  %258 = vmatpush2.msra.mxu0 %v75
  %259 = vmatprep.subr.mxu0 %v74
  %260 = vmatpush2.msra.mxu0 %v73
  %261 = vmatprep.subr.mxu0 %v72
  %262 = vmatpush2.msra.mxu0 %v71
  %263 = vmatprep.mubr.f32.mxu0 %v35
  %264 = vmatmul.mubr.f32.gmra.mxu0 %v34
  %v265 = vpop.f32.mrf.mxu0
  %v266 = vadd.f32 %v188, %v265
  %v267 = vpop.f32.mrf.mxu0
  %v268 = vadd.f32 %v192, %v267
  %269 = vdwg.mxu0
  %270 = vmatprep.subr.mxu0 %v134
  %271 = vmatpush1.msra.mxu0 %v133
  %272 = vmatprep.subr.mxu0 %v132
  %273 = vmatpush1.msra.mxu0 %v131
  %274 = vmatprep.subr.mxu0 %v130
  %275 = vmatpush1.msra.mxu0 %v129
  %276 = vmatprep.subr.mxu0 %v128
  %277 = vmatpush1.msra.mxu0 %v127
  %278 = vmatprep.subr.mxu0 %v126
  %279 = vmatpush1.msra.mxu0 %v125
  %280 = vmatprep.subr.mxu0 %v124
  %281 = vmatpush1.msra.mxu0 %v123
  %282 = vmatprep.subr.mxu0 %v122
  %283 = vmatpush1.msra.mxu0 %v121
  %284 = vmatprep.subr.mxu0 %v120
  %285 = vmatpush1.msra.mxu0 %v119
  %286 = vmatprep.subr.mxu0 %v118
  %287 = vmatpush1.msra.mxu0 %v117
  %288 = vmatprep.subr.mxu0 %v116
  %289 = vmatpush1.msra.mxu0 %v115
  %290 = vmatprep.subr.mxu0 %v114
  %291 = vmatpush1.msra.mxu0 %v113
  %292 = vmatprep.subr.mxu0 %v112
  %293 = vmatpush1.msra.mxu0 %v111
  %294 = vmatprep.subr.mxu0 %v110
  %295 = vmatpush1.msra.mxu0 %v109
  %296 = vmatprep.subr.mxu0 %v108
  %297 = vmatpush1.msra.mxu0 %v107
  %298 = vmatprep.subr.mxu0 %v106
  %299 = vmatpush1.msra.mxu0 %v105
  %300 = vmatprep.subr.mxu0 %v104
  %301 = vmatpush1.msra.mxu0 %v103
  %302 = vmatprep.subr.mxu0 %v166
  %303 = vmatpush2.msra.mxu0 %v165
  %304 = vmatprep.subr.mxu0 %v164
  %305 = vmatpush2.msra.mxu0 %v163
  %306 = vmatprep.subr.mxu0 %v162
  %307 = vmatpush2.msra.mxu0 %v161
  %308 = vmatprep.subr.mxu0 %v160
  %309 = vmatpush2.msra.mxu0 %v159
  %310 = vmatprep.subr.mxu0 %v158
  %311 = vmatpush2.msra.mxu0 %v157
  %312 = vmatprep.subr.mxu0 %v156
  %313 = vmatpush2.msra.mxu0 %v155
  %314 = vmatprep.subr.mxu0 %v154
  %315 = vmatpush2.msra.mxu0 %v153
  %316 = vmatprep.subr.mxu0 %v152
  %317 = vmatpush2.msra.mxu0 %v151
  %318 = vmatprep.subr.mxu0 %v150
  %319 = vmatpush2.msra.mxu0 %v149
  %320 = vmatprep.subr.mxu0 %v148
  %321 = vmatpush2.msra.mxu0 %v147
  %322 = vmatprep.subr.mxu0 %v146
  %323 = vmatpush2.msra.mxu0 %v145
  %324 = vmatprep.subr.mxu0 %v144
  %325 = vmatpush2.msra.mxu0 %v143
  %326 = vmatprep.subr.mxu0 %v142
  %327 = vmatpush2.msra.mxu0 %v141
  %328 = vmatprep.subr.mxu0 %v140
  %329 = vmatpush2.msra.mxu0 %v139
  %330 = vmatprep.subr.mxu0 %v138
  %331 = vmatpush2.msra.mxu0 %v137
  %332 = vmatprep.subr.mxu0 %v136
  %333 = vmatpush2.msra.mxu0 %v135
  %334 = vmatprep.mubr.f32.mxu0 %v37
  %335 = vmatmul.mubr.f32.gmra.mxu0 %v36
  %v336 = vpop.f32.mrf.mxu0
  %v337 = vadd.f32 %v266, %v336
  %v338 = vpop.f32.mrf.mxu0
  %v339 = vadd.f32 %v268, %v338
  %340 = vdwg.mxu0
  %341 = vmatprep.subr.mxu0 0.0
  %342 = vmatpush1.msra.mxu0 0.0
  %343 = vmatprep.subr.mxu0 0.0
  %344 = vmatpush1.msra.mxu0 0.0
  %345 = vmatprep.subr.mxu0 0.0
  %346 = vmatpush1.msra.mxu0 0.0
  %347 = vmatprep.subr.mxu0 0.0
  %348 = vmatpush1.msra.mxu0 0.0
  %349 = vmatprep.subr.mxu0 0.0
  %350 = vmatpush1.msra.mxu0 0.0
  %351 = vmatprep.subr.mxu0 0.0
  %352 = vmatpush1.msra.mxu0 0.0
  %353 = vmatprep.subr.mxu0 0.0
  %354 = vmatpush1.msra.mxu0 0.0
  %355 = vmatprep.subr.mxu0 0.0
  %356 = vmatpush1.msra.mxu0 0.0
  %357 = vmatprep.subr.mxu0 %v182
  %358 = vmatpush1.msra.mxu0 %v181
  %359 = vmatprep.subr.mxu0 %v180
  %360 = vmatpush1.msra.mxu0 %v179
  %361 = vmatprep.subr.mxu0 %v178
  %362 = vmatpush1.msra.mxu0 %v177
  %363 = vmatprep.subr.mxu0 %v176
  %364 = vmatpush1.msra.mxu0 %v175
  %365 = vmatprep.subr.mxu0 %v174
  %366 = vmatpush1.msra.mxu0 %v173
  %367 = vmatprep.subr.mxu0 %v172
  %368 = vmatpush1.msra.mxu0 %v171
  %369 = vmatprep.subr.mxu0 %v170
  %370 = vmatpush1.msra.mxu0 %v169
  %371 = vmatprep.subr.mxu0 %v168
  %372 = vmatpush1.msra.mxu0 %v167
  %373 = vmatprep.subr.mxu0 0.0
  %374 = vmatpush2.msra.mxu0 0.0
  %375 = vmatprep.subr.mxu0 0.0
  %376 = vmatpush2.msra.mxu0 0.0
  %377 = vmatprep.subr.mxu0 0.0
  %378 = vmatpush2.msra.mxu0 0.0
  %379 = vmatprep.subr.mxu0 0.0
  %380 = vmatpush2.msra.mxu0 0.0
  %381 = vmatprep.subr.mxu0 0.0
  %382 = vmatpush2.msra.mxu0 0.0
  %383 = vmatprep.subr.mxu0 0.0
  %384 = vmatpush2.msra.mxu0 0.0
  %385 = vmatprep.subr.mxu0 0.0
  %386 = vmatpush2.msra.mxu0 0.0
  %387 = vmatprep.subr.mxu0 0.0
  %388 = vmatpush2.msra.mxu0 0.0
  %389 = vmatprep.subr.mxu0 0.0
  %390 = vmatpush2.msra.mxu0 0.0
  %391 = vmatprep.subr.mxu0 0.0
  %392 = vmatpush2.msra.mxu0 0.0
  %393 = vmatprep.subr.mxu0 0.0
  %394 = vmatpush2.msra.mxu0 0.0
  %395 = vmatprep.subr.mxu0 0.0
  %396 = vmatpush2.msra.mxu0 0.0
  %397 = vmatprep.subr.mxu0 0.0
  %398 = vmatpush2.msra.mxu0 0.0
  %399 = vmatprep.subr.mxu0 0.0
  %400 = vmatpush2.msra.mxu0 0.0
  %401 = vmatprep.subr.mxu0 0.0
  %402 = vmatpush2.msra.mxu0 0.0
  %403 = vmatprep.subr.mxu0 0.0
  %404 = vmatpush2.msra.mxu0 0.0
  %405 = vmatprep.mubr.f32.mxu0 0.0
  %406 = vmatmul.mubr.f32.gmra.mxu0 %v197
  %v407 = vpop.f32.mrf.mxu0
  %v408 = vadd.f32 %v337, %v407
  %v409 = vpop.f32.mrf.mxu0
  %v410 = vadd.f32 %v339, %v409
  %411 = vdwg.mxu0
  %vm412 = vcmp.gt.f32.partialorder %v408, 0.0
  %vm413 = vcmp.gt.f32.partialorder %v410, 0.0
  %s414 = sld [smem:[#allocation2]]
  %v415 = vstv %s414
  %v416 = vmul.f32 %v408, %v415
  %v417 = vmul.f32 %v410, %v415
  %v418 = vsel %vm412, %v408, %v416
  %v419 = vsel %vm413, %v410, %v417
  %v420 = vld [vmem:[%s4] sm:$0xff]
  %v421 = vld [vmem:[%s4 + $0x8] sm:$0xff]
  %v422 = vld [vmem:[%s4 + $0x10] sm:$0xff]
  %v423 = vld [vmem:[%s4 + $0x18] sm:$0xff]
  %v424 = vld [vmem:[%s4 + $0x20] sm:$0xff]
  %v425 = vld [vmem:[%s4 + $0x28] sm:$0xff]
  %v426 = vld [vmem:[%s4 + $0x30] sm:$0xff]
  %v427 = vld [vmem:[%s4 + $0x38] sm:$0xff]
  %v428 = vld [vmem:[%s4 + $0x40] sm:$0xff]
  %v429 = vld [vmem:[%s4 + $0x48] sm:$0xff]
  %v430 = vld [vmem:[%s4 + $0x50] sm:$0xff]
  %v431 = vld [vmem:[%s4 + $0x58] sm:$0xff]
  %v432 = vld [vmem:[%s4 + $0x60] sm:$0xff]
  %v433 = vld [vmem:[%s4 + $0x68] sm:$0xff]
  %v434 = vld [vmem:[%s4 + $0x70] sm:$0xff]
  %v435 = vld [vmem:[%s4 + $0x78] sm:$0xff]
  %v436 = vld [vmem:[%s4 + $0x80] sm:$0xff]
  %v437 = vld [vmem:[%s4 + $0x88] sm:$0xff]
  %v438 = vld [vmem:[%s4 + $0x90] sm:$0xff]
  %v439 = vld [vmem:[%s4 + $0x98] sm:$0xff]
  %v440 = vld [vmem:[%s4 + $0xa0] sm:$0xff]
  %v441 = vld [vmem:[%s4 + $0xa8] sm:$0xff]
  %v442 = vld [vmem:[%s4 + $0xb0] sm:$0xff]
  %v443 = vld [vmem:[%s4 + $0xb8] sm:$0xff]
  %v444 = vld [vmem:[%s4 + $0xc0] sm:$0xff]
  %v445 = vld [vmem:[%s4 + $0xc8] sm:$0xff]
  %v446 = vld [vmem:[%s4 + $0xd0] sm:$0xff]
  %v447 = vld [vmem:[%s4 + $0xd8] sm:$0xff]
  %v448 = vld [vmem:[%s4 + $0xe0] sm:$0xff]
  %v449 = vld [vmem:[%s4 + $0xe8] sm:$0xff]
  %v450 = vld [vmem:[%s4 + $0xf0] sm:$0xff]
  %v451 = vld [vmem:[%s4 + $0xf8] sm:$0xff]
  %v452 = vld [vmem:[%s5] sm:$0x1]
  %v454 = vlaneseq
  %v455 = vshrl.u32 %v454, 7
  %v456 = vsub.s32 0, %v455
  %v457 = vrot.slane %v452, %v456
  %459 = vmatprep.subr.mxu0 0.0
  %460 = vmatpush1.msra.mxu0 %v435
  %461 = vmatprep.subr.mxu0 0.0
  %462 = vmatpush1.msra.mxu0 %v434
  %463 = vmatprep.subr.mxu0 0.0
  %464 = vmatpush1.msra.mxu0 %v433
  %465 = vmatprep.subr.mxu0 0.0
  %466 = vmatpush1.msra.mxu0 %v432
  %467 = vmatprep.subr.mxu0 0.0
  %468 = vmatpush1.msra.mxu0 %v431
  %469 = vmatprep.subr.mxu0 0.0
  %470 = vmatpush1.msra.mxu0 %v430
  %471 = vmatprep.subr.mxu0 0.0
  %472 = vmatpush1.msra.mxu0 %v429
  %473 = vmatprep.subr.mxu0 0.0
  %474 = vmatpush1.msra.mxu0 %v428
  %475 = vmatprep.subr.mxu0 0.0
  %476 = vmatpush1.msra.mxu0 %v427
  %477 = vmatprep.subr.mxu0 0.0
  %478 = vmatpush1.msra.mxu0 %v426
  %479 = vmatprep.subr.mxu0 0.0
  %480 = vmatpush1.msra.mxu0 %v425
  %481 = vmatprep.subr.mxu0 0.0
  %482 = vmatpush1.msra.mxu0 %v424
  %483 = vmatprep.subr.mxu0 0.0
  %484 = vmatpush1.msra.mxu0 %v423
  %485 = vmatprep.subr.mxu0 0.0
  %486 = vmatpush1.msra.mxu0 %v422
  %487 = vmatprep.subr.mxu0 0.0
  %488 = vmatpush1.msra.mxu0 %v421
  %489 = vmatprep.subr.mxu0 0.0
  %490 = vmatpush1.msra.mxu0 %v420
  %491 = vmatprep.subr.mxu0 0.0
  %492 = vmatpush2.msra.mxu0 %v451
  %493 = vmatprep.subr.mxu0 0.0
  %494 = vmatpush2.msra.mxu0 %v450
  %495 = vmatprep.subr.mxu0 0.0
  %496 = vmatpush2.msra.mxu0 %v449
  %497 = vmatprep.subr.mxu0 0.0
  %498 = vmatpush2.msra.mxu0 %v448
  %499 = vmatprep.subr.mxu0 0.0
  %500 = vmatpush2.msra.mxu0 %v447
  %501 = vmatprep.subr.mxu0 0.0
  %502 = vmatpush2.msra.mxu0 %v446
  %503 = vmatprep.subr.mxu0 0.0
  %504 = vmatpush2.msra.mxu0 %v445
  %505 = vmatprep.subr.mxu0 0.0
  %506 = vmatpush2.msra.mxu0 %v444
  %507 = vmatprep.subr.mxu0 0.0
  %508 = vmatpush2.msra.mxu0 %v443
  %509 = vmatprep.subr.mxu0 0.0
  %510 = vmatpush2.msra.mxu0 %v442
  %511 = vmatprep.subr.mxu0 0.0
  %512 = vmatpush2.msra.mxu0 %v441
  %513 = vmatprep.subr.mxu0 0.0
  %514 = vmatpush2.msra.mxu0 %v440
  %515 = vmatprep.subr.mxu0 0.0
  %516 = vmatpush2.msra.mxu0 %v439
  %517 = vmatprep.subr.mxu0 0.0
  %518 = vmatpush2.msra.mxu0 %v438
  %519 = vmatprep.subr.mxu0 0.0
  %520 = vmatpush2.msra.mxu0 %v437
  %521 = vmatprep.subr.mxu0 0.0
  %522 = vmatpush2.msra.mxu0 %v436
  %523 = vmatprep.mubr.f32.mxu0 %v419
  %524 = vmatmul.mubr.f32.gmra.mxu0 %v418
  %v525 = vpop.f32.mrf.mxu0
  %v526 = vadd.f32 %v457, %v525
  %v527 = vpop.f32.mrf.mxu0
  %528 = vdwg.mxu0
  %vm529 = vcmp.gt.f32.partialorder %v526, 0.0
  %s530 = sld [smem:[#allocation3]]
  %v531 = vstv %s530
  %v532 = vmul.f32 %v526, %v531
  %v533 = vsel %vm529, %v526, %v532
  %v534 = vld [vmem:[%s7] sm:$0xff]
  %v535 = vld [vmem:[%s7 + $0x8] sm:$0xff]
  %v536 = vld [vmem:[%s7 + $0x10] sm:$0xff]
  %v537 = vld [vmem:[%s7 + $0x18] sm:$0xff]
  %v538 = vld [vmem:[%s7 + $0x20] sm:$0xff]
  %v539 = vld [vmem:[%s7 + $0x28] sm:$0xff]
  %v540 = vld [vmem:[%s7 + $0x30] sm:$0xff]
  %v541 = vld [vmem:[%s7 + $0x38] sm:$0xff]
  %v542 = vld [vmem:[%s7 + $0x40] sm:$0xff]
  %v543 = vld [vmem:[%s7 + $0x48] sm:$0xff]
  %v544 = vld [vmem:[%s7 + $0x50] sm:$0xff]
  %v545 = vld [vmem:[%s7 + $0x58] sm:$0xff]
  %v546 = vld [vmem:[%s7 + $0x60] sm:$0xff]
  %v547 = vld [vmem:[%s7 + $0x68] sm:$0xff]
  %v548 = vld [vmem:[%s7 + $0x70] sm:$0xff]
  %v549 = vld [vmem:[%s7 + $0x78] sm:$0xff]
  %v550 = vld [vmem:[%s8] sm:$0x1]
  %v552 = vlaneseq
  %v553 = vshrl.u32 %v552, 7
  %v554 = vsub.s32 0, %v553
  %v555 = vrot.slane %v550, %v554
  %557 = vmatprep.subr.mxu0 0.0
  %558 = vmatpush1.msra.mxu0 %v549
  %559 = vmatprep.subr.mxu0 0.0
  %560 = vmatpush1.msra.mxu0 %v548
  %561 = vmatprep.subr.mxu0 0.0
  %562 = vmatpush1.msra.mxu0 %v547
  %563 = vmatprep.subr.mxu0 0.0
  %564 = vmatpush1.msra.mxu0 %v546
  %565 = vmatprep.subr.mxu0 0.0
  %566 = vmatpush1.msra.mxu0 %v545
  %567 = vmatprep.subr.mxu0 0.0
  %568 = vmatpush1.msra.mxu0 %v544
  %569 = vmatprep.subr.mxu0 0.0
  %570 = vmatpush1.msra.mxu0 %v543
  %571 = vmatprep.subr.mxu0 0.0
  %572 = vmatpush1.msra.mxu0 %v542
  %573 = vmatprep.subr.mxu0 0.0
  %574 = vmatpush1.msra.mxu0 %v541
  %575 = vmatprep.subr.mxu0 0.0
  %576 = vmatpush1.msra.mxu0 %v540
  %577 = vmatprep.subr.mxu0 0.0
  %578 = vmatpush1.msra.mxu0 %v539
  %579 = vmatprep.subr.mxu0 0.0
  %580 = vmatpush1.msra.mxu0 %v538
  %581 = vmatprep.subr.mxu0 0.0
  %582 = vmatpush1.msra.mxu0 %v537
  %583 = vmatprep.subr.mxu0 0.0
  %584 = vmatpush1.msra.mxu0 %v536
  %585 = vmatprep.subr.mxu0 0.0
  %586 = vmatpush1.msra.mxu0 %v535
  %587 = vmatprep.subr.mxu0 0.0
  %588 = vmatpush1.msra.mxu0 %v534
  %589 = vmatprep.subr.mxu0 0.0
  %590 = vmatpush2.msra.mxu0 0.0
  %591 = vmatprep.subr.mxu0 0.0
  %592 = vmatpush2.msra.mxu0 0.0
  %593 = vmatprep.subr.mxu0 0.0
  %594 = vmatpush2.msra.mxu0 0.0
  %595 = vmatprep.subr.mxu0 0.0
  %596 = vmatpush2.msra.mxu0 0.0
  %597 = vmatprep.subr.mxu0 0.0
  %598 = vmatpush2.msra.mxu0 0.0
  %599 = vmatprep.subr.mxu0 0.0
  %600 = vmatpush2.msra.mxu0 0.0
  %601 = vmatprep.subr.mxu0 0.0
  %602 = vmatpush2.msra.mxu0 0.0
  %603 = vmatprep.subr.mxu0 0.0
  %604 = vmatpush2.msra.mxu0 0.0
  %605 = vmatprep.subr.mxu0 0.0
  %606 = vmatpush2.msra.mxu0 0.0
  %607 = vmatprep.subr.mxu0 0.0
  %608 = vmatpush2.msra.mxu0 0.0
  %609 = vmatprep.subr.mxu0 0.0
  %610 = vmatpush2.msra.mxu0 0.0
  %611 = vmatprep.subr.mxu0 0.0
  %612 = vmatpush2.msra.mxu0 0.0
  %613 = vmatprep.subr.mxu0 0.0
  %614 = vmatpush2.msra.mxu0 0.0
  %615 = vmatprep.subr.mxu0 0.0
  %616 = vmatpush2.msra.mxu0 0.0
  %617 = vmatprep.subr.mxu0 0.0
  %618 = vmatpush2.msra.mxu0 0.0
  %619 = vmatprep.subr.mxu0 0.0
  %620 = vmatpush2.msra.mxu0 0.0
  %621 = vmatprep.mubr.f32.mxu0 0.0
  %622 = vmatmul.mubr.f32.gmra.mxu0 %v533
  %v623 = vpop.f32.mrf.mxu0
  %v624 = vadd.f32 %v555, %v623
  %v625 = vpop.f32.mrf.mxu0
  %626 = vdwg.mxu0
  %vm627 = vcmask 121856
  %628 = vst.msk [vmem:[%s9] sm:$0xff] %vm627, %v624
  // Predicated region
  $region38: #{rnet_forward.9} parent=0 // pred_check
    _
  $region39: #{rnet_forward.9} parent=0 // pred_check_branch
    %630 = sbr.rel (0) target = $region41
  $region40: #{rnet_forward.9} parent=0 // pred_region
    _
  $region41: #{rnet_forward.9} parent=0 // pred_fallthru
    _
  // Predicated region
  $region42: #{rnet_forward.9} parent=0 // pred_check
    _
  $region43: #{rnet_forward.9} parent=0 // pred_check_branch
    %632 = sbr.rel (0) target = $region45
  $region44: #{rnet_forward.9} parent=0 // pred_region
    _
  $region45: #{rnet_forward.9} parent=0 // pred_fallthru
    _

</llo_original>
